<compile_context>
chip_gen: v6e
topology: v6e:2x2x1
jax: 0.10.0
libtpu: 0.0.40
codegen_flags: <defaults>
</compile_context>

<pallas_src>
import math

import jax
import jax.numpy as jnp
import numpy as np
from jax.experimental import pallas as pl
from jax.experimental.pallas import tpu as pltpu


# -----------------------------------------------------------------------------
# Kernel
# -----------------------------------------------------------------------------
def _peak_identifier_kernel(
    wn_ref,      # (B*T, 1)   wavenumber channel, flattened
    sig_ref,     # (B, T, 1)  signal channel
    sigr_ref,    # (B, T, 1)  signal channel, time-reversed (built in the wrapper)
    wx0f_ref,    # (1, 8H)    layer-0 fwd input weights, fused gate layout (bwd cols zero)
    wx0b_ref,    # (1, 8H)    layer-0 bwd input weights, fused gate layout (fwd cols zero)
    b0_ref,      # (1, 8H)    layer-0 bias (both directions, fused layout)
    wh0_ref,     # (2H, 8H)   layer-0 recurrent weights, block-diagonal in fused layout
    wx1_ref,     # (4H, 8H)   layer-1 input weights: rows [0:2H]=fwd dir, [2H:4H]=bwd dir
    b1_ref,      # (1, 8H)    layer-1 bias
    wh1_ref,     # (2H, 8H)   layer-1 recurrent weights
    w1wn_ref,    # (1, 2H)    dense1 column that multiplies wn
    w1_ref,      # (2H, 2H)   dense1 weight for the LSTM features (transposed)
    bd1_ref,     # (1, 2H)
    w2_ref,      # (2H, 2H)   dense2 weight (transposed)
    bd2_ref,     # (1, 2H)
    wo_ref,      # (2H, 2)    output weight (transposed)
    bo_ref,      # (1, 2)
    prelu_ref,   # (2,) SMEM  [a_dense1, a_dense2]
    out_ref,     # (B, T, 2)
    x0cat,       # scratch VMEM (B, T, 4H)  [layer-0 out, time-ordered | time-reversed]
    out1,        # scratch VMEM (B, T, 2H)  layer-1 bidirectional output (time-aligned)
    xc,          # scratch VMEM (B, T, 8H)  staged gate inputs (reused by both layers)
):
    B, T, _ = sig_ref.shape
    H8 = xc.shape[2]
    H = H8 // 8
    H2, H3, H4, H6 = 2 * H, 3 * H, 4 * H, 6 * H

    def bilstm(wh, store):
        # Fused forward+backward sweep.  Gate layout (8H columns):
        #   [i_f, i_b, f_f, f_b, o_f, o_b, g_f, g_b]
        # -> one sigmoid over 6H lanes + one tanh over 2H lanes per step.
        h = jnp.zeros((B, H2), jnp.float32)        # [h_fwd | h_bwd]
        c = jnp.zeros((B, H2), jnp.float32)
        for s in range(T):                         # static unroll: T is small here
            gates = xc[:, s, :] + jnp.dot(h, wh, preferred_element_type=jnp.float32)
            sg = jax.nn.sigmoid(gates[:, 0:H6])    # i_f,i_b,f_f,f_b,o_f,o_b
            g = jnp.tanh(gates[:, H6:H8])          # g_f, g_b
            i_, f_, o_ = sg[:, 0:H2], sg[:, H2:H4], sg[:, H4:H6]
            c = f_ * c + i_ * g
            h = o_ * jnp.tanh(c)
            store(s, h)

    # ---------------- LSTM layer 0 (input size 1) ------------------------------------------
    # Stage fwd + bwd input projections pre-summed into one buffer: step s of the fused loop
    # needs sig[s]*Wf (fwd) and sig[T-1-s]*Wb (bwd); sigr already is sig reversed in time.
    xc[...] = (sig_ref[...] * wx0f_ref[...][None, :, :]
               + sigr_ref[...] * wx0b_ref[...][None, :, :]
               + b0_ref[...][None, :, :])

    def store0(s, h):
        hf, hb = h[:, 0:H], h[:, H:H2]
        # time-ordered copy (consumed by layer 1's forward direction)
        x0cat[:, s, 0:H] = hf                      # fwd output belongs to time s
        x0cat[:, T - 1 - s, H:H2] = hb             # bwd output belongs to time T-1-s
        # time-reversed copy (consumed by layer 1's backward direction)
        x0cat[:, T - 1 - s, H2:H3] = hf
        x0cat[:, s, H3:H4] = hb

    bilstm(wh0_ref[...], store0)

    # ---------------- LSTM layer 1 (input size 2H) -----------------------------------------
    # Single K=4H matmul stages BOTH directions' input projections (pre-summed layout).
    xin = x0cat[...].reshape(B * T, H4)
    xc[...] = (jnp.dot(xin, wx1_ref[...], preferred_element_type=jnp.float32)
               + b1_ref[...]).reshape(B, T, H8)

    def store1(s, h):
        out1[:, s, 0:H] = h[:, 0:H]
        out1[:, T - 1 - s, H:H2] = h[:, H:H2]

    bilstm(wh1_ref[...], store1)

    # ---------------- Dense head: [wn | lstm] -> dense1 -> PReLU -> dense2 -> PReLU -> out --
    X = out1[...].reshape(B * T, H2)
    a1 = prelu_ref[0]
    a2 = prelu_ref[1]

    d1 = (wn_ref[...] * w1wn_ref[...]
          + jnp.dot(X, w1_ref[...], preferred_element_type=jnp.float32)
          + bd1_ref[...])
    d1 = jnp.where(d1 >= 0.0, d1, a1 * d1)         # PReLU

    d2 = jnp.dot(d1, w2_ref[...], preferred_element_type=jnp.float32) + bd2_ref[...]
    d2 = jnp.where(d2 >= 0.0, d2, a2 * d2)         # PReLU

    y = jnp.dot(d2, wo_ref[...], preferred_element_type=jnp.float32) + bo_ref[...]
    out_ref[...] = y.reshape(B, T, 2)


# -----------------------------------------------------------------------------
# Offline weight re-layout (PyTorch [i,f,g,o] per direction -> fused interleaved layout)
# -----------------------------------------------------------------------------
def _fuse_dir(w, d, H):
    """Place one direction's gates into the fused 8H layout.

    w: (..., 4H) with PyTorch gate order [i, f, g, o].
    Returns (..., 8H) laid out as [i_f, i_b, f_f, f_b, o_f, o_b, g_f, g_b] with this
    direction's gates filled in and the other direction's columns zero.
    """
    src = {"i": 0, "f": 1, "g": 2, "o": 3}    # PyTorch gate order
    dst = {"i": 0, "f": 1, "o": 2, "g": 3}    # fused order: sigmoid gates first, tanh last
    out = jnp.zeros(w.shape[:-1] + (8 * H,), w.dtype)
    for gate in ("i", "f", "o", "g"):
        block = w[..., src[gate] * H:(src[gate] + 1) * H]
        col = dst[gate] * 2 * H + d * H
        out = out.at[..., col:col + H].set(block)
    return out


def _prepare_fused_params(p):
    H = p["wh0"].shape[1]
    wx0f = _fuse_dir(p["wx0"][0:1], 0, H)                           # (1, 8H)
    wx0b = _fuse_dir(p["wx0"][1:2], 1, H)                           # (1, 8H)
    b0c = _fuse_dir(p["b0"][0:1], 0, H) + _fuse_dir(p["b0"][1:2], 1, H)
    wh0b = jnp.concatenate([_fuse_dir(p["wh0"][0], 0, H),
                            _fuse_dir(p["wh0"][1], 1, H)], axis=0)  # (2H, 8H) block-diag
    wx1cat = jnp.concatenate([_fuse_dir(p["wx1"][0], 0, H),
                              _fuse_dir(p["wx1"][1], 1, H)], axis=0)  # (4H, 8H)
    b1c = _fuse_dir(p["b1"][0:1], 0, H) + _fuse_dir(p["b1"][1:2], 1, H)
    wh1b = jnp.concatenate([_fuse_dir(p["wh1"][0], 0, H),
                            _fuse_dir(p["wh1"][1], 1, H)], axis=0)  # (2H, 8H) block-diag
    return wx0f, wx0b, b0c, wh0b, wx1cat, b1c, wh1b


# -----------------------------------------------------------------------------
# Wrapper
# -----------------------------------------------------------------------------
def peak_identifier_forward(x, params):
    """x: (B, 2, T) float32 -> (B, T, 2) float32."""
    B, two, T = x.shape
    assert two == 2
    H = params["wh0"].shape[1]

    wn = x[:, 0, :].reshape(B * T, 1).astype(jnp.float32)     # glue reshape
    sig = x[:, 1, :].reshape(B, T, 1).astype(jnp.float32)
    sig_rev = sig[:, ::-1, :]                                  # wrapper-side layout plumbing

    wx0f, wx0b, b0c, wh0b, wx1cat, b1c, wh1b = _prepare_fused_params(params)

    vmem = pl.BlockSpec(memory_space=pltpu.MemorySpace.VMEM)
    smem = pl.BlockSpec(memory_space=pltpu.MemorySpace.SMEM)

    fn = pl.pallas_call(
        _peak_identifier_kernel,
        out_shape=jax.ShapeDtypeStruct((B, T, 2), jnp.float32),
        in_specs=[vmem] * 17 + [smem],
        out_specs=vmem,
        scratch_shapes=[
            pltpu.VMEM((B, T, 4 * H), jnp.float32),   # x0cat (layer-0 out, both time orders)
            pltpu.VMEM((B, T, 2 * H), jnp.float32),   # out1
            pltpu.VMEM((B, T, 8 * H), jnp.float32),   # xc (staged gates, reused both layers)
        ],
    )
    return fn(
        wn, sig, sig_rev,
        wx0f, wx0b, b0c, wh0b,
        wx1cat, b1c, wh1b,
        params["w1wn"], params["w1"], params["bd1"],
        params["w2"], params["bd2"],
        params["wo"], params["bo"],
        params["prelu"],
    )


# -----------------------------------------------------------------------------
# Pure-JAX reference (PyTorch gate order / per-direction loops) — correctness check
# -----------------------------------------------------------------------------
def _reference(x, p):
    B, _, T = x.shape
    H = p["wh0"].shape[1]
    wn = x[:, 0, :]
    sig = x[:, 1, :]

    def cell(xc, h, c, wh, b):
        gates = xc + h @ wh + b
        i = jax.nn.sigmoid(gates[:, 0:H])
        f = jax.nn.sigmoid(gates[:, H:2 * H])
        g = jnp.tanh(gates[:, 2 * H:3 * H])
        o = jax.nn.sigmoid(gates[:, 3 * H:4 * H])
        c = f * c + i * g
        return o * jnp.tanh(c), c

    out0 = jnp.zeros((B, T, 2 * H), jnp.float32)
    for d, order in ((0, range(T)), (1, range(T - 1, -1, -1))):
        h = jnp.zeros((B, H)); c = jnp.zeros((B, H))
        for t in order:
            xc = sig[:, t:t + 1] * p["wx0"][d:d + 1]
            h, c = cell(xc, h, c, p["wh0"][d], p["b0"][d:d + 1])
            out0 = out0.at[:, t, d * H:(d + 1) * H].set(h)

    out1 = jnp.zeros((B, T, 2 * H), jnp.float32)
    for d, order in ((0, range(T)), (1, range(T - 1, -1, -1))):
        h = jnp.zeros((B, H)); c = jnp.zeros((B, H))
        for t in order:
            xc = out0[:, t, :] @ p["wx1"][d]
            h, c = cell(xc, h, c, p["wh1"][d], p["b1"][d:d + 1])
            out1 = out1.at[:, t, d * H:(d + 1) * H].set(h)

    X = out1.reshape(B * T, 2 * H)
    wnf = wn.reshape(B * T, 1)
    a1, a2 = p["prelu"][0], p["prelu"][1]
    d1 = wnf * p["w1wn"] + X @ p["w1"] + p["bd1"]
    d1 = jnp.where(d1 >= 0.0, d1, a1 * d1)
    d2 = d1 @ p["w2"] + p["bd2"]
    d2 = jnp.where(d2 >= 0.0, d2, a2 * d2)
    y = d2 @ p["wo"] + p["bo"]
    return y.reshape(B, T, 2)


# -----------------------------------------------------------------------------
# Deterministic parameter construction + demo run
# -----------------------------------------------------------------------------
def make_params(hidden_size, key):
    H = hidden_size
    k = 1.0 / math.sqrt(H)
    keys = jax.random.split(key, 16)

    def u(kk, shape):
        return jax.random.uniform(kk, shape, jnp.float32, minval=-k, maxval=k)

    return dict(
        # LSTM layer 0 (input_size=1), dims: [fwd, bwd], gate columns in PyTorch order i,f,g,o
        wx0=u(keys[0], (2, 4 * H)),
        wh0=u(keys[1], (2, H, 4 * H)),
        b0=u(keys[2], (2, 4 * H)),
        # LSTM layer 1 (input_size=2H)
        wx1=u(keys[3], (2, 2 * H, 4 * H)),
        wh1=u(keys[4], (2, H, 4 * H)),
        b1=u(keys[5], (2, 4 * H)),
        # dense1: Linear(2H+1, 2H) split into wn column + 2H x 2H matrix (transposed)
        w1wn=u(keys[6], (1, 2 * H)),
        w1=u(keys[7], (2 * H, 2 * H)),
        bd1=u(keys[8], (1, 2 * H)),
        # dense2: Linear(2H, 2H)
        w2=u(keys[9], (2 * H, 2 * H)),
        bd2=u(keys[10], (1, 2 * H)),
        # output: Linear(2H, 2)
        wo=u(keys[11], (2 * H, 2)),
        bo=u(keys[12], (1, 2)),
        # PReLU params (PyTorch default init 0.25)
        prelu=jnp.array([0.25, 0.25], jnp.float32),
    )


if __name__ == "__main__":
    B, T, H = 2, 8, 32            # small shapes: batch=2, seq=8, hidden_size=32
    key = jax.random.PRNGKey(0)
    kx, kp = jax.random.split(key)

    params = make_params(H, kp)
    x = jax.random.normal(kx, (B, 2, T), jnp.float32)   # (batch, [wn, signal], seq)

    out = jax.jit(peak_identifier_forward)(x, params)
    out = jax.block_until_ready(out)

    ref = _reference(x, params)
    assert out.shape == (B, T, 2)
    np.testing.assert_allclose(np.asarray(out), np.asarray(ref), atol=1e-3, rtol=1e-3)

    print("KERNEL_OK")
</pallas_src>

<mosaic_0001>
module attributes {stable_mosaic.version = 11 : i64} {
  func.func @_peak_identifier_kernel(%arg0: memref<16x1xf32, #tpu.memory_space<vmem>>, %arg1: memref<2x8x1xf32, #tpu.memory_space<vmem>>, %arg2: memref<2x8x1xf32, #tpu.memory_space<vmem>>, %arg3: memref<1x256xf32, #tpu.memory_space<vmem>>, %arg4: memref<1x256xf32, #tpu.memory_space<vmem>>, %arg5: memref<1x256xf32, #tpu.memory_space<vmem>>, %arg6: memref<64x256xf32, #tpu.memory_space<vmem>>, %arg7: memref<128x256xf32, #tpu.memory_space<vmem>>, %arg8: memref<1x256xf32, #tpu.memory_space<vmem>>, %arg9: memref<64x256xf32, #tpu.memory_space<vmem>>, %arg10: memref<1x64xf32, #tpu.memory_space<vmem>>, %arg11: memref<64x64xf32, #tpu.memory_space<vmem>>, %arg12: memref<1x64xf32, #tpu.memory_space<vmem>>, %arg13: memref<64x64xf32, #tpu.memory_space<vmem>>, %arg14: memref<1x64xf32, #tpu.memory_space<vmem>>, %arg15: memref<64x2xf32, #tpu.memory_space<vmem>>, %arg16: memref<1x2xf32, #tpu.memory_space<vmem>>, %arg17: memref<2xf32, #tpu.memory_space<smem>>, %arg18: memref<2x8x2xf32, #tpu.memory_space<vmem>>, %arg19: memref<2x8x128xf32, #tpu.memory_space<vmem>>, %arg20: memref<2x8x64xf32, #tpu.memory_space<vmem>>, %arg21: memref<2x8x256xf32, #tpu.memory_space<vmem>>) attributes {dimension_semantics = [], scalar_prefetch = 0 : i64, scratch_operands = 3 : i64, tpu.core_type = #tpu.core_type<tc>} {
    %c0 = arith.constant 0 : index
    %c0_0 = arith.constant 0 : index
    %c0_1 = arith.constant 0 : index
    %0 = vector.load %arg1[%c0, %c0_0, %c0_1] : memref<2x8x1xf32, #tpu.memory_space<vmem>>, vector<2x8x1xf32>
    %c0_2 = arith.constant 0 : index
    %c0_3 = arith.constant 0 : index
    %1 = vector.load %arg3[%c0_2, %c0_3] : memref<1x256xf32, #tpu.memory_space<vmem>>, vector<1x256xf32>
    %2 = vector.shape_cast %1 : vector<1x256xf32> to vector<1x1x256xf32>
    %3 = vector.broadcast %0 : vector<2x8x1xf32> to vector<2x8x256xf32>
    %4 = vector.broadcast %2 : vector<1x1x256xf32> to vector<2x8x256xf32>
    %5 = arith.mulf %3, %4 : vector<2x8x256xf32>
    %c0_4 = arith.constant 0 : index
    %c0_5 = arith.constant 0 : index
    %c0_6 = arith.constant 0 : index
    %6 = vector.load %arg2[%c0_4, %c0_5, %c0_6] : memref<2x8x1xf32, #tpu.memory_space<vmem>>, vector<2x8x1xf32>
    %c0_7 = arith.constant 0 : index
    %c0_8 = arith.constant 0 : index
    %7 = vector.load %arg4[%c0_7, %c0_8] : memref<1x256xf32, #tpu.memory_space<vmem>>, vector<1x256xf32>
    %8 = vector.shape_cast %7 : vector<1x256xf32> to vector<1x1x256xf32>
    %9 = vector.broadcast %6 : vector<2x8x1xf32> to vector<2x8x256xf32>
    %10 = vector.broadcast %8 : vector<1x1x256xf32> to vector<2x8x256xf32>
    %11 = arith.mulf %9, %10 : vector<2x8x256xf32>
    %12 = arith.addf %5, %11 : vector<2x8x256xf32>
    %c0_9 = arith.constant 0 : index
    %c0_10 = arith.constant 0 : index
    %13 = vector.load %arg5[%c0_9, %c0_10] : memref<1x256xf32, #tpu.memory_space<vmem>>, vector<1x256xf32>
    %14 = vector.shape_cast %13 : vector<1x256xf32> to vector<1x1x256xf32>
    %15 = vector.broadcast %14 : vector<1x1x256xf32> to vector<2x8x256xf32>
    %16 = arith.addf %12, %15 : vector<2x8x256xf32>
    %c0_11 = arith.constant 0 : index
    %c0_12 = arith.constant 0 : index
    %c0_13 = arith.constant 0 : index
    %17 = vector.load %arg21[%c0_11, %c0_12, %c0_13] : memref<2x8x256xf32, #tpu.memory_space<vmem>>, vector<2x8x256xf32>
    tpu.vector_store %arg21[%c0_11, %c0_12, %c0_13], %16 {strides = array<i32>} : memref<2x8x256xf32, #tpu.memory_space<vmem>>, vector<2x8x256xf32>,
    %c0_14 = arith.constant 0 : index
    %c0_15 = arith.constant 0 : index
    %18 = vector.load %arg6[%c0_14, %c0_15] : memref<64x256xf32, #tpu.memory_space<vmem>>, vector<64x256xf32>
    %cst = arith.constant 0.000000e+00 : f32
    %19 = vector.broadcast %cst : f32 to vector<2x64xf32>
    %cst_16 = arith.constant 0.000000e+00 : f32
    %20 = vector.broadcast %cst_16 : f32 to vector<2x64xf32>
    %c0_17 = arith.constant 0 : index
    %c0_18 = arith.constant 0 : index
    %c0_19 = arith.constant 0 : index
    %21 = vector.load %arg21[%c0_17, %c0_18, %c0_19] : memref<2x8x256xf32, #tpu.memory_space<vmem>>, vector<2x1x256xf32>
    %22 = vector.shape_cast %21 : vector<2x1x256xf32> to vector<2x256xf32>
    %cst_20 = arith.constant dense<0.000000e+00> : vector<2x256xf32>
    %23 = tpu.matmul %19, %18, %cst_20 {dimension_numbers = #tpu.dot_dimension_numbers<[1], [0], [0], [1], [0, 0, 1, 1], [], []>} : vector<2x64xf32>, vector<64x256xf32>, vector<2x256xf32> -> vector<2x256xf32>
    %24 = arith.addf %22, %23 : vector<2x256xf32>
    %25 = vector.extract_strided_slice %24 {offsets = [0, 0], sizes = [2, 192], strides = [1, 1]} : vector<2x256xf32> to vector<2x192xf32>
    %26 = arith.negf %25 : vector<2x192xf32>
    %27 = math.exp %26 : vector<2x192xf32>
    %cst_21 = arith.constant 1.000000e+00 : f32
    %28 = vector.broadcast %cst_21 : f32 to vector<2x192xf32>
    %29 = arith.addf %28, %27 : vector<2x192xf32>
    %30 = arith.divf %28, %29 : vector<2x192xf32>
    %31 = vector.extract_strided_slice %24 {offsets = [0, 192], sizes = [2, 64], strides = [1, 1]} : vector<2x256xf32> to vector<2x64xf32>
    %32 = math.tanh %31 : vector<2x64xf32>
    %33 = vector.extract_strided_slice %30 {offsets = [0, 0], sizes = [2, 64], strides = [1, 1]} : vector<2x192xf32> to vector<2x64xf32>
    %34 = vector.extract_strided_slice %30 {offsets = [0, 64], sizes = [2, 64], strides = [1, 1]} : vector<2x192xf32> to vector<2x64xf32>
    %35 = vector.extract_strided_slice %30 {offsets = [0, 128], sizes = [2, 64], strides = [1, 1]} : vector<2x192xf32> to vector<2x64xf32>
    %36 = arith.mulf %34, %20 : vector<2x64xf32>
    %37 = arith.mulf %33, %32 : vector<2x64xf32>
    %38 = arith.addf %36, %37 : vector<2x64xf32>
    %39 = math.tanh %38 : vector<2x64xf32>
    %40 = arith.mulf %35, %39 : vector<2x64xf32>
    %41 = vector.extract_strided_slice %40 {offsets = [0, 0], sizes = [2, 32], strides = [1, 1]} : vector<2x64xf32> to vector<2x32xf32>
    %42 = vector.extract_strided_slice %40 {offsets = [0, 32], sizes = [2, 32], strides = [1, 1]} : vector<2x64xf32> to vector<2x32xf32>
    %c0_22 = arith.constant 0 : index
    %c0_23 = arith.constant 0 : index
    %c0_24 = arith.constant 0 : index
    %43 = vector.load %arg19[%c0_22, %c0_23, %c0_24] : memref<2x8x128xf32, #tpu.memory_space<vmem>>, vector<2x1x32xf32>
    %44 = vector.shape_cast %43 : vector<2x1x32xf32> to vector<2x32xf32>
    %45 = vector.shape_cast %41 : vector<2x32xf32> to vector<2x1x32xf32>
    tpu.vector_store %arg19[%c0_22, %c0_23, %c0_24], %45 {strides = array<i32>} : memref<2x8x128xf32, #tpu.memory_space<vmem>>, vector<2x1x32xf32>,
    %c0_25 = arith.constant 0 : index
    %c7 = arith.constant 7 : index
    %c32 = arith.constant 32 : index
    %46 = vector.load %arg19[%c0_25, %c7, %c32] : memref<2x8x128xf32, #tpu.memory_space<vmem>>, vector<2x1x32xf32>
    %47 = vector.shape_cast %46 : vector<2x1x32xf32> to vector<2x32xf32>
    %48 = vector.shape_cast %42 : vector<2x32xf32> to vector<2x1x32xf32>
    tpu.vector_store %arg19[%c0_25, %c7, %c32], %48 {strides = array<i32>} : memref<2x8x128xf32, #tpu.memory_space<vmem>>, vector<2x1x32xf32>,
    %c0_26 = arith.constant 0 : index
    %c7_27 = arith.constant 7 : index
    %c64 = arith.constant 64 : index
    %49 = vector.load %arg19[%c0_26, %c7_27, %c64] : memref<2x8x128xf32, #tpu.memory_space<vmem>>, vector<2x1x32xf32>
    %50 = vector.shape_cast %49 : vector<2x1x32xf32> to vector<2x32xf32>
    %51 = vector.shape_cast %41 : vector<2x32xf32> to vector<2x1x32xf32>
    tpu.vector_store %arg19[%c0_26, %c7_27, %c64], %51 {strides = array<i32>} : memref<2x8x128xf32, #tpu.memory_space<vmem>>, vector<2x1x32xf32>,
    %c0_28 = arith.constant 0 : index
    %c0_29 = arith.constant 0 : index
    %c96 = arith.constant 96 : index
    %52 = vector.load %arg19[%c0_28, %c0_29, %c96] : memref<2x8x128xf32, #tpu.memory_space<vmem>>, vector<2x1x32xf32>
    %53 = vector.shape_cast %52 : vector<2x1x32xf32> to vector<2x32xf32>
    %54 = vector.shape_cast %42 : vector<2x32xf32> to vector<2x1x32xf32>
    tpu.vector_store %arg19[%c0_28, %c0_29, %c96], %54 {strides = array<i32>} : memref<2x8x128xf32, #tpu.memory_space<vmem>>, vector<2x1x32xf32>,
    %c0_30 = arith.constant 0 : index
    %c1 = arith.constant 1 : index
    %c0_31 = arith.constant 0 : index
    %55 = vector.load %arg21[%c0_30, %c1, %c0_31] : memref<2x8x256xf32, #tpu.memory_space<vmem>>, vector<2x1x256xf32>
    %56 = vector.shape_cast %55 : vector<2x1x256xf32> to vector<2x256xf32>
    %cst_32 = arith.constant dense<0.000000e+00> : vector<2x256xf32>
    %57 = tpu.matmul %40, %18, %cst_32 {dimension_numbers = #tpu.dot_dimension_numbers<[1], [0], [0], [1], [0, 0, 1, 1], [], []>} : vector<2x64xf32>, vector<64x256xf32>, vector<2x256xf32> -> vector<2x256xf32>
    %58 = arith.addf %56, %57 : vector<2x256xf32>
    %59 = vector.extract_strided_slice %58 {offsets = [0, 0], sizes = [2, 192], strides = [1, 1]} : vector<2x256xf32> to vector<2x192xf32>
    %60 = arith.negf %59 : vector<2x192xf32>
    %61 = math.exp %60 : vector<2x192xf32>
    %cst_33 = arith.constant 1.000000e+00 : f32
    %62 = vector.broadcast %cst_33 : f32 to vector<2x192xf32>
    %63 = arith.addf %62, %61 : vector<2x192xf32>
    %64 = arith.divf %62, %63 : vector<2x192xf32>
    %65 = vector.extract_strided_slice %58 {offsets = [0, 192], sizes = [2, 64], strides = [1, 1]} : vector<2x256xf32> to vector<2x64xf32>
    %66 = math.tanh %65 : vector<2x64xf32>
    %67 = vector.extract_strided_slice %64 {offsets = [0, 0], sizes = [2, 64], strides = [1, 1]} : vector<2x192xf32> to vector<2x64xf32>
    %68 = vector.extract_strided_slice %64 {offsets = [0, 64], sizes = [2, 64], strides = [1, 1]} : vector<2x192xf32> to vector<2x64xf32>
    %69 = vector.extract_strided_slice %64 {offsets = [0, 128], sizes = [2, 64], strides = [1, 1]} : vector<2x192xf32> to vector<2x64xf32>
    %70 = arith.mulf %68, %38 : vector<2x64xf32>
    %71 = arith.mulf %67, %66 : vector<2x64xf32>
    %72 = arith.addf %70, %71 : vector<2x64xf32>
    %73 = math.tanh %72 : vector<2x64xf32>
    %74 = arith.mulf %69, %73 : vector<2x64xf32>
    %75 = vector.extract_strided_slice %74 {offsets = [0, 0], sizes = [2, 32], strides = [1, 1]} : vector<2x64xf32> to vector<2x32xf32>
    %76 = vector.extract_strided_slice %74 {offsets = [0, 32], sizes = [2, 32], strides = [1, 1]} : vector<2x64xf32> to vector<2x32xf32>
    %c0_34 = arith.constant 0 : index
    %c1_35 = arith.constant 1 : index
    %c0_36 = arith.constant 0 : index
    %77 = vector.load %arg19[%c0_34, %c1_35, %c0_36] : memref<2x8x128xf32, #tpu.memory_space<vmem>>, vector<2x1x32xf32>
    %78 = vector.shape_cast %77 : vector<2x1x32xf32> to vector<2x32xf32>
    %79 = vector.shape_cast %75 : vector<2x32xf32> to vector<2x1x32xf32>
    tpu.vector_store %arg19[%c0_34, %c1_35, %c0_36], %79 {strides = array<i32>} : memref<2x8x128xf32, #tpu.memory_space<vmem>>, vector<2x1x32xf32>,
    %c0_37 = arith.constant 0 : index
    %c6 = arith.constant 6 : index
    %c32_38 = arith.constant 32 : index
    %80 = vector.load %arg19[%c0_37, %c6, %c32_38] : memref<2x8x128xf32, #tpu.memory_space<vmem>>, vector<2x1x32xf32>
    %81 = vector.shape_cast %80 : vector<2x1x32xf32> to vector<2x32xf32>
    %82 = vector.shape_cast %76 : vector<2x32xf32> to vector<2x1x32xf32>
    tpu.vector_store %arg19[%c0_37, %c6, %c32_38], %82 {strides = array<i32>} : memref<2x8x128xf32, #tpu.memory_space<vmem>>, vector<2x1x32xf32>,
    %c0_39 = arith.constant 0 : index
    %c6_40 = arith.constant 6 : index
    %c64_41 = arith.constant 64 : index
    %83 = vector.load %arg19[%c0_39, %c6_40, %c64_41] : memref<2x8x128xf32, #tpu.memory_space<vmem>>, vector<2x1x32xf32>
    %84 = vector.shape_cast %83 : vector<2x1x32xf32> to vector<2x32xf32>
    %85 = vector.shape_cast %75 : vector<2x32xf32> to vector<2x1x32xf32>
    tpu.vector_store %arg19[%c0_39, %c6_40, %c64_41], %85 {strides = array<i32>} : memref<2x8x128xf32, #tpu.memory_space<vmem>>, vector<2x1x32xf32>,
    %c0_42 = arith.constant 0 : index
    %c1_43 = arith.constant 1 : index
    %c96_44 = arith.constant 96 : index
    %86 = vector.load %arg19[%c0_42, %c1_43, %c96_44] : memref<2x8x128xf32, #tpu.memory_space<vmem>>, vector<2x1x32xf32>
    %87 = vector.shape_cast %86 : vector<2x1x32xf32> to vector<2x32xf32>
    %88 = vector.shape_cast %76 : vector<2x32xf32> to vector<2x1x32xf32>
    tpu.vector_store %arg19[%c0_42, %c1_43, %c96_44], %88 {strides = array<i32>} : memref<2x8x128xf32, #tpu.memory_space<vmem>>, vector<2x1x32xf32>,
    %c0_45 = arith.constant 0 : index
    %c2 = arith.constant 2 : index
    %c0_46 = arith.constant 0 : index
    %89 = vector.load %arg21[%c0_45, %c2, %c0_46] : memref<2x8x256xf32, #tpu.memory_space<vmem>>, vector<2x1x256xf32>
    %90 = vector.shape_cast %89 : vector<2x1x256xf32> to vector<2x256xf32>
    %cst_47 = arith.constant dense<0.000000e+00> : vector<2x256xf32>
    %91 = tpu.matmul %74, %18, %cst_47 {dimension_numbers = #tpu.dot_dimension_numbers<[1], [0], [0], [1], [0, 0, 1, 1], [], []>} : vector<2x64xf32>, vector<64x256xf32>, vector<2x256xf32> -> vector<2x256xf32>
    %92 = arith.addf %90, %91 : vector<2x256xf32>
    %93 = vector.extract_strided_slice %92 {offsets = [0, 0], sizes = [2, 192], strides = [1, 1]} : vector<2x256xf32> to vector<2x192xf32>
    %94 = arith.negf %93 : vector<2x192xf32>
    %95 = math.exp %94 : vector<2x192xf32>
    %cst_48 = arith.constant 1.000000e+00 : f32
    %96 = vector.broadcast %cst_48 : f32 to vector<2x192xf32>
    %97 = arith.addf %96, %95 : vector<2x192xf32>
    %98 = arith.divf %96, %97 : vector<2x192xf32>
    %99 = vector.extract_strided_slice %92 {offsets = [0, 192], sizes = [2, 64], strides = [1, 1]} : vector<2x256xf32> to vector<2x64xf32>
    %100 = math.tanh %99 : vector<2x64xf32>
    %101 = vector.extract_strided_slice %98 {offsets = [0, 0], sizes = [2, 64], strides = [1, 1]} : vector<2x192xf32> to vector<2x64xf32>
    %102 = vector.extract_strided_slice %98 {offsets = [0, 64], sizes = [2, 64], strides = [1, 1]} : vector<2x192xf32> to vector<2x64xf32>
    %103 = vector.extract_strided_slice %98 {offsets = [0, 128], sizes = [2, 64], strides = [1, 1]} : vector<2x192xf32> to vector<2x64xf32>
    %104 = arith.mulf %102, %72 : vector<2x64xf32>
    %105 = arith.mulf %101, %100 : vector<2x64xf32>
    %106 = arith.addf %104, %105 : vector<2x64xf32>
    %107 = math.tanh %106 : vector<2x64xf32>
    %108 = arith.mulf %103, %107 : vector<2x64xf32>
    %109 = vector.extract_strided_slice %108 {offsets = [0, 0], sizes = [2, 32], strides = [1, 1]} : vector<2x64xf32> to vector<2x32xf32>
    %110 = vector.extract_strided_slice %108 {offsets = [0, 32], sizes = [2, 32], strides = [1, 1]} : vector<2x64xf32> to vector<2x32xf32>
    %c0_49 = arith.constant 0 : index
    %c2_50 = arith.constant 2 : index
    %c0_51 = arith.constant 0 : index
    %111 = vector.load %arg19[%c0_49, %c2_50, %c0_51] : memref<2x8x128xf32, #tpu.memory_space<vmem>>, vector<2x1x32xf32>
    %112 = vector.shape_cast %111 : vector<2x1x32xf32> to vector<2x32xf32>
    %113 = vector.shape_cast %109 : vector<2x32xf32> to vector<2x1x32xf32>
    tpu.vector_store %arg19[%c0_49, %c2_50, %c0_51], %113 {strides = array<i32>} : memref<2x8x128xf32, #tpu.memory_space<vmem>>, vector<2x1x32xf32>,
    %c0_52 = arith.constant 0 : index
    %c5 = arith.constant 5 : index
    %c32_53 = arith.constant 32 : index
    %114 = vector.load %arg19[%c0_52, %c5, %c32_53] : memref<2x8x128xf32, #tpu.memory_space<vmem>>, vector<2x1x32xf32>
    %115 = vector.shape_cast %114 : vector<2x1x32xf32> to vector<2x32xf32>
    %116 = vector.shape_cast %110 : vector<2x32xf32> to vector<2x1x32xf32>
    tpu.vector_store %arg19[%c0_52, %c5, %c32_53], %116 {strides = array<i32>} : memref<2x8x128xf32, #tpu.memory_space<vmem>>, vector<2x1x32xf32>,
    %c0_54 = arith.constant 0 : index
    %c5_55 = arith.constant 5 : index
    %c64_56 = arith.constant 64 : index
    %117 = vector.load %arg19[%c0_54, %c5_55, %c64_56] : memref<2x8x128xf32, #tpu.memory_space<vmem>>, vector<2x1x32xf32>
    %118 = vector.shape_cast %117 : vector<2x1x32xf32> to vector<2x32xf32>
    %119 = vector.shape_cast %109 : vector<2x32xf32> to vector<2x1x32xf32>
    tpu.vector_store %arg19[%c0_54, %c5_55, %c64_56], %119 {strides = array<i32>} : memref<2x8x128xf32, #tpu.memory_space<vmem>>, vector<2x1x32xf32>,
    %c0_57 = arith.constant 0 : index
    %c2_58 = arith.constant 2 : index
    %c96_59 = arith.constant 96 : index
    %120 = vector.load %arg19[%c0_57, %c2_58, %c96_59] : memref<2x8x128xf32, #tpu.memory_space<vmem>>, vector<2x1x32xf32>
    %121 = vector.shape_cast %120 : vector<2x1x32xf32> to vector<2x32xf32>
    %122 = vector.shape_cast %110 : vector<2x32xf32> to vector<2x1x32xf32>
    tpu.vector_store %arg19[%c0_57, %c2_58, %c96_59], %122 {strides = array<i32>} : memref<2x8x128xf32, #tpu.memory_space<vmem>>, vector<2x1x32xf32>,
    %c0_60 = arith.constant 0 : index
    %c3 = arith.constant 3 : index
    %c0_61 = arith.constant 0 : index
    %123 = vector.load %arg21[%c0_60, %c3, %c0_61] : memref<2x8x256xf32, #tpu.memory_space<vmem>>, vector<2x1x256xf32>
    %124 = vector.shape_cast %123 : vector<2x1x256xf32> to vector<2x256xf32>
    %cst_62 = arith.constant dense<0.000000e+00> : vector<2x256xf32>
    %125 = tpu.matmul %108, %18, %cst_62 {dimension_numbers = #tpu.dot_dimension_numbers<[1], [0], [0], [1], [0, 0, 1, 1], [], []>} : vector<2x64xf32>, vector<64x256xf32>, vector<2x256xf32> -> vector<2x256xf32>
    %126 = arith.addf %124, %125 : vector<2x256xf32>
    %127 = vector.extract_strided_slice %126 {offsets = [0, 0], sizes = [2, 192], strides = [1, 1]} : vector<2x256xf32> to vector<2x192xf32>
    %128 = arith.negf %127 : vector<2x192xf32>
    %129 = math.exp %128 : vector<2x192xf32>
    %cst_63 = arith.constant 1.000000e+00 : f32
    %130 = vector.broadcast %cst_63 : f32 to vector<2x192xf32>
    %131 = arith.addf %130, %129 : vector<2x192xf32>
    %132 = arith.divf %130, %131 : vector<2x192xf32>
    %133 = vector.extract_strided_slice %126 {offsets = [0, 192], sizes = [2, 64], strides = [1, 1]} : vector<2x256xf32> to vector<2x64xf32>
    %134 = math.tanh %133 : vector<2x64xf32>
    %135 = vector.extract_strided_slice %132 {offsets = [0, 0], sizes = [2, 64], strides = [1, 1]} : vector<2x192xf32> to vector<2x64xf32>
    %136 = vector.extract_strided_slice %132 {offsets = [0, 64], sizes = [2, 64], strides = [1, 1]} : vector<2x192xf32> to vector<2x64xf32>
    %137 = vector.extract_strided_slice %132 {offsets = [0, 128], sizes = [2, 64], strides = [1, 1]} : vector<2x192xf32> to vector<2x64xf32>
    %138 = arith.mulf %136, %106 : vector<2x64xf32>
    %139 = arith.mulf %135, %134 : vector<2x64xf32>
    %140 = arith.addf %138, %139 : vector<2x64xf32>
    %141 = math.tanh %140 : vector<2x64xf32>
    %142 = arith.mulf %137, %141 : vector<2x64xf32>
    %143 = vector.extract_strided_slice %142 {offsets = [0, 0], sizes = [2, 32], strides = [1, 1]} : vector<2x64xf32> to vector<2x32xf32>
    %144 = vector.extract_strided_slice %142 {offsets = [0, 32], sizes = [2, 32], strides = [1, 1]} : vector<2x64xf32> to vector<2x32xf32>
    %c0_64 = arith.constant 0 : index
    %c3_65 = arith.constant 3 : index
    %c0_66 = arith.constant 0 : index
    %145 = vector.load %arg19[%c0_64, %c3_65, %c0_66] : memref<2x8x128xf32, #tpu.memory_space<vmem>>, vector<2x1x32xf32>
    %146 = vector.shape_cast %145 : vector<2x1x32xf32> to vector<2x32xf32>
    %147 = vector.shape_cast %143 : vector<2x32xf32> to vector<2x1x32xf32>
    tpu.vector_store %arg19[%c0_64, %c3_65, %c0_66], %147 {strides = array<i32>} : memref<2x8x128xf32, #tpu.memory_space<vmem>>, vector<2x1x32xf32>,
    %c0_67 = arith.constant 0 : index
    %c4 = arith.constant 4 : index
    %c32_68 = arith.constant 32 : index
    %148 = vector.load %arg19[%c0_67, %c4, %c32_68] : memref<2x8x128xf32, #tpu.memory_space<vmem>>, vector<2x1x32xf32>
    %149 = vector.shape_cast %148 : vector<2x1x32xf32> to vector<2x32xf32>
    %150 = vector.shape_cast %144 : vector<2x32xf32> to vector<2x1x32xf32>
    tpu.vector_store %arg19[%c0_67, %c4, %c32_68], %150 {strides = array<i32>} : memref<2x8x128xf32, #tpu.memory_space<vmem>>, vector<2x1x32xf32>,
    %c0_69 = arith.constant 0 : index
    %c4_70 = arith.constant 4 : index
    %c64_71 = arith.constant 64 : index
    %151 = vector.load %arg19[%c0_69, %c4_70, %c64_71] : memref<2x8x128xf32, #tpu.memory_space<vmem>>, vector<2x1x32xf32>
    %152 = vector.shape_cast %151 : vector<2x1x32xf32> to vector<2x32xf32>
    %153 = vector.shape_cast %143 : vector<2x32xf32> to vector<2x1x32xf32>
    tpu.vector_store %arg19[%c0_69, %c4_70, %c64_71], %153 {strides = array<i32>} : memref<2x8x128xf32, #tpu.memory_space<vmem>>, vector<2x1x32xf32>,
    %c0_72 = arith.constant 0 : index
    %c3_73 = arith.constant 3 : index
    %c96_74 = arith.constant 96 : index
    %154 = vector.load %arg19[%c0_72, %c3_73, %c96_74] : memref<2x8x128xf32, #tpu.memory_space<vmem>>, vector<2x1x32xf32>
    %155 = vector.shape_cast %154 : vector<2x1x32xf32> to vector<2x32xf32>
    %156 = vector.shape_cast %144 : vector<2x32xf32> to vector<2x1x32xf32>
    tpu.vector_store %arg19[%c0_72, %c3_73, %c96_74], %156 {strides = array<i32>} : memref<2x8x128xf32, #tpu.memory_space<vmem>>, vector<2x1x32xf32>,
    %c0_75 = arith.constant 0 : index
    %c4_76 = arith.constant 4 : index
    %c0_77 = arith.constant 0 : index
    %157 = vector.load %arg21[%c0_75, %c4_76, %c0_77] : memref<2x8x256xf32, #tpu.memory_space<vmem>>, vector<2x1x256xf32>
    %158 = vector.shape_cast %157 : vector<2x1x256xf32> to vector<2x256xf32>
    %cst_78 = arith.constant dense<0.000000e+00> : vector<2x256xf32>
    %159 = tpu.matmul %142, %18, %cst_78 {dimension_numbers = #tpu.dot_dimension_numbers<[1], [0], [0], [1], [0, 0, 1, 1], [], []>} : vector<2x64xf32>, vector<64x256xf32>, vector<2x256xf32> -> vector<2x256xf32>
    %160 = arith.addf %158, %159 : vector<2x256xf32>
    %161 = vector.extract_strided_slice %160 {offsets = [0, 0], sizes = [2, 192], strides = [1, 1]} : vector<2x256xf32> to vector<2x192xf32>
    %162 = arith.negf %161 : vector<2x192xf32>
    %163 = math.exp %162 : vector<2x192xf32>
    %cst_79 = arith.constant 1.000000e+00 : f32
    %164 = vector.broadcast %cst_79 : f32 to vector<2x192xf32>
    %165 = arith.addf %164, %163 : vector<2x192xf32>
    %166 = arith.divf %164, %165 : vector<2x192xf32>
    %167 = vector.extract_strided_slice %160 {offsets = [0, 192], sizes = [2, 64], strides = [1, 1]} : vector<2x256xf32> to vector<2x64xf32>
    %168 = math.tanh %167 : vector<2x64xf32>
    %169 = vector.extract_strided_slice %166 {offsets = [0, 0], sizes = [2, 64], strides = [1, 1]} : vector<2x192xf32> to vector<2x64xf32>
    %170 = vector.extract_strided_slice %166 {offsets = [0, 64], sizes = [2, 64], strides = [1, 1]} : vector<2x192xf32> to vector<2x64xf32>
    %171 = vector.extract_strided_slice %166 {offsets = [0, 128], sizes = [2, 64], strides = [1, 1]} : vector<2x192xf32> to vector<2x64xf32>
    %172 = arith.mulf %170, %140 : vector<2x64xf32>
    %173 = arith.mulf %169, %168 : vector<2x64xf32>
    %174 = arith.addf %172, %173 : vector<2x64xf32>
    %175 = math.tanh %174 : vector<2x64xf32>
    %176 = arith.mulf %171, %175 : vector<2x64xf32>
    %177 = vector.extract_strided_slice %176 {offsets = [0, 0], sizes = [2, 32], strides = [1, 1]} : vector<2x64xf32> to vector<2x32xf32>
    %178 = vector.extract_strided_slice %176 {offsets = [0, 32], sizes = [2, 32], strides = [1, 1]} : vector<2x64xf32> to vector<2x32xf32>
    %c0_80 = arith.constant 0 : index
    %c4_81 = arith.constant 4 : index
    %c0_82 = arith.constant 0 : index
    %179 = vector.load %arg19[%c0_80, %c4_81, %c0_82] : memref<2x8x128xf32, #tpu.memory_space<vmem>>, vector<2x1x32xf32>
    %180 = vector.shape_cast %179 : vector<2x1x32xf32> to vector<2x32xf32>
    %181 = vector.shape_cast %177 : vector<2x32xf32> to vector<2x1x32xf32>
    tpu.vector_store %arg19[%c0_80, %c4_81, %c0_82], %181 {strides = array<i32>} : memref<2x8x128xf32, #tpu.memory_space<vmem>>, vector<2x1x32xf32>,
    %c0_83 = arith.constant 0 : index
    %c3_84 = arith.constant 3 : index
    %c32_85 = arith.constant 32 : index
    %182 = vector.load %arg19[%c0_83, %c3_84, %c32_85] : memref<2x8x128xf32, #tpu.memory_space<vmem>>, vector<2x1x32xf32>
    %183 = vector.shape_cast %182 : vector<2x1x32xf32> to vector<2x32xf32>
    %184 = vector.shape_cast %178 : vector<2x32xf32> to vector<2x1x32xf32>
    tpu.vector_store %arg19[%c0_83, %c3_84, %c32_85], %184 {strides = array<i32>} : memref<2x8x128xf32, #tpu.memory_space<vmem>>, vector<2x1x32xf32>,
    %c0_86 = arith.constant 0 : index
    %c3_87 = arith.constant 3 : index
    %c64_88 = arith.constant 64 : index
    %185 = vector.load %arg19[%c0_86, %c3_87, %c64_88] : memref<2x8x128xf32, #tpu.memory_space<vmem>>, vector<2x1x32xf32>
    %186 = vector.shape_cast %185 : vector<2x1x32xf32> to vector<2x32xf32>
    %187 = vector.shape_cast %177 : vector<2x32xf32> to vector<2x1x32xf32>
    tpu.vector_store %arg19[%c0_86, %c3_87, %c64_88], %187 {strides = array<i32>} : memref<2x8x128xf32, #tpu.memory_space<vmem>>, vector<2x1x32xf32>,
    %c0_89 = arith.constant 0 : index
    %c4_90 = arith.constant 4 : index
    %c96_91 = arith.constant 96 : index
    %188 = vector.load %arg19[%c0_89, %c4_90, %c96_91] : memref<2x8x128xf32, #tpu.memory_space<vmem>>, vector<2x1x32xf32>
    %189 = vector.shape_cast %188 : vector<2x1x32xf32> to vector<2x32xf32>
    %190 = vector.shape_cast %178 : vector<2x32xf32> to vector<2x1x32xf32>
    tpu.vector_store %arg19[%c0_89, %c4_90, %c96_91], %190 {strides = array<i32>} : memref<2x8x128xf32, #tpu.memory_space<vmem>>, vector<2x1x32xf32>,
    %c0_92 = arith.constant 0 : index
    %c5_93 = arith.constant 5 : index
    %c0_94 = arith.constant 0 : index
    %191 = vector.load %arg21[%c0_92, %c5_93, %c0_94] : memref<2x8x256xf32, #tpu.memory_space<vmem>>, vector<2x1x256xf32>
    %192 = vector.shape_cast %191 : vector<2x1x256xf32> to vector<2x256xf32>
    %cst_95 = arith.constant dense<0.000000e+00> : vector<2x256xf32>
    %193 = tpu.matmul %176, %18, %cst_95 {dimension_numbers = #tpu.dot_dimension_numbers<[1], [0], [0], [1], [0, 0, 1, 1], [], []>} : vector<2x64xf32>, vector<64x256xf32>, vector<2x256xf32> -> vector<2x256xf32>
    %194 = arith.addf %192, %193 : vector<2x256xf32>
    %195 = vector.extract_strided_slice %194 {offsets = [0, 0], sizes = [2, 192], strides = [1, 1]} : vector<2x256xf32> to vector<2x192xf32>
    %196 = arith.negf %195 : vector<2x192xf32>
    %197 = math.exp %196 : vector<2x192xf32>
    %cst_96 = arith.constant 1.000000e+00 : f32
    %198 = vector.broadcast %cst_96 : f32 to vector<2x192xf32>
    %199 = arith.addf %198, %197 : vector<2x192xf32>
    %200 = arith.divf %198, %199 : vector<2x192xf32>
    %201 = vector.extract_strided_slice %194 {offsets = [0, 192], sizes = [2, 64], strides = [1, 1]} : vector<2x256xf32> to vector<2x64xf32>
    %202 = math.tanh %201 : vector<2x64xf32>
    %203 = vector.extract_strided_slice %200 {offsets = [0, 0], sizes = [2, 64], strides = [1, 1]} : vector<2x192xf32> to vector<2x64xf32>
    %204 = vector.extract_strided_slice %200 {offsets = [0, 64], sizes = [2, 64], strides = [1, 1]} : vector<2x192xf32> to vector<2x64xf32>
    %205 = vector.extract_strided_slice %200 {offsets = [0, 128], sizes = [2, 64], strides = [1, 1]} : vector<2x192xf32> to vector<2x64xf32>
    %206 = arith.mulf %204, %174 : vector<2x64xf32>
    %207 = arith.mulf %203, %202 : vector<2x64xf32>
    %208 = arith.addf %206, %207 : vector<2x64xf32>
    %209 = math.tanh %208 : vector<2x64xf32>
    %210 = arith.mulf %205, %209 : vector<2x64xf32>
    %211 = vector.extract_strided_slice %210 {offsets = [0, 0], sizes = [2, 32], strides = [1, 1]} : vector<2x64xf32> to vector<2x32xf32>
    %212 = vector.extract_strided_slice %210 {offsets = [0, 32], sizes = [2, 32], strides = [1, 1]} : vector<2x64xf32> to vector<2x32xf32>
    %c0_97 = arith.constant 0 : index
    %c5_98 = arith.constant 5 : index
    %c0_99 = arith.constant 0 : index
    %213 = vector.load %arg19[%c0_97, %c5_98, %c0_99] : memref<2x8x128xf32, #tpu.memory_space<vmem>>, vector<2x1x32xf32>
    %214 = vector.shape_cast %213 : vector<2x1x32xf32> to vector<2x32xf32>
    %215 = vector.shape_cast %211 : vector<2x32xf32> to vector<2x1x32xf32>
    tpu.vector_store %arg19[%c0_97, %c5_98, %c0_99], %215 {strides = array<i32>} : memref<2x8x128xf32, #tpu.memory_space<vmem>>, vector<2x1x32xf32>,
    %c0_100 = arith.constant 0 : index
    %c2_101 = arith.constant 2 : index
    %c32_102 = arith.constant 32 : index
    %216 = vector.load %arg19[%c0_100, %c2_101, %c32_102] : memref<2x8x128xf32, #tpu.memory_space<vmem>>, vector<2x1x32xf32>
    %217 = vector.shape_cast %216 : vector<2x1x32xf32> to vector<2x32xf32>
    %218 = vector.shape_cast %212 : vector<2x32xf32> to vector<2x1x32xf32>
    tpu.vector_store %arg19[%c0_100, %c2_101, %c32_102], %218 {strides = array<i32>} : memref<2x8x128xf32, #tpu.memory_space<vmem>>, vector<2x1x32xf32>,
    %c0_103 = arith.constant 0 : index
    %c2_104 = arith.constant 2 : index
    %c64_105 = arith.constant 64 : index
    %219 = vector.load %arg19[%c0_103, %c2_104, %c64_105] : memref<2x8x128xf32, #tpu.memory_space<vmem>>, vector<2x1x32xf32>
    %220 = vector.shape_cast %219 : vector<2x1x32xf32> to vector<2x32xf32>
    %221 = vector.shape_cast %211 : vector<2x32xf32> to vector<2x1x32xf32>
    tpu.vector_store %arg19[%c0_103, %c2_104, %c64_105], %221 {strides = array<i32>} : memref<2x8x128xf32, #tpu.memory_space<vmem>>, vector<2x1x32xf32>,
    %c0_106 = arith.constant 0 : index
    %c5_107 = arith.constant 5 : index
    %c96_108 = arith.constant 96 : index
    %222 = vector.load %arg19[%c0_106, %c5_107, %c96_108] : memref<2x8x128xf32, #tpu.memory_space<vmem>>, vector<2x1x32xf32>
    %223 = vector.shape_cast %222 : vector<2x1x32xf32> to vector<2x32xf32>
    %224 = vector.shape_cast %212 : vector<2x32xf32> to vector<2x1x32xf32>
    tpu.vector_store %arg19[%c0_106, %c5_107, %c96_108], %224 {strides = array<i32>} : memref<2x8x128xf32, #tpu.memory_space<vmem>>, vector<2x1x32xf32>,
    %c0_109 = arith.constant 0 : index
    %c6_110 = arith.constant 6 : index
    %c0_111 = arith.constant 0 : index
    %225 = vector.load %arg21[%c0_109, %c6_110, %c0_111] : memref<2x8x256xf32, #tpu.memory_space<vmem>>, vector<2x1x256xf32>
    %226 = vector.shape_cast %225 : vector<2x1x256xf32> to vector<2x256xf32>
    %cst_112 = arith.constant dense<0.000000e+00> : vector<2x256xf32>
    %227 = tpu.matmul %210, %18, %cst_112 {dimension_numbers = #tpu.dot_dimension_numbers<[1], [0], [0], [1], [0, 0, 1, 1], [], []>} : vector<2x64xf32>, vector<64x256xf32>, vector<2x256xf32> -> vector<2x256xf32>
    %228 = arith.addf %226, %227 : vector<2x256xf32>
    %229 = vector.extract_strided_slice %228 {offsets = [0, 0], sizes = [2, 192], strides = [1, 1]} : vector<2x256xf32> to vector<2x192xf32>
    %230 = arith.negf %229 : vector<2x192xf32>
    %231 = math.exp %230 : vector<2x192xf32>
    %cst_113 = arith.constant 1.000000e+00 : f32
    %232 = vector.broadcast %cst_113 : f32 to vector<2x192xf32>
    %233 = arith.addf %232, %231 : vector<2x192xf32>
    %234 = arith.divf %232, %233 : vector<2x192xf32>
    %235 = vector.extract_strided_slice %228 {offsets = [0, 192], sizes = [2, 64], strides = [1, 1]} : vector<2x256xf32> to vector<2x64xf32>
    %236 = math.tanh %235 : vector<2x64xf32>
    %237 = vector.extract_strided_slice %234 {offsets = [0, 0], sizes = [2, 64], strides = [1, 1]} : vector<2x192xf32> to vector<2x64xf32>
    %238 = vector.extract_strided_slice %234 {offsets = [0, 64], sizes = [2, 64], strides = [1, 1]} : vector<2x192xf32> to vector<2x64xf32>
    %239 = vector.extract_strided_slice %234 {offsets = [0, 128], sizes = [2, 64], strides = [1, 1]} : vector<2x192xf32> to vector<2x64xf32>
    %240 = arith.mulf %238, %208 : vector<2x64xf32>
    %241 = arith.mulf %237, %236 : vector<2x64xf32>
    %242 = arith.addf %240, %241 : vector<2x64xf32>
    %243 = math.tanh %242 : vector<2x64xf32>
    %244 = arith.mulf %239, %243 : vector<2x64xf32>
    %245 = vector.extract_strided_slice %244 {offsets = [0, 0], sizes = [2, 32], strides = [1, 1]} : vector<2x64xf32> to vector<2x32xf32>
    %246 = vector.extract_strided_slice %244 {offsets = [0, 32], sizes = [2, 32], strides = [1, 1]} : vector<2x64xf32> to vector<2x32xf32>
    %c0_114 = arith.constant 0 : index
    %c6_115 = arith.constant 6 : index
    %c0_116 = arith.constant 0 : index
    %247 = vector.load %arg19[%c0_114, %c6_115, %c0_116] : memref<2x8x128xf32, #tpu.memory_space<vmem>>, vector<2x1x32xf32>
    %248 = vector.shape_cast %247 : vector<2x1x32xf32> to vector<2x32xf32>
    %249 = vector.shape_cast %245 : vector<2x32xf32> to vector<2x1x32xf32>
    tpu.vector_store %arg19[%c0_114, %c6_115, %c0_116], %249 {strides = array<i32>} : memref<2x8x128xf32, #tpu.memory_space<vmem>>, vector<2x1x32xf32>,
    %c0_117 = arith.constant 0 : index
    %c1_118 = arith.constant 1 : index
    %c32_119 = arith.constant 32 : index
    %250 = vector.load %arg19[%c0_117, %c1_118, %c32_119] : memref<2x8x128xf32, #tpu.memory_space<vmem>>, vector<2x1x32xf32>
    %251 = vector.shape_cast %250 : vector<2x1x32xf32> to vector<2x32xf32>
    %252 = vector.shape_cast %246 : vector<2x32xf32> to vector<2x1x32xf32>
    tpu.vector_store %arg19[%c0_117, %c1_118, %c32_119], %252 {strides = array<i32>} : memref<2x8x128xf32, #tpu.memory_space<vmem>>, vector<2x1x32xf32>,
    %c0_120 = arith.constant 0 : index
    %c1_121 = arith.constant 1 : index
    %c64_122 = arith.constant 64 : index
    %253 = vector.load %arg19[%c0_120, %c1_121, %c64_122] : memref<2x8x128xf32, #tpu.memory_space<vmem>>, vector<2x1x32xf32>
    %254 = vector.shape_cast %253 : vector<2x1x32xf32> to vector<2x32xf32>
    %255 = vector.shape_cast %245 : vector<2x32xf32> to vector<2x1x32xf32>
    tpu.vector_store %arg19[%c0_120, %c1_121, %c64_122], %255 {strides = array<i32>} : memref<2x8x128xf32, #tpu.memory_space<vmem>>, vector<2x1x32xf32>,
    %c0_123 = arith.constant 0 : index
    %c6_124 = arith.constant 6 : index
    %c96_125 = arith.constant 96 : index
    %256 = vector.load %arg19[%c0_123, %c6_124, %c96_125] : memref<2x8x128xf32, #tpu.memory_space<vmem>>, vector<2x1x32xf32>
    %257 = vector.shape_cast %256 : vector<2x1x32xf32> to vector<2x32xf32>
    %258 = vector.shape_cast %246 : vector<2x32xf32> to vector<2x1x32xf32>
    tpu.vector_store %arg19[%c0_123, %c6_124, %c96_125], %258 {strides = array<i32>} : memref<2x8x128xf32, #tpu.memory_space<vmem>>, vector<2x1x32xf32>,
    %c0_126 = arith.constant 0 : index
    %c7_127 = arith.constant 7 : index
    %c0_128 = arith.constant 0 : index
    %259 = vector.load %arg21[%c0_126, %c7_127, %c0_128] : memref<2x8x256xf32, #tpu.memory_space<vmem>>, vector<2x1x256xf32>
    %260 = vector.shape_cast %259 : vector<2x1x256xf32> to vector<2x256xf32>
    %cst_129 = arith.constant dense<0.000000e+00> : vector<2x256xf32>
    %261 = tpu.matmul %244, %18, %cst_129 {dimension_numbers = #tpu.dot_dimension_numbers<[1], [0], [0], [1], [0, 0, 1, 1], [], []>} : vector<2x64xf32>, vector<64x256xf32>, vector<2x256xf32> -> vector<2x256xf32>
    %262 = arith.addf %260, %261 : vector<2x256xf32>
    %263 = vector.extract_strided_slice %262 {offsets = [0, 0], sizes = [2, 192], strides = [1, 1]} : vector<2x256xf32> to vector<2x192xf32>
    %264 = arith.negf %263 : vector<2x192xf32>
    %265 = math.exp %264 : vector<2x192xf32>
    %cst_130 = arith.constant 1.000000e+00 : f32
    %266 = vector.broadcast %cst_130 : f32 to vector<2x192xf32>
    %267 = arith.addf %266, %265 : vector<2x192xf32>
    %268 = arith.divf %266, %267 : vector<2x192xf32>
    %269 = vector.extract_strided_slice %262 {offsets = [0, 192], sizes = [2, 64], strides = [1, 1]} : vector<2x256xf32> to vector<2x64xf32>
    %270 = math.tanh %269 : vector<2x64xf32>
    %271 = vector.extract_strided_slice %268 {offsets = [0, 0], sizes = [2, 64], strides = [1, 1]} : vector<2x192xf32> to vector<2x64xf32>
    %272 = vector.extract_strided_slice %268 {offsets = [0, 64], sizes = [2, 64], strides = [1, 1]} : vector<2x192xf32> to vector<2x64xf32>
    %273 = vector.extract_strided_slice %268 {offsets = [0, 128], sizes = [2, 64], strides = [1, 1]} : vector<2x192xf32> to vector<2x64xf32>
    %274 = arith.mulf %272, %242 : vector<2x64xf32>
    %275 = arith.mulf %271, %270 : vector<2x64xf32>
    %276 = arith.addf %274, %275 : vector<2x64xf32>
    %277 = math.tanh %276 : vector<2x64xf32>
    %278 = arith.mulf %273, %277 : vector<2x64xf32>
    %279 = vector.extract_strided_slice %278 {offsets = [0, 0], sizes = [2, 32], strides = [1, 1]} : vector<2x64xf32> to vector<2x32xf32>
    %280 = vector.extract_strided_slice %278 {offsets = [0, 32], sizes = [2, 32], strides = [1, 1]} : vector<2x64xf32> to vector<2x32xf32>
    %c0_131 = arith.constant 0 : index
    %c7_132 = arith.constant 7 : index
    %c0_133 = arith.constant 0 : index
    %281 = vector.load %arg19[%c0_131, %c7_132, %c0_133] : memref<2x8x128xf32, #tpu.memory_space<vmem>>, vector<2x1x32xf32>
    %282 = vector.shape_cast %281 : vector<2x1x32xf32> to vector<2x32xf32>
    %283 = vector.shape_cast %279 : vector<2x32xf32> to vector<2x1x32xf32>
    tpu.vector_store %arg19[%c0_131, %c7_132, %c0_133], %283 {strides = array<i32>} : memref<2x8x128xf32, #tpu.memory_space<vmem>>, vector<2x1x32xf32>,
    %c0_134 = arith.constant 0 : index
    %c0_135 = arith.constant 0 : index
    %c32_136 = arith.constant 32 : index
    %284 = vector.load %arg19[%c0_134, %c0_135, %c32_136] : memref<2x8x128xf32, #tpu.memory_space<vmem>>, vector<2x1x32xf32>
    %285 = vector.shape_cast %284 : vector<2x1x32xf32> to vector<2x32xf32>
    %286 = vector.shape_cast %280 : vector<2x32xf32> to vector<2x1x32xf32>
    tpu.vector_store %arg19[%c0_134, %c0_135, %c32_136], %286 {strides = array<i32>} : memref<2x8x128xf32, #tpu.memory_space<vmem>>, vector<2x1x32xf32>,
    %c0_137 = arith.constant 0 : index
    %c0_138 = arith.constant 0 : index
    %c64_139 = arith.constant 64 : index
    %287 = vector.load %arg19[%c0_137, %c0_138, %c64_139] : memref<2x8x128xf32, #tpu.memory_space<vmem>>, vector<2x1x32xf32>
    %288 = vector.shape_cast %287 : vector<2x1x32xf32> to vector<2x32xf32>
    %289 = vector.shape_cast %279 : vector<2x32xf32> to vector<2x1x32xf32>
    tpu.vector_store %arg19[%c0_137, %c0_138, %c64_139], %289 {strides = array<i32>} : memref<2x8x128xf32, #tpu.memory_space<vmem>>, vector<2x1x32xf32>,
    %c0_140 = arith.constant 0 : index
    %c7_141 = arith.constant 7 : index
    %c96_142 = arith.constant 96 : index
    %290 = vector.load %arg19[%c0_140, %c7_141, %c96_142] : memref<2x8x128xf32, #tpu.memory_space<vmem>>, vector<2x1x32xf32>
    %291 = vector.shape_cast %290 : vector<2x1x32xf32> to vector<2x32xf32>
    %292 = vector.shape_cast %280 : vector<2x32xf32> to vector<2x1x32xf32>
    tpu.vector_store %arg19[%c0_140, %c7_141, %c96_142], %292 {strides = array<i32>} : memref<2x8x128xf32, #tpu.memory_space<vmem>>, vector<2x1x32xf32>,
    %c0_143 = arith.constant 0 : index
    %c0_144 = arith.constant 0 : index
    %c0_145 = arith.constant 0 : index
    %293 = vector.load %arg19[%c0_143, %c0_144, %c0_145] : memref<2x8x128xf32, #tpu.memory_space<vmem>>, vector<2x8x128xf32>
    %294 = vector.shape_cast %293 : vector<2x8x128xf32> to vector<16x128xf32>
    %c0_146 = arith.constant 0 : index
    %c0_147 = arith.constant 0 : index
    %295 = vector.load %arg7[%c0_146, %c0_147] : memref<128x256xf32, #tpu.memory_space<vmem>>, vector<128x256xf32>
    %cst_148 = arith.constant dense<0.000000e+00> : vector<16x256xf32>
    %296 = tpu.matmul %294, %295, %cst_148 {dimension_numbers = #tpu.dot_dimension_numbers<[1], [0], [0], [1], [0, 0, 1, 1], [], []>} : vector<16x128xf32>, vector<128x256xf32>, vector<16x256xf32> -> vector<16x256xf32>
    %c0_149 = arith.constant 0 : index
    %c0_150 = arith.constant 0 : index
    %297 = vector.load %arg8[%c0_149, %c0_150] : memref<1x256xf32, #tpu.memory_space<vmem>>, vector<1x256xf32>
    %298 = vector.broadcast %297 : vector<1x256xf32> to vector<16x256xf32>
    %299 = arith.addf %296, %298 : vector<16x256xf32>
    %300 = vector.shape_cast %299 : vector<16x256xf32> to vector<2x8x256xf32>
    %c0_151 = arith.constant 0 : index
    %c0_152 = arith.constant 0 : index
    %c0_153 = arith.constant 0 : index
    %301 = vector.load %arg21[%c0_151, %c0_152, %c0_153] : memref<2x8x256xf32, #tpu.memory_space<vmem>>, vector<2x8x256xf32>
    tpu.vector_store %arg21[%c0_151, %c0_152, %c0_153], %300 {strides = array<i32>} : memref<2x8x256xf32, #tpu.memory_space<vmem>>, vector<2x8x256xf32>,
    %c0_154 = arith.constant 0 : index
    %c0_155 = arith.constant 0 : index
    %302 = vector.load %arg9[%c0_154, %c0_155] : memref<64x256xf32, #tpu.memory_space<vmem>>, vector<64x256xf32>
    %cst_156 = arith.constant 0.000000e+00 : f32
    %303 = vector.broadcast %cst_156 : f32 to vector<2x64xf32>
    %cst_157 = arith.constant 0.000000e+00 : f32
    %304 = vector.broadcast %cst_157 : f32 to vector<2x64xf32>
    %c0_158 = arith.constant 0 : index
    %c0_159 = arith.constant 0 : index
    %c0_160 = arith.constant 0 : index
    %305 = vector.load %arg21[%c0_158, %c0_159, %c0_160] : memref<2x8x256xf32, #tpu.memory_space<vmem>>, vector<2x1x256xf32>
    %306 = vector.shape_cast %305 : vector<2x1x256xf32> to vector<2x256xf32>
    %cst_161 = arith.constant dense<0.000000e+00> : vector<2x256xf32>
    %307 = tpu.matmul %303, %302, %cst_161 {dimension_numbers = #tpu.dot_dimension_numbers<[1], [0], [0], [1], [0, 0, 1, 1], [], []>} : vector<2x64xf32>, vector<64x256xf32>, vector<2x256xf32> -> vector<2x256xf32>
    %308 = arith.addf %306, %307 : vector<2x256xf32>
    %309 = vector.extract_strided_slice %308 {offsets = [0, 0], sizes = [2, 192], strides = [1, 1]} : vector<2x256xf32> to vector<2x192xf32>
    %310 = arith.negf %309 : vector<2x192xf32>
    %311 = math.exp %310 : vector<2x192xf32>
    %cst_162 = arith.constant 1.000000e+00 : f32
    %312 = vector.broadcast %cst_162 : f32 to vector<2x192xf32>
    %313 = arith.addf %312, %311 : vector<2x192xf32>
    %314 = arith.divf %312, %313 : vector<2x192xf32>
    %315 = vector.extract_strided_slice %308 {offsets = [0, 192], sizes = [2, 64], strides = [1, 1]} : vector<2x256xf32> to vector<2x64xf32>
    %316 = math.tanh %315 : vector<2x64xf32>
    %317 = vector.extract_strided_slice %314 {offsets = [0, 0], sizes = [2, 64], strides = [1, 1]} : vector<2x192xf32> to vector<2x64xf32>
    %318 = vector.extract_strided_slice %314 {offsets = [0, 64], sizes = [2, 64], strides = [1, 1]} : vector<2x192xf32> to vector<2x64xf32>
    %319 = vector.extract_strided_slice %314 {offsets = [0, 128], sizes = [2, 64], strides = [1, 1]} : vector<2x192xf32> to vector<2x64xf32>
    %320 = arith.mulf %318, %304 : vector<2x64xf32>
    %321 = arith.mulf %317, %316 : vector<2x64xf32>
    %322 = arith.addf %320, %321 : vector<2x64xf32>
    %323 = math.tanh %322 : vector<2x64xf32>
    %324 = arith.mulf %319, %323 : vector<2x64xf32>
    %325 = vector.extract_strided_slice %324 {offsets = [0, 0], sizes = [2, 32], strides = [1, 1]} : vector<2x64xf32> to vector<2x32xf32>
    %c0_163 = arith.constant 0 : index
    %c0_164 = arith.constant 0 : index
    %c0_165 = arith.constant 0 : index
    %326 = vector.load %arg20[%c0_163, %c0_164, %c0_165] : memref<2x8x64xf32, #tpu.memory_space<vmem>>, vector<2x1x32xf32>
    %327 = vector.shape_cast %326 : vector<2x1x32xf32> to vector<2x32xf32>
    %328 = vector.shape_cast %325 : vector<2x32xf32> to vector<2x1x32xf32>
    tpu.vector_store %arg20[%c0_163, %c0_164, %c0_165], %328 {strides = array<i32>} : memref<2x8x64xf32, #tpu.memory_space<vmem>>, vector<2x1x32xf32>,
    %329 = vector.extract_strided_slice %324 {offsets = [0, 32], sizes = [2, 32], strides = [1, 1]} : vector<2x64xf32> to vector<2x32xf32>
    %c0_166 = arith.constant 0 : index
    %c7_167 = arith.constant 7 : index
    %c32_168 = arith.constant 32 : index
    %330 = vector.load %arg20[%c0_166, %c7_167, %c32_168] : memref<2x8x64xf32, #tpu.memory_space<vmem>>, vector<2x1x32xf32>
    %331 = vector.shape_cast %330 : vector<2x1x32xf32> to vector<2x32xf32>
    %332 = vector.shape_cast %329 : vector<2x32xf32> to vector<2x1x32xf32>
    tpu.vector_store %arg20[%c0_166, %c7_167, %c32_168], %332 {strides = array<i32>} : memref<2x8x64xf32, #tpu.memory_space<vmem>>, vector<2x1x32xf32>,
    %c0_169 = arith.constant 0 : index
    %c1_170 = arith.constant 1 : index
    %c0_171 = arith.constant 0 : index
    %333 = vector.load %arg21[%c0_169, %c1_170, %c0_171] : memref<2x8x256xf32, #tpu.memory_space<vmem>>, vector<2x1x256xf32>
    %334 = vector.shape_cast %333 : vector<2x1x256xf32> to vector<2x256xf32>
    %cst_172 = arith.constant dense<0.000000e+00> : vector<2x256xf32>
    %335 = tpu.matmul %324, %302, %cst_172 {dimension_numbers = #tpu.dot_dimension_numbers<[1], [0], [0], [1], [0, 0, 1, 1], [], []>} : vector<2x64xf32>, vector<64x256xf32>, vector<2x256xf32> -> vector<2x256xf32>
    %336 = arith.addf %334, %335 : vector<2x256xf32>
    %337 = vector.extract_strided_slice %336 {offsets = [0, 0], sizes = [2, 192], strides = [1, 1]} : vector<2x256xf32> to vector<2x192xf32>
    %338 = arith.negf %337 : vector<2x192xf32>
    %339 = math.exp %338 : vector<2x192xf32>
    %cst_173 = arith.constant 1.000000e+00 : f32
    %340 = vector.broadcast %cst_173 : f32 to vector<2x192xf32>
    %341 = arith.addf %340, %339 : vector<2x192xf32>
    %342 = arith.divf %340, %341 : vector<2x192xf32>
    %343 = vector.extract_strided_slice %336 {offsets = [0, 192], sizes = [2, 64], strides = [1, 1]} : vector<2x256xf32> to vector<2x64xf32>
    %344 = math.tanh %343 : vector<2x64xf32>
    %345 = vector.extract_strided_slice %342 {offsets = [0, 0], sizes = [2, 64], strides = [1, 1]} : vector<2x192xf32> to vector<2x64xf32>
    %346 = vector.extract_strided_slice %342 {offsets = [0, 64], sizes = [2, 64], strides = [1, 1]} : vector<2x192xf32> to vector<2x64xf32>
    %347 = vector.extract_strided_slice %342 {offsets = [0, 128], sizes = [2, 64], strides = [1, 1]} : vector<2x192xf32> to vector<2x64xf32>
    %348 = arith.mulf %346, %322 : vector<2x64xf32>
    %349 = arith.mulf %345, %344 : vector<2x64xf32>
    %350 = arith.addf %348, %349 : vector<2x64xf32>
    %351 = math.tanh %350 : vector<2x64xf32>
    %352 = arith.mulf %347, %351 : vector<2x64xf32>
    %353 = vector.extract_strided_slice %352 {offsets = [0, 0], sizes = [2, 32], strides = [1, 1]} : vector<2x64xf32> to vector<2x32xf32>
    %c0_174 = arith.constant 0 : index
    %c1_175 = arith.constant 1 : index
    %c0_176 = arith.constant 0 : index
    %354 = vector.load %arg20[%c0_174, %c1_175, %c0_176] : memref<2x8x64xf32, #tpu.memory_space<vmem>>, vector<2x1x32xf32>
    %355 = vector.shape_cast %354 : vector<2x1x32xf32> to vector<2x32xf32>
    %356 = vector.shape_cast %353 : vector<2x32xf32> to vector<2x1x32xf32>
    tpu.vector_store %arg20[%c0_174, %c1_175, %c0_176], %356 {strides = array<i32>} : memref<2x8x64xf32, #tpu.memory_space<vmem>>, vector<2x1x32xf32>,
    %357 = vector.extract_strided_slice %352 {offsets = [0, 32], sizes = [2, 32], strides = [1, 1]} : vector<2x64xf32> to vector<2x32xf32>
    %c0_177 = arith.constant 0 : index
    %c6_178 = arith.constant 6 : index
    %c32_179 = arith.constant 32 : index
    %358 = vector.load %arg20[%c0_177, %c6_178, %c32_179] : memref<2x8x64xf32, #tpu.memory_space<vmem>>, vector<2x1x32xf32>
    %359 = vector.shape_cast %358 : vector<2x1x32xf32> to vector<2x32xf32>
    %360 = vector.shape_cast %357 : vector<2x32xf32> to vector<2x1x32xf32>
    tpu.vector_store %arg20[%c0_177, %c6_178, %c32_179], %360 {strides = array<i32>} : memref<2x8x64xf32, #tpu.memory_space<vmem>>, vector<2x1x32xf32>,
    %c0_180 = arith.constant 0 : index
    %c2_181 = arith.constant 2 : index
    %c0_182 = arith.constant 0 : index
    %361 = vector.load %arg21[%c0_180, %c2_181, %c0_182] : memref<2x8x256xf32, #tpu.memory_space<vmem>>, vector<2x1x256xf32>
    %362 = vector.shape_cast %361 : vector<2x1x256xf32> to vector<2x256xf32>
    %cst_183 = arith.constant dense<0.000000e+00> : vector<2x256xf32>
    %363 = tpu.matmul %352, %302, %cst_183 {dimension_numbers = #tpu.dot_dimension_numbers<[1], [0], [0], [1], [0, 0, 1, 1], [], []>} : vector<2x64xf32>, vector<64x256xf32>, vector<2x256xf32> -> vector<2x256xf32>
    %364 = arith.addf %362, %363 : vector<2x256xf32>
    %365 = vector.extract_strided_slice %364 {offsets = [0, 0], sizes = [2, 192], strides = [1, 1]} : vector<2x256xf32> to vector<2x192xf32>
    %366 = arith.negf %365 : vector<2x192xf32>
    %367 = math.exp %366 : vector<2x192xf32>
    %cst_184 = arith.constant 1.000000e+00 : f32
    %368 = vector.broadcast %cst_184 : f32 to vector<2x192xf32>
    %369 = arith.addf %368, %367 : vector<2x192xf32>
    %370 = arith.divf %368, %369 : vector<2x192xf32>
    %371 = vector.extract_strided_slice %364 {offsets = [0, 192], sizes = [2, 64], strides = [1, 1]} : vector<2x256xf32> to vector<2x64xf32>
    %372 = math.tanh %371 : vector<2x64xf32>
    %373 = vector.extract_strided_slice %370 {offsets = [0, 0], sizes = [2, 64], strides = [1, 1]} : vector<2x192xf32> to vector<2x64xf32>
    %374 = vector.extract_strided_slice %370 {offsets = [0, 64], sizes = [2, 64], strides = [1, 1]} : vector<2x192xf32> to vector<2x64xf32>
    %375 = vector.extract_strided_slice %370 {offsets = [0, 128], sizes = [2, 64], strides = [1, 1]} : vector<2x192xf32> to vector<2x64xf32>
    %376 = arith.mulf %374, %350 : vector<2x64xf32>
    %377 = arith.mulf %373, %372 : vector<2x64xf32>
    %378 = arith.addf %376, %377 : vector<2x64xf32>
    %379 = math.tanh %378 : vector<2x64xf32>
    %380 = arith.mulf %375, %379 : vector<2x64xf32>
    %381 = vector.extract_strided_slice %380 {offsets = [0, 0], sizes = [2, 32], strides = [1, 1]} : vector<2x64xf32> to vector<2x32xf32>
    %c0_185 = arith.constant 0 : index
    %c2_186 = arith.constant 2 : index
    %c0_187 = arith.constant 0 : index
    %382 = vector.load %arg20[%c0_185, %c2_186, %c0_187] : memref<2x8x64xf32, #tpu.memory_space<vmem>>, vector<2x1x32xf32>
    %383 = vector.shape_cast %382 : vector<2x1x32xf32> to vector<2x32xf32>
    %384 = vector.shape_cast %381 : vector<2x32xf32> to vector<2x1x32xf32>
    tpu.vector_store %arg20[%c0_185, %c2_186, %c0_187], %384 {strides = array<i32>} : memref<2x8x64xf32, #tpu.memory_space<vmem>>, vector<2x1x32xf32>,
    %385 = vector.extract_strided_slice %380 {offsets = [0, 32], sizes = [2, 32], strides = [1, 1]} : vector<2x64xf32> to vector<2x32xf32>
    %c0_188 = arith.constant 0 : index
    %c5_189 = arith.constant 5 : index
    %c32_190 = arith.constant 32 : index
    %386 = vector.load %arg20[%c0_188, %c5_189, %c32_190] : memref<2x8x64xf32, #tpu.memory_space<vmem>>, vector<2x1x32xf32>
    %387 = vector.shape_cast %386 : vector<2x1x32xf32> to vector<2x32xf32>
    %388 = vector.shape_cast %385 : vector<2x32xf32> to vector<2x1x32xf32>
    tpu.vector_store %arg20[%c0_188, %c5_189, %c32_190], %388 {strides = array<i32>} : memref<2x8x64xf32, #tpu.memory_space<vmem>>, vector<2x1x32xf32>,
    %c0_191 = arith.constant 0 : index
    %c3_192 = arith.constant 3 : index
    %c0_193 = arith.constant 0 : index
    %389 = vector.load %arg21[%c0_191, %c3_192, %c0_193] : memref<2x8x256xf32, #tpu.memory_space<vmem>>, vector<2x1x256xf32>
    %390 = vector.shape_cast %389 : vector<2x1x256xf32> to vector<2x256xf32>
    %cst_194 = arith.constant dense<0.000000e+00> : vector<2x256xf32>
    %391 = tpu.matmul %380, %302, %cst_194 {dimension_numbers = #tpu.dot_dimension_numbers<[1], [0], [0], [1], [0, 0, 1, 1], [], []>} : vector<2x64xf32>, vector<64x256xf32>, vector<2x256xf32> -> vector<2x256xf32>
    %392 = arith.addf %390, %391 : vector<2x256xf32>
    %393 = vector.extract_strided_slice %392 {offsets = [0, 0], sizes = [2, 192], strides = [1, 1]} : vector<2x256xf32> to vector<2x192xf32>
    %394 = arith.negf %393 : vector<2x192xf32>
    %395 = math.exp %394 : vector<2x192xf32>
    %cst_195 = arith.constant 1.000000e+00 : f32
    %396 = vector.broadcast %cst_195 : f32 to vector<2x192xf32>
    %397 = arith.addf %396, %395 : vector<2x192xf32>
    %398 = arith.divf %396, %397 : vector<2x192xf32>
    %399 = vector.extract_strided_slice %392 {offsets = [0, 192], sizes = [2, 64], strides = [1, 1]} : vector<2x256xf32> to vector<2x64xf32>
    %400 = math.tanh %399 : vector<2x64xf32>
    %401 = vector.extract_strided_slice %398 {offsets = [0, 0], sizes = [2, 64], strides = [1, 1]} : vector<2x192xf32> to vector<2x64xf32>
    %402 = vector.extract_strided_slice %398 {offsets = [0, 64], sizes = [2, 64], strides = [1, 1]} : vector<2x192xf32> to vector<2x64xf32>
    %403 = vector.extract_strided_slice %398 {offsets = [0, 128], sizes = [2, 64], strides = [1, 1]} : vector<2x192xf32> to vector<2x64xf32>
    %404 = arith.mulf %402, %378 : vector<2x64xf32>
    %405 = arith.mulf %401, %400 : vector<2x64xf32>
    %406 = arith.addf %404, %405 : vector<2x64xf32>
    %407 = math.tanh %406 : vector<2x64xf32>
    %408 = arith.mulf %403, %407 : vector<2x64xf32>
    %409 = vector.extract_strided_slice %408 {offsets = [0, 0], sizes = [2, 32], strides = [1, 1]} : vector<2x64xf32> to vector<2x32xf32>
    %c0_196 = arith.constant 0 : index
    %c3_197 = arith.constant 3 : index
    %c0_198 = arith.constant 0 : index
    %410 = vector.load %arg20[%c0_196, %c3_197, %c0_198] : memref<2x8x64xf32, #tpu.memory_space<vmem>>, vector<2x1x32xf32>
    %411 = vector.shape_cast %410 : vector<2x1x32xf32> to vector<2x32xf32>
    %412 = vector.shape_cast %409 : vector<2x32xf32> to vector<2x1x32xf32>
    tpu.vector_store %arg20[%c0_196, %c3_197, %c0_198], %412 {strides = array<i32>} : memref<2x8x64xf32, #tpu.memory_space<vmem>>, vector<2x1x32xf32>,
    %413 = vector.extract_strided_slice %408 {offsets = [0, 32], sizes = [2, 32], strides = [1, 1]} : vector<2x64xf32> to vector<2x32xf32>
    %c0_199 = arith.constant 0 : index
    %c4_200 = arith.constant 4 : index
    %c32_201 = arith.constant 32 : index
    %414 = vector.load %arg20[%c0_199, %c4_200, %c32_201] : memref<2x8x64xf32, #tpu.memory_space<vmem>>, vector<2x1x32xf32>
    %415 = vector.shape_cast %414 : vector<2x1x32xf32> to vector<2x32xf32>
    %416 = vector.shape_cast %413 : vector<2x32xf32> to vector<2x1x32xf32>
    tpu.vector_store %arg20[%c0_199, %c4_200, %c32_201], %416 {strides = array<i32>} : memref<2x8x64xf32, #tpu.memory_space<vmem>>, vector<2x1x32xf32>,
    %c0_202 = arith.constant 0 : index
    %c4_203 = arith.constant 4 : index
    %c0_204 = arith.constant 0 : index
    %417 = vector.load %arg21[%c0_202, %c4_203, %c0_204] : memref<2x8x256xf32, #tpu.memory_space<vmem>>, vector<2x1x256xf32>
    %418 = vector.shape_cast %417 : vector<2x1x256xf32> to vector<2x256xf32>
    %cst_205 = arith.constant dense<0.000000e+00> : vector<2x256xf32>
    %419 = tpu.matmul %408, %302, %cst_205 {dimension_numbers = #tpu.dot_dimension_numbers<[1], [0], [0], [1], [0, 0, 1, 1], [], []>} : vector<2x64xf32>, vector<64x256xf32>, vector<2x256xf32> -> vector<2x256xf32>
    %420 = arith.addf %418, %419 : vector<2x256xf32>
    %421 = vector.extract_strided_slice %420 {offsets = [0, 0], sizes = [2, 192], strides = [1, 1]} : vector<2x256xf32> to vector<2x192xf32>
    %422 = arith.negf %421 : vector<2x192xf32>
    %423 = math.exp %422 : vector<2x192xf32>
    %cst_206 = arith.constant 1.000000e+00 : f32
    %424 = vector.broadcast %cst_206 : f32 to vector<2x192xf32>
    %425 = arith.addf %424, %423 : vector<2x192xf32>
    %426 = arith.divf %424, %425 : vector<2x192xf32>
    %427 = vector.extract_strided_slice %420 {offsets = [0, 192], sizes = [2, 64], strides = [1, 1]} : vector<2x256xf32> to vector<2x64xf32>
    %428 = math.tanh %427 : vector<2x64xf32>
    %429 = vector.extract_strided_slice %426 {offsets = [0, 0], sizes = [2, 64], strides = [1, 1]} : vector<2x192xf32> to vector<2x64xf32>
    %430 = vector.extract_strided_slice %426 {offsets = [0, 64], sizes = [2, 64], strides = [1, 1]} : vector<2x192xf32> to vector<2x64xf32>
    %431 = vector.extract_strided_slice %426 {offsets = [0, 128], sizes = [2, 64], strides = [1, 1]} : vector<2x192xf32> to vector<2x64xf32>
    %432 = arith.mulf %430, %406 : vector<2x64xf32>
    %433 = arith.mulf %429, %428 : vector<2x64xf32>
    %434 = arith.addf %432, %433 : vector<2x64xf32>
    %435 = math.tanh %434 : vector<2x64xf32>
    %436 = arith.mulf %431, %435 : vector<2x64xf32>
    %437 = vector.extract_strided_slice %436 {offsets = [0, 0], sizes = [2, 32], strides = [1, 1]} : vector<2x64xf32> to vector<2x32xf32>
    %c0_207 = arith.constant 0 : index
    %c4_208 = arith.constant 4 : index
    %c0_209 = arith.constant 0 : index
    %438 = vector.load %arg20[%c0_207, %c4_208, %c0_209] : memref<2x8x64xf32, #tpu.memory_space<vmem>>, vector<2x1x32xf32>
    %439 = vector.shape_cast %438 : vector<2x1x32xf32> to vector<2x32xf32>
    %440 = vector.shape_cast %437 : vector<2x32xf32> to vector<2x1x32xf32>
    tpu.vector_store %arg20[%c0_207, %c4_208, %c0_209], %440 {strides = array<i32>} : memref<2x8x64xf32, #tpu.memory_space<vmem>>, vector<2x1x32xf32>,
    %441 = vector.extract_strided_slice %436 {offsets = [0, 32], sizes = [2, 32], strides = [1, 1]} : vector<2x64xf32> to vector<2x32xf32>
    %c0_210 = arith.constant 0 : index
    %c3_211 = arith.constant 3 : index
    %c32_212 = arith.constant 32 : index
    %442 = vector.load %arg20[%c0_210, %c3_211, %c32_212] : memref<2x8x64xf32, #tpu.memory_space<vmem>>, vector<2x1x32xf32>
    %443 = vector.shape_cast %442 : vector<2x1x32xf32> to vector<2x32xf32>
    %444 = vector.shape_cast %441 : vector<2x32xf32> to vector<2x1x32xf32>
    tpu.vector_store %arg20[%c0_210, %c3_211, %c32_212], %444 {strides = array<i32>} : memref<2x8x64xf32, #tpu.memory_space<vmem>>, vector<2x1x32xf32>,
    %c0_213 = arith.constant 0 : index
    %c5_214 = arith.constant 5 : index
    %c0_215 = arith.constant 0 : index
    %445 = vector.load %arg21[%c0_213, %c5_214, %c0_215] : memref<2x8x256xf32, #tpu.memory_space<vmem>>, vector<2x1x256xf32>
    %446 = vector.shape_cast %445 : vector<2x1x256xf32> to vector<2x256xf32>
    %cst_216 = arith.constant dense<0.000000e+00> : vector<2x256xf32>
    %447 = tpu.matmul %436, %302, %cst_216 {dimension_numbers = #tpu.dot_dimension_numbers<[1], [0], [0], [1], [0, 0, 1, 1], [], []>} : vector<2x64xf32>, vector<64x256xf32>, vector<2x256xf32> -> vector<2x256xf32>
    %448 = arith.addf %446, %447 : vector<2x256xf32>
    %449 = vector.extract_strided_slice %448 {offsets = [0, 0], sizes = [2, 192], strides = [1, 1]} : vector<2x256xf32> to vector<2x192xf32>
    %450 = arith.negf %449 : vector<2x192xf32>
    %451 = math.exp %450 : vector<2x192xf32>
    %cst_217 = arith.constant 1.000000e+00 : f32
    %452 = vector.broadcast %cst_217 : f32 to vector<2x192xf32>
    %453 = arith.addf %452, %451 : vector<2x192xf32>
    %454 = arith.divf %452, %453 : vector<2x192xf32>
    %455 = vector.extract_strided_slice %448 {offsets = [0, 192], sizes = [2, 64], strides = [1, 1]} : vector<2x256xf32> to vector<2x64xf32>
    %456 = math.tanh %455 : vector<2x64xf32>
    %457 = vector.extract_strided_slice %454 {offsets = [0, 0], sizes = [2, 64], strides = [1, 1]} : vector<2x192xf32> to vector<2x64xf32>
    %458 = vector.extract_strided_slice %454 {offsets = [0, 64], sizes = [2, 64], strides = [1, 1]} : vector<2x192xf32> to vector<2x64xf32>
    %459 = vector.extract_strided_slice %454 {offsets = [0, 128], sizes = [2, 64], strides = [1, 1]} : vector<2x192xf32> to vector<2x64xf32>
    %460 = arith.mulf %458, %434 : vector<2x64xf32>
    %461 = arith.mulf %457, %456 : vector<2x64xf32>
    %462 = arith.addf %460, %461 : vector<2x64xf32>
    %463 = math.tanh %462 : vector<2x64xf32>
    %464 = arith.mulf %459, %463 : vector<2x64xf32>
    %465 = vector.extract_strided_slice %464 {offsets = [0, 0], sizes = [2, 32], strides = [1, 1]} : vector<2x64xf32> to vector<2x32xf32>
    %c0_218 = arith.constant 0 : index
    %c5_219 = arith.constant 5 : index
    %c0_220 = arith.constant 0 : index
    %466 = vector.load %arg20[%c0_218, %c5_219, %c0_220] : memref<2x8x64xf32, #tpu.memory_space<vmem>>, vector<2x1x32xf32>
    %467 = vector.shape_cast %466 : vector<2x1x32xf32> to vector<2x32xf32>
    %468 = vector.shape_cast %465 : vector<2x32xf32> to vector<2x1x32xf32>
    tpu.vector_store %arg20[%c0_218, %c5_219, %c0_220], %468 {strides = array<i32>} : memref<2x8x64xf32, #tpu.memory_space<vmem>>, vector<2x1x32xf32>,
    %469 = vector.extract_strided_slice %464 {offsets = [0, 32], sizes = [2, 32], strides = [1, 1]} : vector<2x64xf32> to vector<2x32xf32>
    %c0_221 = arith.constant 0 : index
    %c2_222 = arith.constant 2 : index
    %c32_223 = arith.constant 32 : index
    %470 = vector.load %arg20[%c0_221, %c2_222, %c32_223] : memref<2x8x64xf32, #tpu.memory_space<vmem>>, vector<2x1x32xf32>
    %471 = vector.shape_cast %470 : vector<2x1x32xf32> to vector<2x32xf32>
    %472 = vector.shape_cast %469 : vector<2x32xf32> to vector<2x1x32xf32>
    tpu.vector_store %arg20[%c0_221, %c2_222, %c32_223], %472 {strides = array<i32>} : memref<2x8x64xf32, #tpu.memory_space<vmem>>, vector<2x1x32xf32>,
    %c0_224 = arith.constant 0 : index
    %c6_225 = arith.constant 6 : index
    %c0_226 = arith.constant 0 : index
    %473 = vector.load %arg21[%c0_224, %c6_225, %c0_226] : memref<2x8x256xf32, #tpu.memory_space<vmem>>, vector<2x1x256xf32>
    %474 = vector.shape_cast %473 : vector<2x1x256xf32> to vector<2x256xf32>
    %cst_227 = arith.constant dense<0.000000e+00> : vector<2x256xf32>
    %475 = tpu.matmul %464, %302, %cst_227 {dimension_numbers = #tpu.dot_dimension_numbers<[1], [0], [0], [1], [0, 0, 1, 1], [], []>} : vector<2x64xf32>, vector<64x256xf32>, vector<2x256xf32> -> vector<2x256xf32>
    %476 = arith.addf %474, %475 : vector<2x256xf32>
    %477 = vector.extract_strided_slice %476 {offsets = [0, 0], sizes = [2, 192], strides = [1, 1]} : vector<2x256xf32> to vector<2x192xf32>
    %478 = arith.negf %477 : vector<2x192xf32>
    %479 = math.exp %478 : vector<2x192xf32>
    %cst_228 = arith.constant 1.000000e+00 : f32
    %480 = vector.broadcast %cst_228 : f32 to vector<2x192xf32>
    %481 = arith.addf %480, %479 : vector<2x192xf32>
    %482 = arith.divf %480, %481 : vector<2x192xf32>
    %483 = vector.extract_strided_slice %476 {offsets = [0, 192], sizes = [2, 64], strides = [1, 1]} : vector<2x256xf32> to vector<2x64xf32>
    %484 = math.tanh %483 : vector<2x64xf32>
    %485 = vector.extract_strided_slice %482 {offsets = [0, 0], sizes = [2, 64], strides = [1, 1]} : vector<2x192xf32> to vector<2x64xf32>
    %486 = vector.extract_strided_slice %482 {offsets = [0, 64], sizes = [2, 64], strides = [1, 1]} : vector<2x192xf32> to vector<2x64xf32>
    %487 = vector.extract_strided_slice %482 {offsets = [0, 128], sizes = [2, 64], strides = [1, 1]} : vector<2x192xf32> to vector<2x64xf32>
    %488 = arith.mulf %486, %462 : vector<2x64xf32>
    %489 = arith.mulf %485, %484 : vector<2x64xf32>
    %490 = arith.addf %488, %489 : vector<2x64xf32>
    %491 = math.tanh %490 : vector<2x64xf32>
    %492 = arith.mulf %487, %491 : vector<2x64xf32>
    %493 = vector.extract_strided_slice %492 {offsets = [0, 0], sizes = [2, 32], strides = [1, 1]} : vector<2x64xf32> to vector<2x32xf32>
    %c0_229 = arith.constant 0 : index
    %c6_230 = arith.constant 6 : index
    %c0_231 = arith.constant 0 : index
    %494 = vector.load %arg20[%c0_229, %c6_230, %c0_231] : memref<2x8x64xf32, #tpu.memory_space<vmem>>, vector<2x1x32xf32>
    %495 = vector.shape_cast %494 : vector<2x1x32xf32> to vector<2x32xf32>
    %496 = vector.shape_cast %493 : vector<2x32xf32> to vector<2x1x32xf32>
    tpu.vector_store %arg20[%c0_229, %c6_230, %c0_231], %496 {strides = array<i32>} : memref<2x8x64xf32, #tpu.memory_space<vmem>>, vector<2x1x32xf32>,
    %497 = vector.extract_strided_slice %492 {offsets = [0, 32], sizes = [2, 32], strides = [1, 1]} : vector<2x64xf32> to vector<2x32xf32>
    %c0_232 = arith.constant 0 : index
    %c1_233 = arith.constant 1 : index
    %c32_234 = arith.constant 32 : index
    %498 = vector.load %arg20[%c0_232, %c1_233, %c32_234] : memref<2x8x64xf32, #tpu.memory_space<vmem>>, vector<2x1x32xf32>
    %499 = vector.shape_cast %498 : vector<2x1x32xf32> to vector<2x32xf32>
    %500 = vector.shape_cast %497 : vector<2x32xf32> to vector<2x1x32xf32>
    tpu.vector_store %arg20[%c0_232, %c1_233, %c32_234], %500 {strides = array<i32>} : memref<2x8x64xf32, #tpu.memory_space<vmem>>, vector<2x1x32xf32>,
    %c0_235 = arith.constant 0 : index
    %c7_236 = arith.constant 7 : index
    %c0_237 = arith.constant 0 : index
    %501 = vector.load %arg21[%c0_235, %c7_236, %c0_237] : memref<2x8x256xf32, #tpu.memory_space<vmem>>, vector<2x1x256xf32>
    %502 = vector.shape_cast %501 : vector<2x1x256xf32> to vector<2x256xf32>
    %cst_238 = arith.constant dense<0.000000e+00> : vector<2x256xf32>
    %503 = tpu.matmul %492, %302, %cst_238 {dimension_numbers = #tpu.dot_dimension_numbers<[1], [0], [0], [1], [0, 0, 1, 1], [], []>} : vector<2x64xf32>, vector<64x256xf32>, vector<2x256xf32> -> vector<2x256xf32>
    %504 = arith.addf %502, %503 : vector<2x256xf32>
    %505 = vector.extract_strided_slice %504 {offsets = [0, 0], sizes = [2, 192], strides = [1, 1]} : vector<2x256xf32> to vector<2x192xf32>
    %506 = arith.negf %505 : vector<2x192xf32>
    %507 = math.exp %506 : vector<2x192xf32>
    %cst_239 = arith.constant 1.000000e+00 : f32
    %508 = vector.broadcast %cst_239 : f32 to vector<2x192xf32>
    %509 = arith.addf %508, %507 : vector<2x192xf32>
    %510 = arith.divf %508, %509 : vector<2x192xf32>
    %511 = vector.extract_strided_slice %504 {offsets = [0, 192], sizes = [2, 64], strides = [1, 1]} : vector<2x256xf32> to vector<2x64xf32>
    %512 = math.tanh %511 : vector<2x64xf32>
    %513 = vector.extract_strided_slice %510 {offsets = [0, 0], sizes = [2, 64], strides = [1, 1]} : vector<2x192xf32> to vector<2x64xf32>
    %514 = vector.extract_strided_slice %510 {offsets = [0, 64], sizes = [2, 64], strides = [1, 1]} : vector<2x192xf32> to vector<2x64xf32>
    %515 = vector.extract_strided_slice %510 {offsets = [0, 128], sizes = [2, 64], strides = [1, 1]} : vector<2x192xf32> to vector<2x64xf32>
    %516 = arith.mulf %514, %490 : vector<2x64xf32>
    %517 = arith.mulf %513, %512 : vector<2x64xf32>
    %518 = arith.addf %516, %517 : vector<2x64xf32>
    %519 = math.tanh %518 : vector<2x64xf32>
    %520 = arith.mulf %515, %519 : vector<2x64xf32>
    %521 = vector.extract_strided_slice %520 {offsets = [0, 0], sizes = [2, 32], strides = [1, 1]} : vector<2x64xf32> to vector<2x32xf32>
    %c0_240 = arith.constant 0 : index
    %c7_241 = arith.constant 7 : index
    %c0_242 = arith.constant 0 : index
    %522 = vector.load %arg20[%c0_240, %c7_241, %c0_242] : memref<2x8x64xf32, #tpu.memory_space<vmem>>, vector<2x1x32xf32>
    %523 = vector.shape_cast %522 : vector<2x1x32xf32> to vector<2x32xf32>
    %524 = vector.shape_cast %521 : vector<2x32xf32> to vector<2x1x32xf32>
    tpu.vector_store %arg20[%c0_240, %c7_241, %c0_242], %524 {strides = array<i32>} : memref<2x8x64xf32, #tpu.memory_space<vmem>>, vector<2x1x32xf32>,
    %525 = vector.extract_strided_slice %520 {offsets = [0, 32], sizes = [2, 32], strides = [1, 1]} : vector<2x64xf32> to vector<2x32xf32>
    %c0_243 = arith.constant 0 : index
    %c0_244 = arith.constant 0 : index
    %c32_245 = arith.constant 32 : index
    %526 = vector.load %arg20[%c0_243, %c0_244, %c32_245] : memref<2x8x64xf32, #tpu.memory_space<vmem>>, vector<2x1x32xf32>
    %527 = vector.shape_cast %526 : vector<2x1x32xf32> to vector<2x32xf32>
    %528 = vector.shape_cast %525 : vector<2x32xf32> to vector<2x1x32xf32>
    tpu.vector_store %arg20[%c0_243, %c0_244, %c32_245], %528 {strides = array<i32>} : memref<2x8x64xf32, #tpu.memory_space<vmem>>, vector<2x1x32xf32>,
    %c0_246 = arith.constant 0 : index
    %c0_247 = arith.constant 0 : index
    %c0_248 = arith.constant 0 : index
    %529 = vector.load %arg20[%c0_246, %c0_247, %c0_248] : memref<2x8x64xf32, #tpu.memory_space<vmem>>, vector<2x8x64xf32>
    %530 = vector.shape_cast %529 : vector<2x8x64xf32> to vector<16x64xf32>
    %c0_249 = arith.constant 0 : index
    %531 = memref.load %arg17[%c0_249] : memref<2xf32, #tpu.memory_space<smem>>
    %c1_250 = arith.constant 1 : index
    %532 = memref.load %arg17[%c1_250] : memref<2xf32, #tpu.memory_space<smem>>
    %c0_251 = arith.constant 0 : index
    %c0_252 = arith.constant 0 : index
    %533 = vector.load %arg0[%c0_251, %c0_252] : memref<16x1xf32, #tpu.memory_space<vmem>>, vector<16x1xf32>
    %c0_253 = arith.constant 0 : index
    %c0_254 = arith.constant 0 : index
    %534 = vector.load %arg10[%c0_253, %c0_254] : memref<1x64xf32, #tpu.memory_space<vmem>>, vector<1x64xf32>
    %535 = vector.broadcast %533 : vector<16x1xf32> to vector<16x64xf32>
    %536 = vector.broadcast %534 : vector<1x64xf32> to vector<16x64xf32>
    %537 = arith.mulf %535, %536 : vector<16x64xf32>
    %c0_255 = arith.constant 0 : index
    %c0_256 = arith.constant 0 : index
    %538 = vector.load %arg11[%c0_255, %c0_256] : memref<64x64xf32, #tpu.memory_space<vmem>>, vector<64x64xf32>
    %cst_257 = arith.constant dense<0.000000e+00> : vector<16x64xf32>
    %539 = tpu.matmul %530, %538, %cst_257 {dimension_numbers = #tpu.dot_dimension_numbers<[1], [0], [0], [1], [0, 0, 1, 1], [], []>} : vector<16x64xf32>, vector<64x64xf32>, vector<16x64xf32> -> vector<16x64xf32>
    %540 = arith.addf %537, %539 : vector<16x64xf32>
    %c0_258 = arith.constant 0 : index
    %c0_259 = arith.constant 0 : index
    %541 = vector.load %arg12[%c0_258, %c0_259] : memref<1x64xf32, #tpu.memory_space<vmem>>, vector<1x64xf32>
    %542 = vector.broadcast %541 : vector<1x64xf32> to vector<16x64xf32>
    %543 = arith.addf %540, %542 : vector<16x64xf32>
    %cst_260 = arith.constant 0.000000e+00 : f32
    %544 = vector.broadcast %cst_260 : f32 to vector<16x64xf32>
    %545 = arith.cmpf oge, %543, %544 : vector<16x64xf32>
    %546 = vector.broadcast %531 : f32 to vector<16x64xf32>
    %547 = arith.mulf %546, %543 : vector<16x64xf32>
    %548 = arith.select %545, %543, %547 : vector<16x64xi1>, vector<16x64xf32>
    %c0_261 = arith.constant 0 : index
    %c0_262 = arith.constant 0 : index
    %549 = vector.load %arg13[%c0_261, %c0_262] : memref<64x64xf32, #tpu.memory_space<vmem>>, vector<64x64xf32>
    %cst_263 = arith.constant dense<0.000000e+00> : vector<16x64xf32>
    %550 = tpu.matmul %548, %549, %cst_263 {dimension_numbers = #tpu.dot_dimension_numbers<[1], [0], [0], [1], [0, 0, 1, 1], [], []>} : vector<16x64xf32>, vector<64x64xf32>, vector<16x64xf32> -> vector<16x64xf32>
    %c0_264 = arith.constant 0 : index
    %c0_265 = arith.constant 0 : index
    %551 = vector.load %arg14[%c0_264, %c0_265] : memref<1x64xf32, #tpu.memory_space<vmem>>, vector<1x64xf32>
    %552 = vector.broadcast %551 : vector<1x64xf32> to vector<16x64xf32>
    %553 = arith.addf %550, %552 : vector<16x64xf32>
    %cst_266 = arith.constant 0.000000e+00 : f32
    %554 = vector.broadcast %cst_266 : f32 to vector<16x64xf32>
    %555 = arith.cmpf oge, %553, %554 : vector<16x64xf32>
    %556 = vector.broadcast %532 : f32 to vector<16x64xf32>
    %557 = arith.mulf %556, %553 : vector<16x64xf32>
    %558 = arith.select %555, %553, %557 : vector<16x64xi1>, vector<16x64xf32>
    %c0_267 = arith.constant 0 : index
    %c0_268 = arith.constant 0 : index
    %559 = vector.load %arg15[%c0_267, %c0_268] : memref<64x2xf32, #tpu.memory_space<vmem>>, vector<64x2xf32>
    %cst_269 = arith.constant dense<0.000000e+00> : vector<16x2xf32>
    %560 = tpu.matmul %558, %559, %cst_269 {dimension_numbers = #tpu.dot_dimension_numbers<[1], [0], [0], [1], [0, 0, 1, 1], [], []>} : vector<16x64xf32>, vector<64x2xf32>, vector<16x2xf32> -> vector<16x2xf32>
    %c0_270 = arith.constant 0 : index
    %c0_271 = arith.constant 0 : index
    %561 = vector.load %arg16[%c0_270, %c0_271] : memref<1x2xf32, #tpu.memory_space<vmem>>, vector<1x2xf32>
    %562 = vector.broadcast %561 : vector<1x2xf32> to vector<16x2xf32>
    %563 = arith.addf %560, %562 : vector<16x2xf32>
    %564 = vector.shape_cast %563 : vector<16x2xf32> to vector<2x8x2xf32>
    %c0_272 = arith.constant 0 : index
    %c0_273 = arith.constant 0 : index
    %c0_274 = arith.constant 0 : index
    %565 = vector.load %arg18[%c0_272, %c0_273, %c0_274] : memref<2x8x2xf32, #tpu.memory_space<vmem>>, vector<2x8x2xf32>
    tpu.vector_store %arg18[%c0_272, %c0_273, %c0_274], %564 {strides = array<i32>} : memref<2x8x2xf32, #tpu.memory_space<vmem>>, vector<2x8x2xf32>,
    return
  }
}

</mosaic_0001>

<llo_original>
// kernel: squeeze.0
$region0: #{squeeze.0}
  %s0 = inlined_call_operand.vmem [shape: f32[2,8], index: 0, kind: input, shape index: {}]
  %s1 = inlined_call_operand.vmem [shape: f32[16,1], index: 1, kind: output, shape index: {}]
  $region1: #{squeeze.0} parent=0
    #allocation0 [shape = 'u8[4096]{0}', space=vmem, size = 0x1000, scoped, tag = 'scoped mem for input reshape']
    %s3 = sshll.u32 1, 2
    %s4 = ssub.s32 %s3, 1
    %v5 = vld [vmem:[%s0] sm:%s4]
    %6 = vst [vmem:[#allocation0] sm:%s4] %v5
    %v7 = vld [vmem:[#allocation0] sm:$0x3]
    %vm8 = vcmask 7168
    %9 = vst.msk [vmem:[%s1] ss:$8 sm:$0x3] %vm8, %v7
    %v10 = vld [vmem:[#allocation0] sm:$0x3]
    %11 = vrot.lane.b32.xlu0 %v10, 127
    %v12 = vpop.permute.xlu0 %11
    %vm13 = vcmask 7168
    %s14 = scalar_lea.vmem %s1, 1
    %15 = vst.msk [vmem:[%s14] ss:$8 sm:$0x3] %vm13, %v12
    %v16 = vld [vmem:[#allocation0] sm:$0x3]
    %17 = vrot.lane.b32.xlu0 %v16, 126
    %v18 = vpop.permute.xlu0 %17
    %vm19 = vcmask 7168
    %s20 = scalar_lea.vmem %s1, 2
    %21 = vst.msk [vmem:[%s20] ss:$8 sm:$0x3] %vm19, %v18
    %v22 = vld [vmem:[#allocation0] sm:$0x3]
    %23 = vrot.lane.b32.xlu0 %v22, 125
    %v24 = vpop.permute.xlu0 %23
    %vm25 = vcmask 7168
    %s26 = scalar_lea.vmem %s1, 3
    %27 = vst.msk [vmem:[%s26] ss:$8 sm:$0x3] %vm25, %v24
    %v28 = vld [vmem:[#allocation0] sm:$0x3]
    %29 = vrot.lane.b32.xlu0 %v28, 124
    %v30 = vpop.permute.xlu0 %29
    %vm31 = vcmask 7168
    %s32 = scalar_lea.vmem %s1, 4
    %33 = vst.msk [vmem:[%s32] ss:$8 sm:$0x3] %vm31, %v30
    %v34 = vld [vmem:[#allocation0] sm:$0x3]
    %35 = vrot.lane.b32.xlu0 %v34, 123
    %v36 = vpop.permute.xlu0 %35
    %vm37 = vcmask 7168
    %s38 = scalar_lea.vmem %s1, 5
    %39 = vst.msk [vmem:[%s38] ss:$8 sm:$0x3] %vm37, %v36
    %v40 = vld [vmem:[#allocation0] sm:$0x3]
    %41 = vrot.lane.b32.xlu0 %v40, 122
    %v42 = vpop.permute.xlu0 %41
    %vm43 = vcmask 7168
    %s44 = scalar_lea.vmem %s1, 6
    %45 = vst.msk [vmem:[%s44] ss:$8 sm:$0x3] %vm43, %v42
    %v46 = vld [vmem:[#allocation0] sm:$0x3]
    %47 = vrot.lane.b32.xlu0 %v46, 121
    %v48 = vpop.permute.xlu0 %47
    %vm49 = vcmask 7168
    %s50 = scalar_lea.vmem %s1, 7
    %51 = vst.msk [vmem:[%s50] ss:$8 sm:$0x3] %vm49, %v48

// kernel: peak_identifier_forward.1
$region0: #{peak_identifier_forward.1}
  #allocation0 [shape = 'u32[]', space=smem, size = 0x4, offset = 0x4, fixed_abs, tag = 'smem constant byte address 0x4 - core index']
  #allocation1 [shape = 'u32[144,128]{1,0:T(1,128)}', space=vmem, size = 0x12000, scoped, tag = 'internal scratch']
  #allocation2 [shape = 'f32[2,8,128]{2,1,0:T(8,128)}', space=vmem, size = 0x2000, scoped, tag = 'scratch operand']
  #allocation3 [shape = 'f32[2,8,64]{2,1,0:T(8,128)}', space=vmem, size = 0x2000, scoped, tag = 'scratch operand']
  #allocation4 [shape = 'f32[2,8,256]{2,1,0:T(8,128)}', space=vmem, size = 0x4000, scoped, tag = 'scratch operand']
  %s0 = inlined_call_operand.vmem [shape: f32[16,1], index: 0, kind: input, shape index: {}]
  %s1 = inlined_call_operand.vmem [shape: f32[2,8,1], index: 1, kind: input, shape index: {}]
  %s2 = inlined_call_operand.vmem [shape: f32[2,8,1], index: 2, kind: input, shape index: {}]
  %s3 = inlined_call_operand.vmem [shape: f32[1,256], index: 3, kind: input, shape index: {}]
  %s4 = inlined_call_operand.vmem [shape: f32[1,256], index: 4, kind: input, shape index: {}]
  %s5 = inlined_call_operand.vmem [shape: f32[1,256], index: 5, kind: input, shape index: {}]
  %s6 = inlined_call_operand.vmem [shape: f32[64,256], index: 6, kind: input, shape index: {}]
  %s7 = inlined_call_operand.vmem [shape: f32[128,256], index: 7, kind: input, shape index: {}]
  %s8 = inlined_call_operand.vmem [shape: f32[1,256], index: 8, kind: input, shape index: {}]
  %s9 = inlined_call_operand.vmem [shape: f32[64,256], index: 9, kind: input, shape index: {}]
  %s10 = inlined_call_operand.vmem [shape: f32[1,64], index: 10, kind: input, shape index: {}]
  %s11 = inlined_call_operand.vmem [shape: f32[64,64], index: 11, kind: input, shape index: {}]
  %s12 = inlined_call_operand.vmem [shape: f32[1,64], index: 12, kind: input, shape index: {}]
  %s13 = inlined_call_operand.vmem [shape: f32[64,64], index: 13, kind: input, shape index: {}]
  %s14 = inlined_call_operand.vmem [shape: f32[1,64], index: 14, kind: input, shape index: {}]
  %s15 = inlined_call_operand.vmem [shape: f32[64,2], index: 15, kind: input, shape index: {}]
  %s16 = inlined_call_operand.vmem [shape: f32[1,2], index: 16, kind: input, shape index: {}]
  %s17 = inlined_call_operand.vmem [shape: f32[2], index: 17, kind: input, shape index: {}]
  %s18 = inlined_call_operand.vmem [shape: f32[2,8,2], index: 18, kind: output, shape index: {}]
  %s19 = sld [smem:[#allocation0]]
  $region86: #{peak_identifier_forward.1} parent=0
    _
  %s21 = ssub.s32 1, %s19
  %s22 = scalar_select 0, %s21, %s19
  $region1: #{peak_identifier_forward.1} parent=0
    #allocation5 [shape = 'u8[512]{0}', space=smem, size = 0x200, scoped, tag = 'input window, operand 17, single buffered']
    #allocation6 [shape = 's32[1]{0}', space=sflag, size = 0x4, scoped, tag = 'scoped memory for peak_identifier_forward.1']
    %23 = vsyncpa [#allocation6], 0
    // Predicated region
    $region2: #{peak_identifier_forward.1} parent=1 // pred_check
      _
    $region3: #{peak_identifier_forward.1} parent=1 // pred_check_branch
      %25 = sbr.rel (0) target = $region5
    $region4: #{peak_identifier_forward.1} parent=1 // pred_region
      _
    $region5: #{peak_identifier_forward.1} parent=1 // pred_fallthru
      _
    // Predicated region
    $region6: #{peak_identifier_forward.1} parent=1 // pred_check
      _
    $region7: #{peak_identifier_forward.1} parent=1 // pred_check_branch
      %27 = sbr.rel (0) target = $region9
    $region8: #{peak_identifier_forward.1} parent=1 // pred_region
      _
    $region9: #{peak_identifier_forward.1} parent=1 // pred_fallthru
      _
    // Predicated region
    $region10: #{peak_identifier_forward.1} parent=1 // pred_check
      _
    $region11: #{peak_identifier_forward.1} parent=1 // pred_check_branch
      %29 = sbr.rel (0) target = $region13
    $region12: #{peak_identifier_forward.1} parent=1 // pred_region
      _
    $region13: #{peak_identifier_forward.1} parent=1 // pred_fallthru
      _
    // Predicated region
    $region14: #{peak_identifier_forward.1} parent=1 // pred_check
      _
    $region15: #{peak_identifier_forward.1} parent=1 // pred_check_branch
      %31 = sbr.rel (0) target = $region17
    $region16: #{peak_identifier_forward.1} parent=1 // pred_region
      _
    $region17: #{peak_identifier_forward.1} parent=1 // pred_fallthru
      _
    // Predicated region
    $region18: #{peak_identifier_forward.1} parent=1 // pred_check
      _
    $region19: #{peak_identifier_forward.1} parent=1 // pred_check_branch
      %33 = sbr.rel (0) target = $region21
    $region20: #{peak_identifier_forward.1} parent=1 // pred_region
      _
    $region21: #{peak_identifier_forward.1} parent=1 // pred_fallthru
      _
    // Predicated region
    $region22: #{peak_identifier_forward.1} parent=1 // pred_check
      _
    $region23: #{peak_identifier_forward.1} parent=1 // pred_check_branch
      %35 = sbr.rel (0) target = $region25
    $region24: #{peak_identifier_forward.1} parent=1 // pred_region
      _
    $region25: #{peak_identifier_forward.1} parent=1 // pred_fallthru
      _
    // Predicated region
    $region26: #{peak_identifier_forward.1} parent=1 // pred_check
      _
    $region27: #{peak_identifier_forward.1} parent=1 // pred_check_branch
      %37 = sbr.rel (0) target = $region29
    $region28: #{peak_identifier_forward.1} parent=1 // pred_region
      _
    $region29: #{peak_identifier_forward.1} parent=1 // pred_fallthru
      _
    // Predicated region
    $region30: #{peak_identifier_forward.1} parent=1 // pred_check
      _
    $region31: #{peak_identifier_forward.1} parent=1 // pred_check_branch
      %39 = sbr.rel (0) target = $region33
    $region32: #{peak_identifier_forward.1} parent=1 // pred_region
      _
    $region33: #{peak_identifier_forward.1} parent=1 // pred_fallthru
      _
    // Predicated region
    $region34: #{peak_identifier_forward.1} parent=1 // pred_check
      _
    $region35: #{peak_identifier_forward.1} parent=1 // pred_check_branch
      %41 = sbr.rel (0) target = $region37
    $region36: #{peak_identifier_forward.1} parent=1 // pred_region
      _
    $region37: #{peak_identifier_forward.1} parent=1 // pred_fallthru
      _
    // Predicated region
    $region38: #{peak_identifier_forward.1} parent=1 // pred_check
      _
    $region39: #{peak_identifier_forward.1} parent=1 // pred_check_branch
      %43 = sbr.rel (0) target = $region41
    $region40: #{peak_identifier_forward.1} parent=1 // pred_region
      _
    $region41: #{peak_identifier_forward.1} parent=1 // pred_fallthru
      _
    // Predicated region
    $region42: #{peak_identifier_forward.1} parent=1 // pred_check
      _
    $region43: #{peak_identifier_forward.1} parent=1 // pred_check_branch
      %45 = sbr.rel (0) target = $region45
    $region44: #{peak_identifier_forward.1} parent=1 // pred_region
      _
    $region45: #{peak_identifier_forward.1} parent=1 // pred_fallthru
      _
    // Predicated region
    $region46: #{peak_identifier_forward.1} parent=1 // pred_check
      _
    $region47: #{peak_identifier_forward.1} parent=1 // pred_check_branch
      %47 = sbr.rel (0) target = $region49
    $region48: #{peak_identifier_forward.1} parent=1 // pred_region
      _
    $region49: #{peak_identifier_forward.1} parent=1 // pred_fallthru
      _
    // Predicated region
    $region50: #{peak_identifier_forward.1} parent=1 // pred_check
      _
    $region51: #{peak_identifier_forward.1} parent=1 // pred_check_branch
      %49 = sbr.rel (0) target = $region53
    $region52: #{peak_identifier_forward.1} parent=1 // pred_region
      _
    $region53: #{peak_identifier_forward.1} parent=1 // pred_fallthru
      _
    // Predicated region
    $region54: #{peak_identifier_forward.1} parent=1 // pred_check
      _
    $region55: #{peak_identifier_forward.1} parent=1 // pred_check_branch
      %51 = sbr.rel (0) target = $region57
    $region56: #{peak_identifier_forward.1} parent=1 // pred_region
      _
    $region57: #{peak_identifier_forward.1} parent=1 // pred_fallthru
      _
    // Predicated region
    $region58: #{peak_identifier_forward.1} parent=1 // pred_check
      _
    $region59: #{peak_identifier_forward.1} parent=1 // pred_check_branch
      %53 = sbr.rel (0) target = $region61
    $region60: #{peak_identifier_forward.1} parent=1 // pred_region
      _
    $region61: #{peak_identifier_forward.1} parent=1 // pred_fallthru
      _
    // Predicated region
    $region62: #{peak_identifier_forward.1} parent=1 // pred_check
      _
    $region63: #{peak_identifier_forward.1} parent=1 // pred_check_branch
      %55 = sbr.rel (0) target = $region65
    $region64: #{peak_identifier_forward.1} parent=1 // pred_region
      _
    $region65: #{peak_identifier_forward.1} parent=1 // pred_fallthru
      _
    // Predicated region
    $region66: #{peak_identifier_forward.1} parent=1 // pred_check
      _
    $region67: #{peak_identifier_forward.1} parent=1 // pred_check_branch
      %57 = sbr.rel (0) target = $region69
    $region68: #{peak_identifier_forward.1} parent=1 // pred_region
      _
    $region69: #{peak_identifier_forward.1} parent=1 // pred_fallthru
      _
    // Predicated region
    $region70: #{peak_identifier_forward.1} parent=1 // pred_check
      _
    $region71: #{peak_identifier_forward.1} parent=1 // pred_check_branch
      %59 = sbr.rel (0) target = $region73
    $region72: #{peak_identifier_forward.1} parent=1 // pred_region
      %s61 = ssub.s32 16, 16
      %62 = vsyncadd [#allocation6], %s61
      %s64 = sshll.u32 %s17, 4
      %s65 = int_to_ptr.vmem [resolvable:$true] %s64
      %67 = dma.vmem_to_smem %s65, 16, [#allocation5], [#allocation6]
    $region73: #{peak_identifier_forward.1} parent=1 // pred_fallthru
      _
    // Predicated region
    $region74: #{peak_identifier_forward.1} parent=1 // pred_check
      _
    $region75: #{peak_identifier_forward.1} parent=1 // pred_check_branch
      %69 = sbr.rel (0) target = $region77
    $region76: #{peak_identifier_forward.1} parent=1 // pred_region
      %70 = dma.done [#allocation6], 16
    $region77: #{peak_identifier_forward.1} parent=1 // pred_fallthru
      _
    %71 = sfence
    %v72 = vld [vmem:[%s1] sm:$0xff]
    %v73 = vld [vmem:[%s1 + $0x8] sm:$0xff]
    %v74 = vld [vmem:[%s3] sm:$0x3]
    %76 = vset.pattern.permute.xlu0 0
    %77 = vperm.xlu0 %76, %v72
    %v78 = vpop.permute.xlu0 %77
    %81 = vset.pattern.permute.xlu0 0
    %82 = vperm.xlu0 %81, %v73
    %v83 = vpop.permute.xlu0 %82
    %v86 = vlaneseq
    %v87 = vshrl.u32 %v86, 7
    %v88 = vsub.s32 0, %v87
    %v89 = vrot.slane %v74, %v88
    %v90 = vlaneseq
    %v91 = vshrl.u32 %v90, 7
    %v92 = vsub.s32 1, %v91
    %v93 = vrot.slane %v74, %v92
    %v96 = vmul.f32 %v78, %v89
    %v97 = vmul.f32 %v78, %v93
    %v98 = vmul.f32 %v83, %v89
    %v99 = vmul.f32 %v83, %v93
    %v100 = vld [vmem:[%s2] sm:$0xff]
    %v101 = vld [vmem:[%s2 + $0x8] sm:$0xff]
    %v102 = vld [vmem:[%s4] sm:$0x3]
    %104 = vset.pattern.permute.xlu0 0
    %105 = vperm.xlu0 %104, %v100
    %v106 = vpop.permute.xlu0 %105
    %109 = vset.pattern.permute.xlu0 0
    %110 = vperm.xlu0 %109, %v101
    %v111 = vpop.permute.xlu0 %110
    %v114 = vlaneseq
    %v115 = vshrl.u32 %v114, 7
    %v116 = vsub.s32 0, %v115
    %v117 = vrot.slane %v102, %v116
    %v118 = vlaneseq
    %v119 = vshrl.u32 %v118, 7
    %v120 = vsub.s32 1, %v119
    %v121 = vrot.slane %v102, %v120
    %v124 = vmul.f32 %v106, %v117
    %v125 = vmul.f32 %v106, %v121
    %v126 = vmul.f32 %v111, %v117
    %v127 = vmul.f32 %v111, %v121
    %v128 = vadd.f32 %v96, %v124
    %v129 = vadd.f32 %v97, %v125
    %v130 = vadd.f32 %v98, %v126
    %v131 = vadd.f32 %v99, %v127
    %v132 = vld [vmem:[%s5] sm:$0x3]
    %v134 = vlaneseq
    %v135 = vshrl.u32 %v134, 7
    %v136 = vsub.s32 0, %v135
    %v137 = vrot.slane %v132, %v136
    %v138 = vlaneseq
    %v139 = vshrl.u32 %v138, 7
    %v140 = vsub.s32 1, %v139
    %v141 = vrot.slane %v132, %v140
    %v144 = vadd.f32 %v128, %v137
    %v145 = vadd.f32 %v129, %v141
    %v146 = vadd.f32 %v130, %v137
    %v147 = vadd.f32 %v131, %v141
    %148 = vst [vmem:[#allocation4] sm:$0xff] %v144
    %149 = vst [vmem:[#allocation4 + $0x8] sm:$0xff] %v145
    %150 = vst [vmem:[#allocation4 + $0x10] sm:$0xff] %v146
    %151 = vst [vmem:[#allocation4 + $0x18] sm:$0xff] %v147
    %v152 = vld [vmem:[%s6] sm:$0xff]
    %v153 = vld [vmem:[%s6 + $0x8] sm:$0xff]
    %v154 = vld [vmem:[%s6 + $0x10] sm:$0xff]
    %v155 = vld [vmem:[%s6 + $0x18] sm:$0xff]
    %v156 = vld [vmem:[%s6 + $0x20] sm:$0xff]
    %v157 = vld [vmem:[%s6 + $0x28] sm:$0xff]
    %v158 = vld [vmem:[%s6 + $0x30] sm:$0xff]
    %v159 = vld [vmem:[%s6 + $0x38] sm:$0xff]
    %v160 = vld [vmem:[%s6 + $0x40] sm:$0xff]
    %v161 = vld [vmem:[%s6 + $0x48] sm:$0xff]
    %v162 = vld [vmem:[%s6 + $0x50] sm:$0xff]
    %v163 = vld [vmem:[%s6 + $0x58] sm:$0xff]
    %v164 = vld [vmem:[%s6 + $0x60] sm:$0xff]
    %v165 = vld [vmem:[%s6 + $0x68] sm:$0xff]
    %v166 = vld [vmem:[%s6 + $0x70] sm:$0xff]
    %v167 = vld [vmem:[%s6 + $0x78] sm:$0xff]
    %v168 = vld [vmem:[#allocation4] ss:$8 sm:$0x3]
    %s169 = scalar_lea.vmem [#allocation4], 16
    %v170 = vld [vmem:[%s169] ss:$8 sm:$0x3]
    %vm171 = vcmask 523264
    %v173 = vsel %vm171, 0.0, 0
    %175 = vmatprep.subr.mxu0 0.0
    %176 = vmatpush1.msra.mxu0 0.0
    %177 = vmatprep.subr.mxu0 0.0
    %178 = vmatpush1.msra.mxu0 0.0
    %179 = vmatprep.subr.mxu0 0.0
    %180 = vmatpush1.msra.mxu0 0.0
    %181 = vmatprep.subr.mxu0 0.0
    %182 = vmatpush1.msra.mxu0 0.0
    %183 = vmatprep.subr.mxu0 0.0
    %184 = vmatpush1.msra.mxu0 0.0
    %185 = vmatprep.subr.mxu0 0.0
    %186 = vmatpush1.msra.mxu0 0.0
    %187 = vmatprep.subr.mxu0 0.0
    %188 = vmatpush1.msra.mxu0 0.0
    %189 = vmatprep.subr.mxu0 0.0
    %190 = vmatpush1.msra.mxu0 0.0
    %191 = vmatprep.subr.mxu0 %v167
    %192 = vmatpush1.msra.mxu0 %v166
    %193 = vmatprep.subr.mxu0 %v165
    %194 = vmatpush1.msra.mxu0 %v164
    %195 = vmatprep.subr.mxu0 %v163
    %196 = vmatpush1.msra.mxu0 %v162
    %197 = vmatprep.subr.mxu0 %v161
    %198 = vmatpush1.msra.mxu0 %v160
    %199 = vmatprep.subr.mxu0 %v159
    %200 = vmatpush1.msra.mxu0 %v158
    %201 = vmatprep.subr.mxu0 %v157
    %202 = vmatpush1.msra.mxu0 %v156
    %203 = vmatprep.subr.mxu0 %v155
    %204 = vmatpush1.msra.mxu0 %v154
    %205 = vmatprep.subr.mxu0 %v153
    %206 = vmatpush1.msra.mxu0 %v152
    %207 = vmatprep.subr.mxu0 0.0
    %208 = vmatpush2.msra.mxu0 0.0
    %209 = vmatprep.subr.mxu0 0.0
    %210 = vmatpush2.msra.mxu0 0.0
    %211 = vmatprep.subr.mxu0 0.0
    %212 = vmatpush2.msra.mxu0 0.0
    %213 = vmatprep.subr.mxu0 0.0
    %214 = vmatpush2.msra.mxu0 0.0
    %215 = vmatprep.subr.mxu0 0.0
    %216 = vmatpush2.msra.mxu0 0.0
    %217 = vmatprep.subr.mxu0 0.0
    %218 = vmatpush2.msra.mxu0 0.0
    %219 = vmatprep.subr.mxu0 0.0
    %220 = vmatpush2.msra.mxu0 0.0
    %221 = vmatprep.subr.mxu0 0.0
    %222 = vmatpush2.msra.mxu0 0.0
    %223 = vmatprep.subr.mxu0 0.0
    %224 = vmatpush2.msra.mxu0 0.0
    %225 = vmatprep.subr.mxu0 0.0
    %226 = vmatpush2.msra.mxu0 0.0
    %227 = vmatprep.subr.mxu0 0.0
    %228 = vmatpush2.msra.mxu0 0.0
    %229 = vmatprep.subr.mxu0 0.0
    %230 = vmatpush2.msra.mxu0 0.0
    %231 = vmatprep.subr.mxu0 0.0
    %232 = vmatpush2.msra.mxu0 0.0
    %233 = vmatprep.subr.mxu0 0.0
    %234 = vmatpush2.msra.mxu0 0.0
    %235 = vmatprep.subr.mxu0 0.0
    %236 = vmatpush2.msra.mxu0 0.0
    %237 = vmatprep.subr.mxu0 0.0
    %238 = vmatpush2.msra.mxu0 0.0
    %239 = vmatprep.mubr.f32.mxu0 0.0
    %240 = vmatmul.mubr.f32.gmra.mxu0 %v173
    %v241 = vpop.f32.mrf.mxu0
    %v242 = vadd.f32 0.0, %v241
    %v243 = vpop.f32.mrf.mxu0
    %v244 = vadd.f32 0.0, %v243
    %245 = vdwg.mxu0
    %v248 = vcombine.low %v242, %v244
    %v250 = vunpack.c.l.s4 1966171168
    %v251 = vunpack.c.0.s8 %v250
    %v252 = vlaneseq
    %v253 = vshrl.u32 %v252, 7
    %v254 = vsub.s32 %v251, %v253
    %v255 = vrot.slane %v248, %v254
    %v256 = vcombine.high %v255, %v255
    %v258 = vunpack.c.l.s4 1966171168
    %v259 = vunpack.c.0.s8 %v258
    %v260 = vlaneseq
    %v261 = vshrl.u32 %v260, 7
    %v262 = vsub.s32 %v259, %v261
    %v263 = vrot.slane %v255, %v262
    %v265 = vunpack.c.l.s4 1966171168
    %v266 = vunpack.c.0.s8 %v265
    %v267 = vlaneseq
    %v268 = vshrl.u32 %v267, 7
    %v269 = vsub.s32 %v266, %v268
    %v270 = vrot.slane %v256, %v269
    %v273 = vadd.f32 %v168, %v263
    %v274 = vadd.f32 %v170, %v270
    %v275 = vxor.u32 %v273, 2147483648
    %v276 = vxor.u32 %v274, 2147483648
    %v277 = vmul.f32 %v275, 1.442695
    %v278 = vpow.pop %v277
    %v279 = vmul.f32 %v276, 1.442695
    %v280 = vpow.pop %v279
    %v281 = vadd.f32 %v278, 1.0
    %v282 = vadd.f32 %v280, 1.0
    %v283 = vrcp.pop %v281
    %v284 = vmul.f32 1.0, %v283
    %v285 = vrcp.pop %v282
    %v286 = vmul.f32 1.0, %v285
    %289 = vrot.lane.b32.xlu0 %v273, 64
    %v290 = vpop.permute.xlu0 %289
    %291 = vrot.lane.b32.xlu0 %v274, 64
    %v292 = vpop.permute.xlu0 %291
    %v293 = vrot.slane %v290, 1
    %v294 = vrot.slane %v292, 1
    %v297 = vtanh.pop %v293
    %v298 = vtanh.pop %v294
    %v299 = vmul.f32 %v284, 0.0
    %v300 = vmul.f32 %v286, 0.0
    %v301 = vmul.f32 %v284, %v297
    %v302 = vmul.f32 %v286, %v298
    %305 = vrot.lane.b32.xlu0 %v301, 64
    %v306 = vpop.permute.xlu0 %305
    %307 = vrot.lane.b32.xlu0 %v302, 64
    %v308 = vpop.permute.xlu0 %307
    %v311 = vadd.f32 %v299, %v306
    %v312 = vadd.f32 %v300, %v308
    %v313 = vtanh.pop %v311
    %v314 = vtanh.pop %v312
    %v317 = vrot.slane %v284, 1
    %v318 = vrot.slane %v286, 1
    %323 = vrot.lane.b32.xlu0 %v313, 64
    %v324 = vpop.permute.xlu0 %323
    %325 = vrot.lane.b32.xlu0 %v314, 64
    %v326 = vpop.permute.xlu0 %325
    %v329 = vmul.f32 %v317, %v324
    %v330 = vmul.f32 %v318, %v326
    %vm331 = vcmask 253952
    %332 = vst.msk [vmem:[#allocation2] sm:$0x1] %vm331, %v329
    %333 = vst.msk [vmem:[#allocation2 + $0x8] sm:$0x1] %vm331, %v330
    %vm334 = vcmask 516352
    %335 = vst.msk [vmem:[#allocation2 + $0x7] sm:$0x1] %vm334, %v329
    %336 = vst.msk [vmem:[#allocation2 + $0xf] sm:$0x1] %vm334, %v330
    %v339 = vlaneseq
    %v340 = vshrl.u32 %v339, 7
    %v341 = vsub.s32 0, %v340
    %v342 = vrot.slane %v329, %v341
    %v343 = vlaneseq
    %v344 = vshrl.u32 %v343, 7
    %v345 = vsub.s32 0, %v344
    %v346 = vrot.slane %v330, %v345
    %347 = vrot.lane.b32.xlu0 %v342, 64
    %v348 = vpop.permute.xlu0 %347
    %349 = vrot.lane.b32.xlu0 %v346, 64
    %v350 = vpop.permute.xlu0 %349
    %vm353 = vcmask 778752
    %354 = vst.msk [vmem:[#allocation2 + $0x7] sm:$0x1] %vm353, %v348
    %355 = vst.msk [vmem:[#allocation2 + $0xf] sm:$0x1] %vm353, %v350
    %vm356 = vcmask 1041152
    %357 = vst.msk [vmem:[#allocation2] sm:$0x1] %vm356, %v348
    %358 = vst.msk [vmem:[#allocation2 + $0x8] sm:$0x1] %vm356, %v350
    %s359 = scalar_lea.vmem [#allocation4], 1
    %v360 = vld [vmem:[%s359] ss:$8 sm:$0x3]
    %s361 = scalar_lea.vmem [#allocation4], 17
    %v362 = vld [vmem:[%s361] ss:$8 sm:$0x3]
    %v363 = vcombine.low %v329, %v330
    %v365 = vunpack.c.l.s4 1966171168
    %v366 = vunpack.c.0.s8 %v365
    %v367 = vlaneseq
    %v368 = vshrl.u32 %v367, 7
    %v369 = vsub.s32 %v366, %v368
    %v370 = vrot.slane %v363, %v369
    %v372 = vunpack.c.l.s4 1966171168
    %v373 = vunpack.c.0.s8 %v372
    %v374 = vlaneseq
    %v375 = vshrl.u32 %v374, 7
    %v376 = vsub.s32 %v373, %v375
    %v377 = vrot.slane %v370, %v376
    %v378 = vsel %vm171, %v377, 0
    %380 = vmatprep.subr.mxu0 0.0
    %381 = vmatpush1.msra.mxu0 0.0
    %382 = vmatprep.subr.mxu0 0.0
    %383 = vmatpush1.msra.mxu0 0.0
    %384 = vmatprep.subr.mxu0 0.0
    %385 = vmatpush1.msra.mxu0 0.0
    %386 = vmatprep.subr.mxu0 0.0
    %387 = vmatpush1.msra.mxu0 0.0
    %388 = vmatprep.subr.mxu0 0.0
    %389 = vmatpush1.msra.mxu0 0.0
    %390 = vmatprep.subr.mxu0 0.0
    %391 = vmatpush1.msra.mxu0 0.0
    %392 = vmatprep.subr.mxu0 0.0
    %393 = vmatpush1.msra.mxu0 0.0
    %394 = vmatprep.subr.mxu0 0.0
    %395 = vmatpush1.msra.mxu0 0.0
    %396 = vmatprep.subr.mxu0 %v167
    %397 = vmatpush1.msra.mxu0 %v166
    %398 = vmatprep.subr.mxu0 %v165
    %399 = vmatpush1.msra.mxu0 %v164
    %400 = vmatprep.subr.mxu0 %v163
    %401 = vmatpush1.msra.mxu0 %v162
    %402 = vmatprep.subr.mxu0 %v161
    %403 = vmatpush1.msra.mxu0 %v160
    %404 = vmatprep.subr.mxu0 %v159
    %405 = vmatpush1.msra.mxu0 %v158
    %406 = vmatprep.subr.mxu0 %v157
    %407 = vmatpush1.msra.mxu0 %v156
    %408 = vmatprep.subr.mxu0 %v155
    %409 = vmatpush1.msra.mxu0 %v154
    %410 = vmatprep.subr.mxu0 %v153
    %411 = vmatpush1.msra.mxu0 %v152
    %412 = vmatprep.subr.mxu0 0.0
    %413 = vmatpush2.msra.mxu0 0.0
    %414 = vmatprep.subr.mxu0 0.0
    %415 = vmatpush2.msra.mxu0 0.0
    %416 = vmatprep.subr.mxu0 0.0
    %417 = vmatpush2.msra.mxu0 0.0
    %418 = vmatprep.subr.mxu0 0.0
    %419 = vmatpush2.msra.mxu0 0.0
    %420 = vmatprep.subr.mxu0 0.0
    %421 = vmatpush2.msra.mxu0 0.0
    %422 = vmatprep.subr.mxu0 0.0
    %423 = vmatpush2.msra.mxu0 0.0
    %424 = vmatprep.subr.mxu0 0.0
    %425 = vmatpush2.msra.mxu0 0.0
    %426 = vmatprep.subr.mxu0 0.0
    %427 = vmatpush2.msra.mxu0 0.0
    %428 = vmatprep.subr.mxu0 0.0
    %429 = vmatpush2.msra.mxu0 0.0
    %430 = vmatprep.subr.mxu0 0.0
    %431 = vmatpush2.msra.mxu0 0.0
    %432 = vmatprep.subr.mxu0 0.0
    %433 = vmatpush2.msra.mxu0 0.0
    %434 = vmatprep.subr.mxu0 0.0
    %435 = vmatpush2.msra.mxu0 0.0
    %436 = vmatprep.subr.mxu0 0.0
    %437 = vmatpush2.msra.mxu0 0.0
    %438 = vmatprep.subr.mxu0 0.0
    %439 = vmatpush2.msra.mxu0 0.0
    %440 = vmatprep.subr.mxu0 0.0
    %441 = vmatpush2.msra.mxu0 0.0
    %442 = vmatprep.subr.mxu0 0.0
    %443 = vmatpush2.msra.mxu0 0.0
    %444 = vmatprep.mubr.f32.mxu0 0.0
    %445 = vmatmul.mubr.f32.gmra.mxu0 %v378
    %v446 = vpop.f32.mrf.mxu0
    %v447 = vadd.f32 0.0, %v446
    %v448 = vpop.f32.mrf.mxu0
    %v449 = vadd.f32 0.0, %v448
    %450 = vdwg.mxu0
    %v453 = vcombine.low %v447, %v449
    %v455 = vunpack.c.l.s4 1966171168
    %v456 = vunpack.c.0.s8 %v455
    %v457 = vlaneseq
    %v458 = vshrl.u32 %v457, 7
    %v459 = vsub.s32 %v456, %v458
    %v460 = vrot.slane %v453, %v459
    %v461 = vcombine.high %v460, %v460
    %v463 = vunpack.c.l.s4 1966171168
    %v464 = vunpack.c.0.s8 %v463
    %v465 = vlaneseq
    %v466 = vshrl.u32 %v465, 7
    %v467 = vsub.s32 %v464, %v466
    %v468 = vrot.slane %v460, %v467
    %v470 = vunpack.c.l.s4 1966171168
    %v471 = vunpack.c.0.s8 %v470
    %v472 = vlaneseq
    %v473 = vshrl.u32 %v472, 7
    %v474 = vsub.s32 %v471, %v473
    %v475 = vrot.slane %v461, %v474
    %v478 = vadd.f32 %v360, %v468
    %v479 = vadd.f32 %v362, %v475
    %v480 = vxor.u32 %v478, 2147483648
    %v481 = vxor.u32 %v479, 2147483648
    %v482 = vmul.f32 %v480, 1.442695
    %v483 = vpow.pop %v482
    %v484 = vmul.f32 %v481, 1.442695
    %v485 = vpow.pop %v484
    %v486 = vadd.f32 %v483, 1.0
    %v487 = vadd.f32 %v485, 1.0
    %v488 = vrcp.pop %v486
    %v489 = vmul.f32 1.0, %v488
    %v490 = vrcp.pop %v487
    %v491 = vmul.f32 1.0, %v490
    %494 = vrot.lane.b32.xlu0 %v478, 64
    %v495 = vpop.permute.xlu0 %494
    %496 = vrot.lane.b32.xlu0 %v479, 64
    %v497 = vpop.permute.xlu0 %496
    %v498 = vrot.slane %v495, 1
    %v499 = vrot.slane %v497, 1
    %v502 = vtanh.pop %v498
    %v503 = vtanh.pop %v499
    %v504 = vmul.f32 %v489, %v311
    %v505 = vmul.f32 %v491, %v312
    %v506 = vmul.f32 %v489, %v502
    %v507 = vmul.f32 %v491, %v503
    %510 = vrot.lane.b32.xlu0 %v506, 64
    %v511 = vpop.permute.xlu0 %510
    %512 = vrot.lane.b32.xlu0 %v507, 64
    %v513 = vpop.permute.xlu0 %512
    %v516 = vadd.f32 %v504, %v511
    %v517 = vadd.f32 %v505, %v513
    %v518 = vtanh.pop %v516
    %v519 = vtanh.pop %v517
    %v522 = vrot.slane %v489, 1
    %v523 = vrot.slane %v491, 1
    %528 = vrot.lane.b32.xlu0 %v518, 64
    %v529 = vpop.permute.xlu0 %528
    %530 = vrot.lane.b32.xlu0 %v519, 64
    %v531 = vpop.permute.xlu0 %530
    %v534 = vmul.f32 %v522, %v529
    %v535 = vmul.f32 %v523, %v531
    %536 = vst.msk [vmem:[#allocation2 + $0x1] sm:$0x1] %vm331, %v534
    %537 = vst.msk [vmem:[#allocation2 + $0x9] sm:$0x1] %vm331, %v535
    %538 = vst.msk [vmem:[#allocation2 + $0x6] sm:$0x1] %vm334, %v534
    %539 = vst.msk [vmem:[#allocation2 + $0xe] sm:$0x1] %vm334, %v535
    %v542 = vlaneseq
    %v543 = vshrl.u32 %v542, 7
    %v544 = vsub.s32 0, %v543
    %v545 = vrot.slane %v534, %v544
    %v546 = vlaneseq
    %v547 = vshrl.u32 %v546, 7
    %v548 = vsub.s32 0, %v547
    %v549 = vrot.slane %v535, %v548
    %550 = vrot.lane.b32.xlu0 %v545, 64
    %v551 = vpop.permute.xlu0 %550
    %552 = vrot.lane.b32.xlu0 %v549, 64
    %v553 = vpop.permute.xlu0 %552
    %556 = vst.msk [vmem:[#allocation2 + $0x6] sm:$0x1] %vm353, %v551
    %557 = vst.msk [vmem:[#allocation2 + $0xe] sm:$0x1] %vm353, %v553
    %558 = vst.msk [vmem:[#allocation2 + $0x1] sm:$0x1] %vm356, %v551
    %559 = vst.msk [vmem:[#allocation2 + $0x9] sm:$0x1] %vm356, %v553
    %s560 = scalar_lea.vmem [#allocation4], 2
    %v561 = vld [vmem:[%s560] ss:$8 sm:$0x3]
    %s562 = scalar_lea.vmem [#allocation4], 18
    %v563 = vld [vmem:[%s562] ss:$8 sm:$0x3]
    %v564 = vcombine.low %v534, %v535
    %v566 = vunpack.c.l.s4 1966171168
    %v567 = vunpack.c.0.s8 %v566
    %v568 = vlaneseq
    %v569 = vshrl.u32 %v568, 7
    %v570 = vsub.s32 %v567, %v569
    %v571 = vrot.slane %v564, %v570
    %v573 = vunpack.c.l.s4 1966171168
    %v574 = vunpack.c.0.s8 %v573
    %v575 = vlaneseq
    %v576 = vshrl.u32 %v575, 7
    %v577 = vsub.s32 %v574, %v576
    %v578 = vrot.slane %v571, %v577
    %v579 = vsel %vm171, %v578, 0
    %581 = vmatprep.subr.mxu0 0.0
    %582 = vmatpush1.msra.mxu0 0.0
    %583 = vmatprep.subr.mxu0 0.0
    %584 = vmatpush1.msra.mxu0 0.0
    %585 = vmatprep.subr.mxu0 0.0
    %586 = vmatpush1.msra.mxu0 0.0
    %587 = vmatprep.subr.mxu0 0.0
    %588 = vmatpush1.msra.mxu0 0.0
    %589 = vmatprep.subr.mxu0 0.0
    %590 = vmatpush1.msra.mxu0 0.0
    %591 = vmatprep.subr.mxu0 0.0
    %592 = vmatpush1.msra.mxu0 0.0
    %593 = vmatprep.subr.mxu0 0.0
    %594 = vmatpush1.msra.mxu0 0.0
    %595 = vmatprep.subr.mxu0 0.0
    %596 = vmatpush1.msra.mxu0 0.0
    %597 = vmatprep.subr.mxu0 %v167
    %598 = vmatpush1.msra.mxu0 %v166
    %599 = vmatprep.subr.mxu0 %v165
    %600 = vmatpush1.msra.mxu0 %v164
    %601 = vmatprep.subr.mxu0 %v163
    %602 = vmatpush1.msra.mxu0 %v162
    %603 = vmatprep.subr.mxu0 %v161
    %604 = vmatpush1.msra.mxu0 %v160
    %605 = vmatprep.subr.mxu0 %v159
    %606 = vmatpush1.msra.mxu0 %v158
    %607 = vmatprep.subr.mxu0 %v157
    %608 = vmatpush1.msra.mxu0 %v156
    %609 = vmatprep.subr.mxu0 %v155
    %610 = vmatpush1.msra.mxu0 %v154
    %611 = vmatprep.subr.mxu0 %v153
    %612 = vmatpush1.msra.mxu0 %v152
    %613 = vmatprep.subr.mxu0 0.0
    %614 = vmatpush2.msra.mxu0 0.0
    %615 = vmatprep.subr.mxu0 0.0
    %616 = vmatpush2.msra.mxu0 0.0
    %617 = vmatprep.subr.mxu0 0.0
    %618 = vmatpush2.msra.mxu0 0.0
    %619 = vmatprep.subr.mxu0 0.0
    %620 = vmatpush2.msra.mxu0 0.0
    %621 = vmatprep.subr.mxu0 0.0
    %622 = vmatpush2.msra.mxu0 0.0
    %623 = vmatprep.subr.mxu0 0.0
    %624 = vmatpush2.msra.mxu0 0.0
    %625 = vmatprep.subr.mxu0 0.0
    %626 = vmatpush2.msra.mxu0 0.0
    %627 = vmatprep.subr.mxu0 0.0
    %628 = vmatpush2.msra.mxu0 0.0
    %629 = vmatprep.subr.mxu0 0.0
    %630 = vmatpush2.msra.mxu0 0.0
    %631 = vmatprep.subr.mxu0 0.0
    %632 = vmatpush2.msra.mxu0 0.0
    %633 = vmatprep.subr.mxu0 0.0
    %634 = vmatpush2.msra.mxu0 0.0
    %635 = vmatprep.subr.mxu0 0.0
    %636 = vmatpush2.msra.mxu0 0.0
    %637 = vmatprep.subr.mxu0 0.0
    %638 = vmatpush2.msra.mxu0 0.0
    %639 = vmatprep.subr.mxu0 0.0
    %640 = vmatpush2.msra.mxu0 0.0
    %641 = vmatprep.subr.mxu0 0.0
    %642 = vmatpush2.msra.mxu0 0.0
    %643 = vmatprep.subr.mxu0 0.0
    %644 = vmatpush2.msra.mxu0 0.0
    %645 = vmatprep.mubr.f32.mxu0 0.0
    %646 = vmatmul.mubr.f32.gmra.mxu0 %v579
    %v647 = vpop.f32.mrf.mxu0
    %v648 = vadd.f32 0.0, %v647
    %v649 = vpop.f32.mrf.mxu0
    %v650 = vadd.f32 0.0, %v649
    %651 = vdwg.mxu0
    %v654 = vcombine.low %v648, %v650
    %v656 = vunpack.c.l.s4 1966171168
    %v657 = vunpack.c.0.s8 %v656
    %v658 = vlaneseq
    %v659 = vshrl.u32 %v658, 7
    %v660 = vsub.s32 %v657, %v659
    %v661 = vrot.slane %v654, %v660
    %v662 = vcombine.high %v661, %v661
    %v664 = vunpack.c.l.s4 1966171168
    %v665 = vunpack.c.0.s8 %v664
    %v666 = vlaneseq
    %v667 = vshrl.u32 %v666, 7
    %v668 = vsub.s32 %v665, %v667
    %v669 = vrot.slane %v661, %v668
    %v671 = vunpack.c.l.s4 1966171168
    %v672 = vunpack.c.0.s8 %v671
    %v673 = vlaneseq
    %v674 = vshrl.u32 %v673, 7
    %v675 = vsub.s32 %v672, %v674
    %v676 = vrot.slane %v662, %v675
    %v679 = vadd.f32 %v561, %v669
    %v680 = vadd.f32 %v563, %v676
    %v681 = vxor.u32 %v679, 2147483648
    %v682 = vxor.u32 %v680, 2147483648
    %v683 = vmul.f32 %v681, 1.442695
    %v684 = vpow.pop %v683
    %v685 = vmul.f32 %v682, 1.442695
    %v686 = vpow.pop %v685
    %v687 = vadd.f32 %v684, 1.0
    %v688 = vadd.f32 %v686, 1.0
    %v689 = vrcp.pop %v687
    %v690 = vmul.f32 1.0, %v689
    %v691 = vrcp.pop %v688
    %v692 = vmul.f32 1.0, %v691
    %695 = vrot.lane.b32.xlu0 %v679, 64
    %v696 = vpop.permute.xlu0 %695
    %697 = vrot.lane.b32.xlu0 %v680, 64
    %v698 = vpop.permute.xlu0 %697
    %v699 = vrot.slane %v696, 1
    %v700 = vrot.slane %v698, 1
    %v703 = vtanh.pop %v699
    %v704 = vtanh.pop %v700
    %v705 = vmul.f32 %v690, %v516
    %v706 = vmul.f32 %v692, %v517
    %v707 = vmul.f32 %v690, %v703
    %v708 = vmul.f32 %v692, %v704
    %711 = vrot.lane.b32.xlu0 %v707, 64
    %v712 = vpop.permute.xlu0 %711
    %713 = vrot.lane.b32.xlu0 %v708, 64
    %v714 = vpop.permute.xlu0 %713
    %v717 = vadd.f32 %v705, %v712
    %v718 = vadd.f32 %v706, %v714
    %v719 = vtanh.pop %v717
    %v720 = vtanh.pop %v718
    %v723 = vrot.slane %v690, 1
    %v724 = vrot.slane %v692, 1
    %729 = vrot.lane.b32.xlu0 %v719, 64
    %v730 = vpop.permute.xlu0 %729
    %731 = vrot.lane.b32.xlu0 %v720, 64
    %v732 = vpop.permute.xlu0 %731
    %v735 = vmul.f32 %v723, %v730
    %v736 = vmul.f32 %v724, %v732
    %737 = vst.msk [vmem:[#allocation2 + $0x2] sm:$0x1] %vm331, %v735
    %738 = vst.msk [vmem:[#allocation2 + $0xa] sm:$0x1] %vm331, %v736
    %739 = vst.msk [vmem:[#allocation2 + $0x5] sm:$0x1] %vm334, %v735
    %740 = vst.msk [vmem:[#allocation2 + $0xd] sm:$0x1] %vm334, %v736
    %v743 = vlaneseq
    %v744 = vshrl.u32 %v743, 7
    %v745 = vsub.s32 0, %v744
    %v746 = vrot.slane %v735, %v745
    %v747 = vlaneseq
    %v748 = vshrl.u32 %v747, 7
    %v749 = vsub.s32 0, %v748
    %v750 = vrot.slane %v736, %v749
    %751 = vrot.lane.b32.xlu0 %v746, 64
    %v752 = vpop.permute.xlu0 %751
    %753 = vrot.lane.b32.xlu0 %v750, 64
    %v754 = vpop.permute.xlu0 %753
    %757 = vst.msk [vmem:[#allocation2 + $0x5] sm:$0x1] %vm353, %v752
    %758 = vst.msk [vmem:[#allocation2 + $0xd] sm:$0x1] %vm353, %v754
    %759 = vst.msk [vmem:[#allocation2 + $0x2] sm:$0x1] %vm356, %v752
    %760 = vst.msk [vmem:[#allocation2 + $0xa] sm:$0x1] %vm356, %v754
    %s761 = scalar_lea.vmem [#allocation4], 3
    %v762 = vld [vmem:[%s761] ss:$8 sm:$0x3]
    %s763 = scalar_lea.vmem [#allocation4], 19
    %v764 = vld [vmem:[%s763] ss:$8 sm:$0x3]
    %v765 = vcombine.low %v735, %v736
    %v767 = vunpack.c.l.s4 1966171168
    %v768 = vunpack.c.0.s8 %v767
    %v769 = vlaneseq
    %v770 = vshrl.u32 %v769, 7
    %v771 = vsub.s32 %v768, %v770
    %v772 = vrot.slane %v765, %v771
    %v774 = vunpack.c.l.s4 1966171168
    %v775 = vunpack.c.0.s8 %v774
    %v776 = vlaneseq
    %v777 = vshrl.u32 %v776, 7
    %v778 = vsub.s32 %v775, %v777
    %v779 = vrot.slane %v772, %v778
    %v780 = vsel %vm171, %v779, 0
    %782 = vmatprep.subr.mxu0 0.0
    %783 = vmatpush1.msra.mxu0 0.0
    %784 = vmatprep.subr.mxu0 0.0
    %785 = vmatpush1.msra.mxu0 0.0
    %786 = vmatprep.subr.mxu0 0.0
    %787 = vmatpush1.msra.mxu0 0.0
    %788 = vmatprep.subr.mxu0 0.0
    %789 = vmatpush1.msra.mxu0 0.0
    %790 = vmatprep.subr.mxu0 0.0
    %791 = vmatpush1.msra.mxu0 0.0
    %792 = vmatprep.subr.mxu0 0.0
    %793 = vmatpush1.msra.mxu0 0.0
    %794 = vmatprep.subr.mxu0 0.0
    %795 = vmatpush1.msra.mxu0 0.0
    %796 = vmatprep.subr.mxu0 0.0
    %797 = vmatpush1.msra.mxu0 0.0
    %798 = vmatprep.subr.mxu0 %v167
    %799 = vmatpush1.msra.mxu0 %v166
    %800 = vmatprep.subr.mxu0 %v165
    %801 = vmatpush1.msra.mxu0 %v164
    %802 = vmatprep.subr.mxu0 %v163
    %803 = vmatpush1.msra.mxu0 %v162
    %804 = vmatprep.subr.mxu0 %v161
    %805 = vmatpush1.msra.mxu0 %v160
    %806 = vmatprep.subr.mxu0 %v159
    %807 = vmatpush1.msra.mxu0 %v158
    %808 = vmatprep.subr.mxu0 %v157
    %809 = vmatpush1.msra.mxu0 %v156
    %810 = vmatprep.subr.mxu0 %v155
    %811 = vmatpush1.msra.mxu0 %v154
    %812 = vmatprep.subr.mxu0 %v153
    %813 = vmatpush1.msra.mxu0 %v152
    %814 = vmatprep.subr.mxu0 0.0
    %815 = vmatpush2.msra.mxu0 0.0
    %816 = vmatprep.subr.mxu0 0.0
    %817 = vmatpush2.msra.mxu0 0.0
    %818 = vmatprep.subr.mxu0 0.0
    %819 = vmatpush2.msra.mxu0 0.0
    %820 = vmatprep.subr.mxu0 0.0
    %821 = vmatpush2.msra.mxu0 0.0
    %822 = vmatprep.subr.mxu0 0.0
    %823 = vmatpush2.msra.mxu0 0.0
    %824 = vmatprep.subr.mxu0 0.0
    %825 = vmatpush2.msra.mxu0 0.0
    %826 = vmatprep.subr.mxu0 0.0
    %827 = vmatpush2.msra.mxu0 0.0
    %828 = vmatprep.subr.mxu0 0.0
    %829 = vmatpush2.msra.mxu0 0.0
    %830 = vmatprep.subr.mxu0 0.0
    %831 = vmatpush2.msra.mxu0 0.0
    %832 = vmatprep.subr.mxu0 0.0
    %833 = vmatpush2.msra.mxu0 0.0
    %834 = vmatprep.subr.mxu0 0.0
    %835 = vmatpush2.msra.mxu0 0.0
    %836 = vmatprep.subr.mxu0 0.0
    %837 = vmatpush2.msra.mxu0 0.0
    %838 = vmatprep.subr.mxu0 0.0
    %839 = vmatpush2.msra.mxu0 0.0
    %840 = vmatprep.subr.mxu0 0.0
    %841 = vmatpush2.msra.mxu0 0.0
    %842 = vmatprep.subr.mxu0 0.0
    %843 = vmatpush2.msra.mxu0 0.0
    %844 = vmatprep.subr.mxu0 0.0
    %845 = vmatpush2.msra.mxu0 0.0
    %846 = vmatprep.mubr.f32.mxu0 0.0
    %847 = vmatmul.mubr.f32.gmra.mxu0 %v780
    %v848 = vpop.f32.mrf.mxu0
    %v849 = vadd.f32 0.0, %v848
    %v850 = vpop.f32.mrf.mxu0
    %v851 = vadd.f32 0.0, %v850
    %852 = vdwg.mxu0
    %v855 = vcombine.low %v849, %v851
    %v857 = vunpack.c.l.s4 1966171168
    %v858 = vunpack.c.0.s8 %v857
    %v859 = vlaneseq
    %v860 = vshrl.u32 %v859, 7
    %v861 = vsub.s32 %v858, %v860
    %v862 = vrot.slane %v855, %v861
    %v863 = vcombine.high %v862, %v862
    %v865 = vunpack.c.l.s4 1966171168
    %v866 = vunpack.c.0.s8 %v865
    %v867 = vlaneseq
    %v868 = vshrl.u32 %v867, 7
    %v869 = vsub.s32 %v866, %v868
    %v870 = vrot.slane %v862, %v869
    %v872 = vunpack.c.l.s4 1966171168
    %v873 = vunpack.c.0.s8 %v872
    %v874 = vlaneseq
    %v875 = vshrl.u32 %v874, 7
    %v876 = vsub.s32 %v873, %v875
    %v877 = vrot.slane %v863, %v876
    %v880 = vadd.f32 %v762, %v870
    %v881 = vadd.f32 %v764, %v877
    %v882 = vxor.u32 %v880, 2147483648
    %v883 = vxor.u32 %v881, 2147483648
    %v884 = vmul.f32 %v882, 1.442695
    %v885 = vpow.pop %v884
    %v886 = vmul.f32 %v883, 1.442695
    %v887 = vpow.pop %v886
    %v888 = vadd.f32 %v885, 1.0
    %v889 = vadd.f32 %v887, 1.0
    %v890 = vrcp.pop %v888
    %v891 = vmul.f32 1.0, %v890
    %v892 = vrcp.pop %v889
    %v893 = vmul.f32 1.0, %v892
    %896 = vrot.lane.b32.xlu0 %v880, 64
    %v897 = vpop.permute.xlu0 %896
    %898 = vrot.lane.b32.xlu0 %v881, 64
    %v899 = vpop.permute.xlu0 %898
    %v900 = vrot.slane %v897, 1
    %v901 = vrot.slane %v899, 1
    %v904 = vtanh.pop %v900
    %v905 = vtanh.pop %v901
    %v906 = vmul.f32 %v891, %v717
    %v907 = vmul.f32 %v893, %v718
    %v908 = vmul.f32 %v891, %v904
    %v909 = vmul.f32 %v893, %v905
    %912 = vrot.lane.b32.xlu0 %v908, 64
    %v913 = vpop.permute.xlu0 %912
    %914 = vrot.lane.b32.xlu0 %v909, 64
    %v915 = vpop.permute.xlu0 %914
    %v918 = vadd.f32 %v906, %v913
    %v919 = vadd.f32 %v907, %v915
    %v920 = vtanh.pop %v918
    %v921 = vtanh.pop %v919
    %v924 = vrot.slane %v891, 1
    %v925 = vrot.slane %v893, 1
    %930 = vrot.lane.b32.xlu0 %v920, 64
    %v931 = vpop.permute.xlu0 %930
    %932 = vrot.lane.b32.xlu0 %v921, 64
    %v933 = vpop.permute.xlu0 %932
    %v936 = vmul.f32 %v924, %v931
    %v937 = vmul.f32 %v925, %v933
    %938 = vst.msk [vmem:[#allocation2 + $0x3] sm:$0x1] %vm331, %v936
    %939 = vst.msk [vmem:[#allocation2 + $0xb] sm:$0x1] %vm331, %v937
    %940 = vst.msk [vmem:[#allocation2 + $0x4] sm:$0x1] %vm334, %v936
    %941 = vst.msk [vmem:[#allocation2 + $0xc] sm:$0x1] %vm334, %v937
    %v944 = vlaneseq
    %v945 = vshrl.u32 %v944, 7
    %v946 = vsub.s32 0, %v945
    %v947 = vrot.slane %v936, %v946
    %v948 = vlaneseq
    %v949 = vshrl.u32 %v948, 7
    %v950 = vsub.s32 0, %v949
    %v951 = vrot.slane %v937, %v950
    %952 = vrot.lane.b32.xlu0 %v947, 64
    %v953 = vpop.permute.xlu0 %952
    %954 = vrot.lane.b32.xlu0 %v951, 64
    %v955 = vpop.permute.xlu0 %954
    %958 = vst.msk [vmem:[#allocation2 + $0x4] sm:$0x1] %vm353, %v953
    %959 = vst.msk [vmem:[#allocation2 + $0xc] sm:$0x1] %vm353, %v955
    %960 = vst.msk [vmem:[#allocation2 + $0x3] sm:$0x1] %vm356, %v953
    %961 = vst.msk [vmem:[#allocation2 + $0xb] sm:$0x1] %vm356, %v955
    %s962 = scalar_lea.vmem [#allocation4], 4
    %v963 = vld [vmem:[%s962] ss:$8 sm:$0x3]
    %s964 = scalar_lea.vmem [#allocation4], 20
    %v965 = vld [vmem:[%s964] ss:$8 sm:$0x3]
    %v966 = vcombine.low %v936, %v937
    %v968 = vunpack.c.l.s4 1966171168
    %v969 = vunpack.c.0.s8 %v968
    %v970 = vlaneseq
    %v971 = vshrl.u32 %v970, 7
    %v972 = vsub.s32 %v969, %v971
    %v973 = vrot.slane %v966, %v972
    %v975 = vunpack.c.l.s4 1966171168
    %v976 = vunpack.c.0.s8 %v975
    %v977 = vlaneseq
    %v978 = vshrl.u32 %v977, 7
    %v979 = vsub.s32 %v976, %v978
    %v980 = vrot.slane %v973, %v979
    %v981 = vsel %vm171, %v980, 0
    %983 = vmatprep.subr.mxu0 0.0
    %984 = vmatpush1.msra.mxu0 0.0
    %985 = vmatprep.subr.mxu0 0.0
    %986 = vmatpush1.msra.mxu0 0.0
    %987 = vmatprep.subr.mxu0 0.0
    %988 = vmatpush1.msra.mxu0 0.0
    %989 = vmatprep.subr.mxu0 0.0
    %990 = vmatpush1.msra.mxu0 0.0
    %991 = vmatprep.subr.mxu0 0.0
    %992 = vmatpush1.msra.mxu0 0.0
    %993 = vmatprep.subr.mxu0 0.0
    %994 = vmatpush1.msra.mxu0 0.0
    %995 = vmatprep.subr.mxu0 0.0
    %996 = vmatpush1.msra.mxu0 0.0
    %997 = vmatprep.subr.mxu0 0.0
    %998 = vmatpush1.msra.mxu0 0.0
    %999 = vmatprep.subr.mxu0 %v167
    %1000 = vmatpush1.msra.mxu0 %v166
    %1001 = vmatprep.subr.mxu0 %v165
    %1002 = vmatpush1.msra.mxu0 %v164
    %1003 = vmatprep.subr.mxu0 %v163
    %1004 = vmatpush1.msra.mxu0 %v162
    %1005 = vmatprep.subr.mxu0 %v161
    %1006 = vmatpush1.msra.mxu0 %v160
    %1007 = vmatprep.subr.mxu0 %v159
    %1008 = vmatpush1.msra.mxu0 %v158
    %1009 = vmatprep.subr.mxu0 %v157
    %1010 = vmatpush1.msra.mxu0 %v156
    %1011 = vmatprep.subr.mxu0 %v155
    %1012 = vmatpush1.msra.mxu0 %v154
    %1013 = vmatprep.subr.mxu0 %v153
    %1014 = vmatpush1.msra.mxu0 %v152
    %1015 = vmatprep.subr.mxu0 0.0
    %1016 = vmatpush2.msra.mxu0 0.0
    %1017 = vmatprep.subr.mxu0 0.0
    %1018 = vmatpush2.msra.mxu0 0.0
    %1019 = vmatprep.subr.mxu0 0.0
    %1020 = vmatpush2.msra.mxu0 0.0
    %1021 = vmatprep.subr.mxu0 0.0
    %1022 = vmatpush2.msra.mxu0 0.0
    %1023 = vmatprep.subr.mxu0 0.0
    %1024 = vmatpush2.msra.mxu0 0.0
    %1025 = vmatprep.subr.mxu0 0.0
    %1026 = vmatpush2.msra.mxu0 0.0
    %1027 = vmatprep.subr.mxu0 0.0
    %1028 = vmatpush2.msra.mxu0 0.0
    %1029 = vmatprep.subr.mxu0 0.0
    %1030 = vmatpush2.msra.mxu0 0.0
    %1031 = vmatprep.subr.mxu0 0.0
    %1032 = vmatpush2.msra.mxu0 0.0
    %1033 = vmatprep.subr.mxu0 0.0
    %1034 = vmatpush2.msra.mxu0 0.0
    %1035 = vmatprep.subr.mxu0 0.0
    %1036 = vmatpush2.msra.mxu0 0.0
    %1037 = vmatprep.subr.mxu0 0.0
    %1038 = vmatpush2.msra.mxu0 0.0
    %1039 = vmatprep.subr.mxu0 0.0
    %1040 = vmatpush2.msra.mxu0 0.0
    %1041 = vmatprep.subr.mxu0 0.0
    %1042 = vmatpush2.msra.mxu0 0.0
    %1043 = vmatprep.subr.mxu0 0.0
    %1044 = vmatpush2.msra.mxu0 0.0
    %1045 = vmatprep.subr.mxu0 0.0
    %1046 = vmatpush2.msra.mxu0 0.0
    %1047 = vmatprep.mubr.f32.mxu0 0.0
    %1048 = vmatmul.mubr.f32.gmra.mxu0 %v981
    %v1049 = vpop.f32.mrf.mxu0
    %v1050 = vadd.f32 0.0, %v1049
    %v1051 = vpop.f32.mrf.mxu0
    %v1052 = vadd.f32 0.0, %v1051
    %1053 = vdwg.mxu0
    %v1056 = vcombine.low %v1050, %v1052
    %v1058 = vunpack.c.l.s4 1966171168
    %v1059 = vunpack.c.0.s8 %v1058
    %v1060 = vlaneseq
    %v1061 = vshrl.u32 %v1060, 7
    %v1062 = vsub.s32 %v1059, %v1061
    %v1063 = vrot.slane %v1056, %v1062
    %v1064 = vcombine.high %v1063, %v1063
    %v1066 = vunpack.c.l.s4 1966171168
    %v1067 = vunpack.c.0.s8 %v1066
    %v1068 = vlaneseq
    %v1069 = vshrl.u32 %v1068, 7
    %v1070 = vsub.s32 %v1067, %v1069
    %v1071 = vrot.slane %v1063, %v1070
    %v1073 = vunpack.c.l.s4 1966171168
    %v1074 = vunpack.c.0.s8 %v1073
    %v1075 = vlaneseq
    %v1076 = vshrl.u32 %v1075, 7
    %v1077 = vsub.s32 %v1074, %v1076
    %v1078 = vrot.slane %v1064, %v1077
    %v1081 = vadd.f32 %v963, %v1071
    %v1082 = vadd.f32 %v965, %v1078
    %v1083 = vxor.u32 %v1081, 2147483648
    %v1084 = vxor.u32 %v1082, 2147483648
    %v1085 = vmul.f32 %v1083, 1.442695
    %v1086 = vpow.pop %v1085
    %v1087 = vmul.f32 %v1084, 1.442695
    %v1088 = vpow.pop %v1087
    %v1089 = vadd.f32 %v1086, 1.0
    %v1090 = vadd.f32 %v1088, 1.0
    %v1091 = vrcp.pop %v1089
    %v1092 = vmul.f32 1.0, %v1091
    %v1093 = vrcp.pop %v1090
    %v1094 = vmul.f32 1.0, %v1093
    %1097 = vrot.lane.b32.xlu0 %v1081, 64
    %v1098 = vpop.permute.xlu0 %1097
    %1099 = vrot.lane.b32.xlu0 %v1082, 64
    %v1100 = vpop.permute.xlu0 %1099
    %v1101 = vrot.slane %v1098, 1
    %v1102 = vrot.slane %v1100, 1
    %v1105 = vtanh.pop %v1101
    %v1106 = vtanh.pop %v1102
    %v1107 = vmul.f32 %v1092, %v918
    %v1108 = vmul.f32 %v1094, %v919
    %v1109 = vmul.f32 %v1092, %v1105
    %v1110 = vmul.f32 %v1094, %v1106
    %1113 = vrot.lane.b32.xlu0 %v1109, 64
    %v1114 = vpop.permute.xlu0 %1113
    %1115 = vrot.lane.b32.xlu0 %v1110, 64
    %v1116 = vpop.permute.xlu0 %1115
    %v1119 = vadd.f32 %v1107, %v1114
    %v1120 = vadd.f32 %v1108, %v1116
    %v1121 = vtanh.pop %v1119
    %v1122 = vtanh.pop %v1120
    %v1125 = vrot.slane %v1092, 1
    %v1126 = vrot.slane %v1094, 1
    %1131 = vrot.lane.b32.xlu0 %v1121, 64
    %v1132 = vpop.permute.xlu0 %1131
    %1133 = vrot.lane.b32.xlu0 %v1122, 64
    %v1134 = vpop.permute.xlu0 %1133
    %v1137 = vmul.f32 %v1125, %v1132
    %v1138 = vmul.f32 %v1126, %v1134
    %1139 = vst.msk [vmem:[#allocation2 + $0x4] sm:$0x1] %vm331, %v1137
    %1140 = vst.msk [vmem:[#allocation2 + $0xc] sm:$0x1] %vm331, %v1138
    %1141 = vst.msk [vmem:[#allocation2 + $0x3] sm:$0x1] %vm334, %v1137
    %1142 = vst.msk [vmem:[#allocation2 + $0xb] sm:$0x1] %vm334, %v1138
    %v1145 = vlaneseq
    %v1146 = vshrl.u32 %v1145, 7
    %v1147 = vsub.s32 0, %v1146
    %v1148 = vrot.slane %v1137, %v1147
    %v1149 = vlaneseq
    %v1150 = vshrl.u32 %v1149, 7
    %v1151 = vsub.s32 0, %v1150
    %v1152 = vrot.slane %v1138, %v1151
    %1153 = vrot.lane.b32.xlu0 %v1148, 64
    %v1154 = vpop.permute.xlu0 %1153
    %1155 = vrot.lane.b32.xlu0 %v1152, 64
    %v1156 = vpop.permute.xlu0 %1155
    %1159 = vst.msk [vmem:[#allocation2 + $0x3] sm:$0x1] %vm353, %v1154
    %1160 = vst.msk [vmem:[#allocation2 + $0xb] sm:$0x1] %vm353, %v1156
    %1161 = vst.msk [vmem:[#allocation2 + $0x4] sm:$0x1] %vm356, %v1154
    %1162 = vst.msk [vmem:[#allocation2 + $0xc] sm:$0x1] %vm356, %v1156
    %s1163 = scalar_lea.vmem [#allocation4], 5
    %v1164 = vld [vmem:[%s1163] ss:$8 sm:$0x3]
    %s1165 = scalar_lea.vmem [#allocation4], 21
    %v1166 = vld [vmem:[%s1165] ss:$8 sm:$0x3]
    %v1167 = vcombine.low %v1137, %v1138
    %v1169 = vunpack.c.l.s4 1966171168
    %v1170 = vunpack.c.0.s8 %v1169
    %v1171 = vlaneseq
    %v1172 = vshrl.u32 %v1171, 7
    %v1173 = vsub.s32 %v1170, %v1172
    %v1174 = vrot.slane %v1167, %v1173
    %v1176 = vunpack.c.l.s4 1966171168
    %v1177 = vunpack.c.0.s8 %v1176
    %v1178 = vlaneseq
    %v1179 = vshrl.u32 %v1178, 7
    %v1180 = vsub.s32 %v1177, %v1179
    %v1181 = vrot.slane %v1174, %v1180
    %v1182 = vsel %vm171, %v1181, 0
    %1184 = vmatprep.subr.mxu0 0.0
    %1185 = vmatpush1.msra.mxu0 0.0
    %1186 = vmatprep.subr.mxu0 0.0
    %1187 = vmatpush1.msra.mxu0 0.0
    %1188 = vmatprep.subr.mxu0 0.0
    %1189 = vmatpush1.msra.mxu0 0.0
    %1190 = vmatprep.subr.mxu0 0.0
    %1191 = vmatpush1.msra.mxu0 0.0
    %1192 = vmatprep.subr.mxu0 0.0
    %1193 = vmatpush1.msra.mxu0 0.0
    %1194 = vmatprep.subr.mxu0 0.0
    %1195 = vmatpush1.msra.mxu0 0.0
    %1196 = vmatprep.subr.mxu0 0.0
    %1197 = vmatpush1.msra.mxu0 0.0
    %1198 = vmatprep.subr.mxu0 0.0
    %1199 = vmatpush1.msra.mxu0 0.0
    %1200 = vmatprep.subr.mxu0 %v167
    %1201 = vmatpush1.msra.mxu0 %v166
    %1202 = vmatprep.subr.mxu0 %v165
    %1203 = vmatpush1.msra.mxu0 %v164
    %1204 = vmatprep.subr.mxu0 %v163
    %1205 = vmatpush1.msra.mxu0 %v162
    %1206 = vmatprep.subr.mxu0 %v161
    %1207 = vmatpush1.msra.mxu0 %v160
    %1208 = vmatprep.subr.mxu0 %v159
    %1209 = vmatpush1.msra.mxu0 %v158
    %1210 = vmatprep.subr.mxu0 %v157
    %1211 = vmatpush1.msra.mxu0 %v156
    %1212 = vmatprep.subr.mxu0 %v155
    %1213 = vmatpush1.msra.mxu0 %v154
    %1214 = vmatprep.subr.mxu0 %v153
    %1215 = vmatpush1.msra.mxu0 %v152
    %1216 = vmatprep.subr.mxu0 0.0
    %1217 = vmatpush2.msra.mxu0 0.0
    %1218 = vmatprep.subr.mxu0 0.0
    %1219 = vmatpush2.msra.mxu0 0.0
    %1220 = vmatprep.subr.mxu0 0.0
    %1221 = vmatpush2.msra.mxu0 0.0
    %1222 = vmatprep.subr.mxu0 0.0
    %1223 = vmatpush2.msra.mxu0 0.0
    %1224 = vmatprep.subr.mxu0 0.0
    %1225 = vmatpush2.msra.mxu0 0.0
    %1226 = vmatprep.subr.mxu0 0.0
    %1227 = vmatpush2.msra.mxu0 0.0
    %1228 = vmatprep.subr.mxu0 0.0
    %1229 = vmatpush2.msra.mxu0 0.0
    %1230 = vmatprep.subr.mxu0 0.0
    %1231 = vmatpush2.msra.mxu0 0.0
    %1232 = vmatprep.subr.mxu0 0.0
    %1233 = vmatpush2.msra.mxu0 0.0
    %1234 = vmatprep.subr.mxu0 0.0
    %1235 = vmatpush2.msra.mxu0 0.0
    %1236 = vmatprep.subr.mxu0 0.0
    %1237 = vmatpush2.msra.mxu0 0.0
    %1238 = vmatprep.subr.mxu0 0.0
    %1239 = vmatpush2.msra.mxu0 0.0
    %1240 = vmatprep.subr.mxu0 0.0
    %1241 = vmatpush2.msra.mxu0 0.0
    %1242 = vmatprep.subr.mxu0 0.0
    %1243 = vmatpush2.msra.mxu0 0.0
    %1244 = vmatprep.subr.mxu0 0.0
    %1245 = vmatpush2.msra.mxu0 0.0
    %1246 = vmatprep.subr.mxu0 0.0
    %1247 = vmatpush2.msra.mxu0 0.0
    %1248 = vmatprep.mubr.f32.mxu0 0.0
    %1249 = vmatmul.mubr.f32.gmra.mxu0 %v1182
    %v1250 = vpop.f32.mrf.mxu0
    %v1251 = vadd.f32 0.0, %v1250
    %v1252 = vpop.f32.mrf.mxu0
    %v1253 = vadd.f32 0.0, %v1252
    %1254 = vdwg.mxu0
    %v1257 = vcombine.low %v1251, %v1253
    %v1259 = vunpack.c.l.s4 1966171168
    %v1260 = vunpack.c.0.s8 %v1259
    %v1261 = vlaneseq
    %v1262 = vshrl.u32 %v1261, 7
    %v1263 = vsub.s32 %v1260, %v1262
    %v1264 = vrot.slane %v1257, %v1263
    %v1265 = vcombine.high %v1264, %v1264
    %v1267 = vunpack.c.l.s4 1966171168
    %v1268 = vunpack.c.0.s8 %v1267
    %v1269 = vlaneseq
    %v1270 = vshrl.u32 %v1269, 7
    %v1271 = vsub.s32 %v1268, %v1270
    %v1272 = vrot.slane %v1264, %v1271
    %v1274 = vunpack.c.l.s4 1966171168
    %v1275 = vunpack.c.0.s8 %v1274
    %v1276 = vlaneseq
    %v1277 = vshrl.u32 %v1276, 7
    %v1278 = vsub.s32 %v1275, %v1277
    %v1279 = vrot.slane %v1265, %v1278
    %v1282 = vadd.f32 %v1164, %v1272
    %v1283 = vadd.f32 %v1166, %v1279
    %v1284 = vxor.u32 %v1282, 2147483648
    %v1285 = vxor.u32 %v1283, 2147483648
    %v1286 = vmul.f32 %v1284, 1.442695
    %v1287 = vpow.pop %v1286
    %v1288 = vmul.f32 %v1285, 1.442695
    %v1289 = vpow.pop %v1288
    %v1290 = vadd.f32 %v1287, 1.0
    %v1291 = vadd.f32 %v1289, 1.0
    %v1292 = vrcp.pop %v1290
    %v1293 = vmul.f32 1.0, %v1292
    %v1294 = vrcp.pop %v1291
    %v1295 = vmul.f32 1.0, %v1294
    %1298 = vrot.lane.b32.xlu0 %v1282, 64
    %v1299 = vpop.permute.xlu0 %1298
    %1300 = vrot.lane.b32.xlu0 %v1283, 64
    %v1301 = vpop.permute.xlu0 %1300
    %v1302 = vrot.slane %v1299, 1
    %v1303 = vrot.slane %v1301, 1
    %v1306 = vtanh.pop %v1302
    %v1307 = vtanh.pop %v1303
    %v1308 = vmul.f32 %v1293, %v1119
    %v1309 = vmul.f32 %v1295, %v1120
    %v1310 = vmul.f32 %v1293, %v1306
    %v1311 = vmul.f32 %v1295, %v1307
    %1314 = vrot.lane.b32.xlu0 %v1310, 64
    %v1315 = vpop.permute.xlu0 %1314
    %1316 = vrot.lane.b32.xlu0 %v1311, 64
    %v1317 = vpop.permute.xlu0 %1316
    %v1320 = vadd.f32 %v1308, %v1315
    %v1321 = vadd.f32 %v1309, %v1317
    %v1322 = vtanh.pop %v1320
    %v1323 = vtanh.pop %v1321
    %v1326 = vrot.slane %v1293, 1
    %v1327 = vrot.slane %v1295, 1
    %1332 = vrot.lane.b32.xlu0 %v1322, 64
    %v1333 = vpop.permute.xlu0 %1332
    %1334 = vrot.lane.b32.xlu0 %v1323, 64
    %v1335 = vpop.permute.xlu0 %1334
    %v1338 = vmul.f32 %v1326, %v1333
    %v1339 = vmul.f32 %v1327, %v1335
    %1340 = vst.msk [vmem:[#allocation2 + $0x5] sm:$0x1] %vm331, %v1338
    %1341 = vst.msk [vmem:[#allocation2 + $0xd] sm:$0x1] %vm331, %v1339
    %1342 = vst.msk [vmem:[#allocation2 + $0x2] sm:$0x1] %vm334, %v1338
    %1343 = vst.msk [vmem:[#allocation2 + $0xa] sm:$0x1] %vm334, %v1339
    %v1346 = vlaneseq
    %v1347 = vshrl.u32 %v1346, 7
    %v1348 = vsub.s32 0, %v1347
    %v1349 = vrot.slane %v1338, %v1348
    %v1350 = vlaneseq
    %v1351 = vshrl.u32 %v1350, 7
    %v1352 = vsub.s32 0, %v1351
    %v1353 = vrot.slane %v1339, %v1352
    %1354 = vrot.lane.b32.xlu0 %v1349, 64
    %v1355 = vpop.permute.xlu0 %1354
    %1356 = vrot.lane.b32.xlu0 %v1353, 64
    %v1357 = vpop.permute.xlu0 %1356
    %1360 = vst.msk [vmem:[#allocation2 + $0x2] sm:$0x1] %vm353, %v1355
    %1361 = vst.msk [vmem:[#allocation2 + $0xa] sm:$0x1] %vm353, %v1357
    %1362 = vst.msk [vmem:[#allocation2 + $0x5] sm:$0x1] %vm356, %v1355
    %1363 = vst.msk [vmem:[#allocation2 + $0xd] sm:$0x1] %vm356, %v1357
    %s1364 = scalar_lea.vmem [#allocation4], 6
    %v1365 = vld [vmem:[%s1364] ss:$8 sm:$0x3]
    %s1366 = scalar_lea.vmem [#allocation4], 22
    %v1367 = vld [vmem:[%s1366] ss:$8 sm:$0x3]
    %v1368 = vcombine.low %v1338, %v1339
    %v1370 = vunpack.c.l.s4 1966171168
    %v1371 = vunpack.c.0.s8 %v1370
    %v1372 = vlaneseq
    %v1373 = vshrl.u32 %v1372, 7
    %v1374 = vsub.s32 %v1371, %v1373
    %v1375 = vrot.slane %v1368, %v1374
    %v1377 = vunpack.c.l.s4 1966171168
    %v1378 = vunpack.c.0.s8 %v1377
    %v1379 = vlaneseq
    %v1380 = vshrl.u32 %v1379, 7
    %v1381 = vsub.s32 %v1378, %v1380
    %v1382 = vrot.slane %v1375, %v1381
    %v1383 = vsel %vm171, %v1382, 0
    %1385 = vmatprep.subr.mxu0 0.0
    %1386 = vmatpush1.msra.mxu0 0.0
    %1387 = vmatprep.subr.mxu0 0.0
    %1388 = vmatpush1.msra.mxu0 0.0
    %1389 = vmatprep.subr.mxu0 0.0
    %1390 = vmatpush1.msra.mxu0 0.0
    %1391 = vmatprep.subr.mxu0 0.0
    %1392 = vmatpush1.msra.mxu0 0.0
    %1393 = vmatprep.subr.mxu0 0.0
    %1394 = vmatpush1.msra.mxu0 0.0
    %1395 = vmatprep.subr.mxu0 0.0
    %1396 = vmatpush1.msra.mxu0 0.0
    %1397 = vmatprep.subr.mxu0 0.0
    %1398 = vmatpush1.msra.mxu0 0.0
    %1399 = vmatprep.subr.mxu0 0.0
    %1400 = vmatpush1.msra.mxu0 0.0
    %1401 = vmatprep.subr.mxu0 %v167
    %1402 = vmatpush1.msra.mxu0 %v166
    %1403 = vmatprep.subr.mxu0 %v165
    %1404 = vmatpush1.msra.mxu0 %v164
    %1405 = vmatprep.subr.mxu0 %v163
    %1406 = vmatpush1.msra.mxu0 %v162
    %1407 = vmatprep.subr.mxu0 %v161
    %1408 = vmatpush1.msra.mxu0 %v160
    %1409 = vmatprep.subr.mxu0 %v159
    %1410 = vmatpush1.msra.mxu0 %v158
    %1411 = vmatprep.subr.mxu0 %v157
    %1412 = vmatpush1.msra.mxu0 %v156
    %1413 = vmatprep.subr.mxu0 %v155
    %1414 = vmatpush1.msra.mxu0 %v154
    %1415 = vmatprep.subr.mxu0 %v153
    %1416 = vmatpush1.msra.mxu0 %v152
    %1417 = vmatprep.subr.mxu0 0.0
    %1418 = vmatpush2.msra.mxu0 0.0
    %1419 = vmatprep.subr.mxu0 0.0
    %1420 = vmatpush2.msra.mxu0 0.0
    %1421 = vmatprep.subr.mxu0 0.0
    %1422 = vmatpush2.msra.mxu0 0.0
    %1423 = vmatprep.subr.mxu0 0.0
    %1424 = vmatpush2.msra.mxu0 0.0
    %1425 = vmatprep.subr.mxu0 0.0
    %1426 = vmatpush2.msra.mxu0 0.0
    %1427 = vmatprep.subr.mxu0 0.0
    %1428 = vmatpush2.msra.mxu0 0.0
    %1429 = vmatprep.subr.mxu0 0.0
    %1430 = vmatpush2.msra.mxu0 0.0
    %1431 = vmatprep.subr.mxu0 0.0
    %1432 = vmatpush2.msra.mxu0 0.0
    %1433 = vmatprep.subr.mxu0 0.0
    %1434 = vmatpush2.msra.mxu0 0.0
    %1435 = vmatprep.subr.mxu0 0.0
    %1436 = vmatpush2.msra.mxu0 0.0
    %1437 = vmatprep.subr.mxu0 0.0
    %1438 = vmatpush2.msra.mxu0 0.0
    %1439 = vmatprep.subr.mxu0 0.0
    %1440 = vmatpush2.msra.mxu0 0.0
    %1441 = vmatprep.subr.mxu0 0.0
    %1442 = vmatpush2.msra.mxu0 0.0
    %1443 = vmatprep.subr.mxu0 0.0
    %1444 = vmatpush2.msra.mxu0 0.0
    %1445 = vmatprep.subr.mxu0 0.0
    %1446 = vmatpush2.msra.mxu0 0.0
    %1447 = vmatprep.subr.mxu0 0.0
    %1448 = vmatpush2.msra.mxu0 0.0
    %1449 = vmatprep.mubr.f32.mxu0 0.0
    %1450 = vmatmul.mubr.f32.gmra.mxu0 %v1383
    %v1451 = vpop.f32.mrf.mxu0
    %v1452 = vadd.f32 0.0, %v1451
    %v1453 = vpop.f32.mrf.mxu0
    %v1454 = vadd.f32 0.0, %v1453
    %1455 = vdwg.mxu0
    %v1458 = vcombine.low %v1452, %v1454
    %v1460 = vunpack.c.l.s4 1966171168
    %v1461 = vunpack.c.0.s8 %v1460
    %v1462 = vlaneseq
    %v1463 = vshrl.u32 %v1462, 7
    %v1464 = vsub.s32 %v1461, %v1463
    %v1465 = vrot.slane %v1458, %v1464
    %v1466 = vcombine.high %v1465, %v1465
    %v1468 = vunpack.c.l.s4 1966171168
    %v1469 = vunpack.c.0.s8 %v1468
    %v1470 = vlaneseq
    %v1471 = vshrl.u32 %v1470, 7
    %v1472 = vsub.s32 %v1469, %v1471
    %v1473 = vrot.slane %v1465, %v1472
    %v1475 = vunpack.c.l.s4 1966171168
    %v1476 = vunpack.c.0.s8 %v1475
    %v1477 = vlaneseq
    %v1478 = vshrl.u32 %v1477, 7
    %v1479 = vsub.s32 %v1476, %v1478
    %v1480 = vrot.slane %v1466, %v1479
    %v1483 = vadd.f32 %v1365, %v1473
    %v1484 = vadd.f32 %v1367, %v1480
    %v1485 = vxor.u32 %v1483, 2147483648
    %v1486 = vxor.u32 %v1484, 2147483648
    %v1487 = vmul.f32 %v1485, 1.442695
    %v1488 = vpow.pop %v1487
    %v1489 = vmul.f32 %v1486, 1.442695
    %v1490 = vpow.pop %v1489
    %v1491 = vadd.f32 %v1488, 1.0
    %v1492 = vadd.f32 %v1490, 1.0
    %v1493 = vrcp.pop %v1491
    %v1494 = vmul.f32 1.0, %v1493
    %v1495 = vrcp.pop %v1492
    %v1496 = vmul.f32 1.0, %v1495
    %1499 = vrot.lane.b32.xlu0 %v1483, 64
    %v1500 = vpop.permute.xlu0 %1499
    %1501 = vrot.lane.b32.xlu0 %v1484, 64
    %v1502 = vpop.permute.xlu0 %1501
    %v1503 = vrot.slane %v1500, 1
    %v1504 = vrot.slane %v1502, 1
    %v1507 = vtanh.pop %v1503
    %v1508 = vtanh.pop %v1504
    %v1509 = vmul.f32 %v1494, %v1320
    %v1510 = vmul.f32 %v1496, %v1321
    %v1511 = vmul.f32 %v1494, %v1507
    %v1512 = vmul.f32 %v1496, %v1508
    %1515 = vrot.lane.b32.xlu0 %v1511, 64
    %v1516 = vpop.permute.xlu0 %1515
    %1517 = vrot.lane.b32.xlu0 %v1512, 64
    %v1518 = vpop.permute.xlu0 %1517
    %v1521 = vadd.f32 %v1509, %v1516
    %v1522 = vadd.f32 %v1510, %v1518
    %v1523 = vtanh.pop %v1521
    %v1524 = vtanh.pop %v1522
    %v1527 = vrot.slane %v1494, 1
    %v1528 = vrot.slane %v1496, 1
    %1533 = vrot.lane.b32.xlu0 %v1523, 64
    %v1534 = vpop.permute.xlu0 %1533
    %1535 = vrot.lane.b32.xlu0 %v1524, 64
    %v1536 = vpop.permute.xlu0 %1535
    %v1539 = vmul.f32 %v1527, %v1534
    %v1540 = vmul.f32 %v1528, %v1536
    %1541 = vst.msk [vmem:[#allocation2 + $0x6] sm:$0x1] %vm331, %v1539
    %1542 = vst.msk [vmem:[#allocation2 + $0xe] sm:$0x1] %vm331, %v1540
    %1543 = vst.msk [vmem:[#allocation2 + $0x1] sm:$0x1] %vm334, %v1539
    %1544 = vst.msk [vmem:[#allocation2 + $0x9] sm:$0x1] %vm334, %v1540
    %v1547 = vlaneseq
    %v1548 = vshrl.u32 %v1547, 7
    %v1549 = vsub.s32 0, %v1548
    %v1550 = vrot.slane %v1539, %v1549
    %v1551 = vlaneseq
    %v1552 = vshrl.u32 %v1551, 7
    %v1553 = vsub.s32 0, %v1552
    %v1554 = vrot.slane %v1540, %v1553
    %1555 = vrot.lane.b32.xlu0 %v1550, 64
    %v1556 = vpop.permute.xlu0 %1555
    %1557 = vrot.lane.b32.xlu0 %v1554, 64
    %v1558 = vpop.permute.xlu0 %1557
    %1561 = vst.msk [vmem:[#allocation2 + $0x1] sm:$0x1] %vm353, %v1556
    %1562 = vst.msk [vmem:[#allocation2 + $0x9] sm:$0x1] %vm353, %v1558
    %1563 = vst.msk [vmem:[#allocation2 + $0x6] sm:$0x1] %vm356, %v1556
    %1564 = vst.msk [vmem:[#allocation2 + $0xe] sm:$0x1] %vm356, %v1558
    %s1565 = scalar_lea.vmem [#allocation4], 7
    %v1566 = vld [vmem:[%s1565] ss:$8 sm:$0x3]
    %s1567 = scalar_lea.vmem [#allocation4], 23
    %v1568 = vld [vmem:[%s1567] ss:$8 sm:$0x3]
    %v1569 = vcombine.low %v1539, %v1540
    %v1571 = vunpack.c.l.s4 1966171168
    %v1572 = vunpack.c.0.s8 %v1571
    %v1573 = vlaneseq
    %v1574 = vshrl.u32 %v1573, 7
    %v1575 = vsub.s32 %v1572, %v1574
    %v1576 = vrot.slane %v1569, %v1575
    %v1578 = vunpack.c.l.s4 1966171168
    %v1579 = vunpack.c.0.s8 %v1578
    %v1580 = vlaneseq
    %v1581 = vshrl.u32 %v1580, 7
    %v1582 = vsub.s32 %v1579, %v1581
    %v1583 = vrot.slane %v1576, %v1582
    %v1584 = vsel %vm171, %v1583, 0
    %1586 = vmatprep.subr.mxu0 0.0
    %1587 = vmatpush1.msra.mxu0 0.0
    %1588 = vmatprep.subr.mxu0 0.0
    %1589 = vmatpush1.msra.mxu0 0.0
    %1590 = vmatprep.subr.mxu0 0.0
    %1591 = vmatpush1.msra.mxu0 0.0
    %1592 = vmatprep.subr.mxu0 0.0
    %1593 = vmatpush1.msra.mxu0 0.0
    %1594 = vmatprep.subr.mxu0 0.0
    %1595 = vmatpush1.msra.mxu0 0.0
    %1596 = vmatprep.subr.mxu0 0.0
    %1597 = vmatpush1.msra.mxu0 0.0
    %1598 = vmatprep.subr.mxu0 0.0
    %1599 = vmatpush1.msra.mxu0 0.0
    %1600 = vmatprep.subr.mxu0 0.0
    %1601 = vmatpush1.msra.mxu0 0.0
    %1602 = vmatprep.subr.mxu0 %v167
    %1603 = vmatpush1.msra.mxu0 %v166
    %1604 = vmatprep.subr.mxu0 %v165
    %1605 = vmatpush1.msra.mxu0 %v164
    %1606 = vmatprep.subr.mxu0 %v163
    %1607 = vmatpush1.msra.mxu0 %v162
    %1608 = vmatprep.subr.mxu0 %v161
    %1609 = vmatpush1.msra.mxu0 %v160
    %1610 = vmatprep.subr.mxu0 %v159
    %1611 = vmatpush1.msra.mxu0 %v158
    %1612 = vmatprep.subr.mxu0 %v157
    %1613 = vmatpush1.msra.mxu0 %v156
    %1614 = vmatprep.subr.mxu0 %v155
    %1615 = vmatpush1.msra.mxu0 %v154
    %1616 = vmatprep.subr.mxu0 %v153
    %1617 = vmatpush1.msra.mxu0 %v152
    %1618 = vmatprep.subr.mxu0 0.0
    %1619 = vmatpush2.msra.mxu0 0.0
    %1620 = vmatprep.subr.mxu0 0.0
    %1621 = vmatpush2.msra.mxu0 0.0
    %1622 = vmatprep.subr.mxu0 0.0
    %1623 = vmatpush2.msra.mxu0 0.0
    %1624 = vmatprep.subr.mxu0 0.0
    %1625 = vmatpush2.msra.mxu0 0.0
    %1626 = vmatprep.subr.mxu0 0.0
    %1627 = vmatpush2.msra.mxu0 0.0
    %1628 = vmatprep.subr.mxu0 0.0
    %1629 = vmatpush2.msra.mxu0 0.0
    %1630 = vmatprep.subr.mxu0 0.0
    %1631 = vmatpush2.msra.mxu0 0.0
    %1632 = vmatprep.subr.mxu0 0.0
    %1633 = vmatpush2.msra.mxu0 0.0
    %1634 = vmatprep.subr.mxu0 0.0
    %1635 = vmatpush2.msra.mxu0 0.0
    %1636 = vmatprep.subr.mxu0 0.0
    %1637 = vmatpush2.msra.mxu0 0.0
    %1638 = vmatprep.subr.mxu0 0.0
    %1639 = vmatpush2.msra.mxu0 0.0
    %1640 = vmatprep.subr.mxu0 0.0
    %1641 = vmatpush2.msra.mxu0 0.0
    %1642 = vmatprep.subr.mxu0 0.0
    %1643 = vmatpush2.msra.mxu0 0.0
    %1644 = vmatprep.subr.mxu0 0.0
    %1645 = vmatpush2.msra.mxu0 0.0
    %1646 = vmatprep.subr.mxu0 0.0
    %1647 = vmatpush2.msra.mxu0 0.0
    %1648 = vmatprep.subr.mxu0 0.0
    %1649 = vmatpush2.msra.mxu0 0.0
    %1650 = vmatprep.mubr.f32.mxu0 0.0
    %1651 = vmatmul.mubr.f32.gmra.mxu0 %v1584
    %v1652 = vpop.f32.mrf.mxu0
    %v1653 = vadd.f32 0.0, %v1652
    %v1654 = vpop.f32.mrf.mxu0
    %v1655 = vadd.f32 0.0, %v1654
    %1656 = vdwg.mxu0
    %v1659 = vcombine.low %v1653, %v1655
    %v1661 = vunpack.c.l.s4 1966171168
    %v1662 = vunpack.c.0.s8 %v1661
    %v1663 = vlaneseq
    %v1664 = vshrl.u32 %v1663, 7
    %v1665 = vsub.s32 %v1662, %v1664
    %v1666 = vrot.slane %v1659, %v1665
    %v1667 = vcombine.high %v1666, %v1666
    %v1669 = vunpack.c.l.s4 1966171168
    %v1670 = vunpack.c.0.s8 %v1669
    %v1671 = vlaneseq
    %v1672 = vshrl.u32 %v1671, 7
    %v1673 = vsub.s32 %v1670, %v1672
    %v1674 = vrot.slane %v1666, %v1673
    %v1676 = vunpack.c.l.s4 1966171168
    %v1677 = vunpack.c.0.s8 %v1676
    %v1678 = vlaneseq
    %v1679 = vshrl.u32 %v1678, 7
    %v1680 = vsub.s32 %v1677, %v1679
    %v1681 = vrot.slane %v1667, %v1680
    %v1684 = vadd.f32 %v1566, %v1674
    %v1685 = vadd.f32 %v1568, %v1681
    %v1686 = vxor.u32 %v1684, 2147483648
    %v1687 = vxor.u32 %v1685, 2147483648
    %v1688 = vmul.f32 %v1686, 1.442695
    %v1689 = vpow.pop %v1688
    %v1690 = vmul.f32 %v1687, 1.442695
    %v1691 = vpow.pop %v1690
    %v1692 = vadd.f32 %v1689, 1.0
    %v1693 = vadd.f32 %v1691, 1.0
    %v1694 = vrcp.pop %v1692
    %v1695 = vmul.f32 1.0, %v1694
    %v1696 = vrcp.pop %v1693
    %v1697 = vmul.f32 1.0, %v1696
    %1700 = vrot.lane.b32.xlu0 %v1684, 64
    %v1701 = vpop.permute.xlu0 %1700
    %1702 = vrot.lane.b32.xlu0 %v1685, 64
    %v1703 = vpop.permute.xlu0 %1702
    %v1704 = vrot.slane %v1701, 1
    %v1705 = vrot.slane %v1703, 1
    %v1708 = vtanh.pop %v1704
    %v1709 = vtanh.pop %v1705
    %v1710 = vmul.f32 %v1695, %v1521
    %v1711 = vmul.f32 %v1697, %v1522
    %v1712 = vmul.f32 %v1695, %v1708
    %v1713 = vmul.f32 %v1697, %v1709
    %1716 = vrot.lane.b32.xlu0 %v1712, 64
    %v1717 = vpop.permute.xlu0 %1716
    %1718 = vrot.lane.b32.xlu0 %v1713, 64
    %v1719 = vpop.permute.xlu0 %1718
    %v1722 = vadd.f32 %v1710, %v1717
    %v1723 = vadd.f32 %v1711, %v1719
    %v1724 = vtanh.pop %v1722
    %v1725 = vtanh.pop %v1723
    %v1728 = vrot.slane %v1695, 1
    %v1729 = vrot.slane %v1697, 1
    %1734 = vrot.lane.b32.xlu0 %v1724, 64
    %v1735 = vpop.permute.xlu0 %1734
    %1736 = vrot.lane.b32.xlu0 %v1725, 64
    %v1737 = vpop.permute.xlu0 %1736
    %v1740 = vmul.f32 %v1728, %v1735
    %v1741 = vmul.f32 %v1729, %v1737
    %1742 = vst.msk [vmem:[#allocation2 + $0x7] sm:$0x1] %vm331, %v1740
    %1743 = vst.msk [vmem:[#allocation2 + $0xf] sm:$0x1] %vm331, %v1741
    %1744 = vst.msk [vmem:[#allocation2] sm:$0x1] %vm334, %v1740
    %1745 = vst.msk [vmem:[#allocation2 + $0x8] sm:$0x1] %vm334, %v1741
    %v1748 = vlaneseq
    %v1749 = vshrl.u32 %v1748, 7
    %v1750 = vsub.s32 0, %v1749
    %v1751 = vrot.slane %v1740, %v1750
    %v1752 = vlaneseq
    %v1753 = vshrl.u32 %v1752, 7
    %v1754 = vsub.s32 0, %v1753
    %v1755 = vrot.slane %v1741, %v1754
    %1756 = vrot.lane.b32.xlu0 %v1751, 64
    %v1757 = vpop.permute.xlu0 %1756
    %1758 = vrot.lane.b32.xlu0 %v1755, 64
    %v1759 = vpop.permute.xlu0 %1758
    %1762 = vst.msk [vmem:[#allocation2] sm:$0x1] %vm353, %v1757
    %1763 = vst.msk [vmem:[#allocation2 + $0x8] sm:$0x1] %vm353, %v1759
    %1764 = vst.msk [vmem:[#allocation2 + $0x7] sm:$0x1] %vm356, %v1757
    %1765 = vst.msk [vmem:[#allocation2 + $0xf] sm:$0x1] %vm356, %v1759
    %v1766 = vld [vmem:[#allocation2] sm:$0xff]
    %v1767 = vld [vmem:[#allocation2 + $0x8] sm:$0xff]
    %v1768 = vld [vmem:[%s7] sm:$0xff]
    %v1769 = vld [vmem:[%s7 + $0x8] sm:$0xff]
    %v1770 = vld [vmem:[%s7 + $0x10] sm:$0xff]
    %v1771 = vld [vmem:[%s7 + $0x18] sm:$0xff]
    %v1772 = vld [vmem:[%s7 + $0x20] sm:$0xff]
    %v1773 = vld [vmem:[%s7 + $0x28] sm:$0xff]
    %v1774 = vld [vmem:[%s7 + $0x30] sm:$0xff]
    %v1775 = vld [vmem:[%s7 + $0x38] sm:$0xff]
    %v1776 = vld [vmem:[%s7 + $0x40] sm:$0xff]
    %v1777 = vld [vmem:[%s7 + $0x48] sm:$0xff]
    %v1778 = vld [vmem:[%s7 + $0x50] sm:$0xff]
    %v1779 = vld [vmem:[%s7 + $0x58] sm:$0xff]
    %v1780 = vld [vmem:[%s7 + $0x60] sm:$0xff]
    %v1781 = vld [vmem:[%s7 + $0x68] sm:$0xff]
    %v1782 = vld [vmem:[%s7 + $0x70] sm:$0xff]
    %v1783 = vld [vmem:[%s7 + $0x78] sm:$0xff]
    %v1784 = vld [vmem:[%s7 + $0x80] sm:$0xff]
    %v1785 = vld [vmem:[%s7 + $0x88] sm:$0xff]
    %v1786 = vld [vmem:[%s7 + $0x90] sm:$0xff]
    %v1787 = vld [vmem:[%s7 + $0x98] sm:$0xff]
    %v1788 = vld [vmem:[%s7 + $0xa0] sm:$0xff]
    %v1789 = vld [vmem:[%s7 + $0xa8] sm:$0xff]
    %v1790 = vld [vmem:[%s7 + $0xb0] sm:$0xff]
    %v1791 = vld [vmem:[%s7 + $0xb8] sm:$0xff]
    %v1792 = vld [vmem:[%s7 + $0xc0] sm:$0xff]
    %v1793 = vld [vmem:[%s7 + $0xc8] sm:$0xff]
    %v1794 = vld [vmem:[%s7 + $0xd0] sm:$0xff]
    %v1795 = vld [vmem:[%s7 + $0xd8] sm:$0xff]
    %v1796 = vld [vmem:[%s7 + $0xe0] sm:$0xff]
    %v1797 = vld [vmem:[%s7 + $0xe8] sm:$0xff]
    %v1798 = vld [vmem:[%s7 + $0xf0] sm:$0xff]
    %v1799 = vld [vmem:[%s7 + $0xf8] sm:$0xff]
    %v1800 = vld [vmem:[%s8] sm:$0x3]
    %v1802 = vlaneseq
    %v1803 = vshrl.u32 %v1802, 7
    %v1804 = vsub.s32 0, %v1803
    %v1805 = vrot.slane %v1800, %v1804
    %v1806 = vlaneseq
    %v1807 = vshrl.u32 %v1806, 7
    %v1808 = vsub.s32 1, %v1807
    %v1809 = vrot.slane %v1800, %v1808
    %1812 = vmatprep.subr.mxu0 %v1799
    %1813 = vmatpush1.msra.mxu0 %v1798
    %1814 = vmatprep.subr.mxu0 %v1797
    %1815 = vmatpush1.msra.mxu0 %v1796
    %1816 = vmatprep.subr.mxu0 %v1795
    %1817 = vmatpush1.msra.mxu0 %v1794
    %1818 = vmatprep.subr.mxu0 %v1793
    %1819 = vmatpush1.msra.mxu0 %v1792
    %1820 = vmatprep.subr.mxu0 %v1791
    %1821 = vmatpush1.msra.mxu0 %v1790
    %1822 = vmatprep.subr.mxu0 %v1789
    %1823 = vmatpush1.msra.mxu0 %v1788
    %1824 = vmatprep.subr.mxu0 %v1787
    %1825 = vmatpush1.msra.mxu0 %v1786
    %1826 = vmatprep.subr.mxu0 %v1785
    %1827 = vmatpush1.msra.mxu0 %v1784
    %1828 = vmatprep.subr.mxu0 %v1783
    %1829 = vmatpush1.msra.mxu0 %v1782
    %1830 = vmatprep.subr.mxu0 %v1781
    %1831 = vmatpush1.msra.mxu0 %v1780
    %1832 = vmatprep.subr.mxu0 %v1779
    %1833 = vmatpush1.msra.mxu0 %v1778
    %1834 = vmatprep.subr.mxu0 %v1777
    %1835 = vmatpush1.msra.mxu0 %v1776
    %1836 = vmatprep.subr.mxu0 %v1775
    %1837 = vmatpush1.msra.mxu0 %v1774
    %1838 = vmatprep.subr.mxu0 %v1773
    %1839 = vmatpush1.msra.mxu0 %v1772
    %1840 = vmatprep.subr.mxu0 %v1771
    %1841 = vmatpush1.msra.mxu0 %v1770
    %1842 = vmatprep.subr.mxu0 %v1769
    %1843 = vmatpush1.msra.mxu0 %v1768
    %1844 = vmatprep.subr.mxu0 0.0
    %1845 = vmatpush2.msra.mxu0 0.0
    %1846 = vmatprep.subr.mxu0 0.0
    %1847 = vmatpush2.msra.mxu0 0.0
    %1848 = vmatprep.subr.mxu0 0.0
    %1849 = vmatpush2.msra.mxu0 0.0
    %1850 = vmatprep.subr.mxu0 0.0
    %1851 = vmatpush2.msra.mxu0 0.0
    %1852 = vmatprep.subr.mxu0 0.0
    %1853 = vmatpush2.msra.mxu0 0.0
    %1854 = vmatprep.subr.mxu0 0.0
    %1855 = vmatpush2.msra.mxu0 0.0
    %1856 = vmatprep.subr.mxu0 0.0
    %1857 = vmatpush2.msra.mxu0 0.0
    %1858 = vmatprep.subr.mxu0 0.0
    %1859 = vmatpush2.msra.mxu0 0.0
    %1860 = vmatprep.subr.mxu0 0.0
    %1861 = vmatpush2.msra.mxu0 0.0
    %1862 = vmatprep.subr.mxu0 0.0
    %1863 = vmatpush2.msra.mxu0 0.0
    %1864 = vmatprep.subr.mxu0 0.0
    %1865 = vmatpush2.msra.mxu0 0.0
    %1866 = vmatprep.subr.mxu0 0.0
    %1867 = vmatpush2.msra.mxu0 0.0
    %1868 = vmatprep.subr.mxu0 0.0
    %1869 = vmatpush2.msra.mxu0 0.0
    %1870 = vmatprep.subr.mxu0 0.0
    %1871 = vmatpush2.msra.mxu0 0.0
    %1872 = vmatprep.subr.mxu0 0.0
    %1873 = vmatpush2.msra.mxu0 0.0
    %1874 = vmatprep.subr.mxu0 0.0
    %1875 = vmatpush2.msra.mxu0 0.0
    %1876 = vmatprep.mubr.f32.mxu0 0.0
    %1877 = vmatmul.mubr.f32.gmra.mxu0 %v1766
    %v1878 = vpop.f32.mrf.mxu0
    %v1879 = vadd.f32 %v1805, %v1878
    %v1880 = vpop.f32.mrf.mxu0
    %v1881 = vadd.f32 %v1809, %v1880
    %1882 = vmatprep.mubr.f32.mxu0 0.0
    %1883 = vmatmul.mubr.f32.gmra.mxu0 %v1767
    %v1884 = vpop.f32.mrf.mxu0
    %v1885 = vadd.f32 %v1805, %v1884
    %v1886 = vpop.f32.mrf.mxu0
    %v1887 = vadd.f32 %v1809, %v1886
    %1888 = vdwg.mxu0
    %1889 = vst [vmem:[#allocation4] sm:$0xff] %v1879
    %1890 = vst [vmem:[#allocation4 + $0x8] sm:$0xff] %v1881
    %1891 = vst [vmem:[#allocation4 + $0x10] sm:$0xff] %v1885
    %1892 = vst [vmem:[#allocation4 + $0x18] sm:$0xff] %v1887
    %v1893 = vld [vmem:[%s9] sm:$0xff]
    %v1894 = vld [vmem:[%s9 + $0x8] sm:$0xff]
    %v1895 = vld [vmem:[%s9 + $0x10] sm:$0xff]
    %v1896 = vld [vmem:[%s9 + $0x18] sm:$0xff]
    %v1897 = vld [vmem:[%s9 + $0x20] sm:$0xff]
    %v1898 = vld [vmem:[%s9 + $0x28] sm:$0xff]
    %v1899 = vld [vmem:[%s9 + $0x30] sm:$0xff]
    %v1900 = vld [vmem:[%s9 + $0x38] sm:$0xff]
    %v1901 = vld [vmem:[%s9 + $0x40] sm:$0xff]
    %v1902 = vld [vmem:[%s9 + $0x48] sm:$0xff]
    %v1903 = vld [vmem:[%s9 + $0x50] sm:$0xff]
    %v1904 = vld [vmem:[%s9 + $0x58] sm:$0xff]
    %v1905 = vld [vmem:[%s9 + $0x60] sm:$0xff]
    %v1906 = vld [vmem:[%s9 + $0x68] sm:$0xff]
    %v1907 = vld [vmem:[%s9 + $0x70] sm:$0xff]
    %v1908 = vld [vmem:[%s9 + $0x78] sm:$0xff]
    %v1909 = vld [vmem:[#allocation4] ss:$8 sm:$0x3]
    %v1910 = vld [vmem:[%s169] ss:$8 sm:$0x3]
    %1911 = vmatprep.subr.mxu0 0.0
    %1912 = vmatpush1.msra.mxu0 0.0
    %1913 = vmatprep.subr.mxu0 0.0
    %1914 = vmatpush1.msra.mxu0 0.0
    %1915 = vmatprep.subr.mxu0 0.0
    %1916 = vmatpush1.msra.mxu0 0.0
    %1917 = vmatprep.subr.mxu0 0.0
    %1918 = vmatpush1.msra.mxu0 0.0
    %1919 = vmatprep.subr.mxu0 0.0
    %1920 = vmatpush1.msra.mxu0 0.0
    %1921 = vmatprep.subr.mxu0 0.0
    %1922 = vmatpush1.msra.mxu0 0.0
    %1923 = vmatprep.subr.mxu0 0.0
    %1924 = vmatpush1.msra.mxu0 0.0
    %1925 = vmatprep.subr.mxu0 0.0
    %1926 = vmatpush1.msra.mxu0 0.0
    %1927 = vmatprep.subr.mxu0 %v1908
    %1928 = vmatpush1.msra.mxu0 %v1907
    %1929 = vmatprep.subr.mxu0 %v1906
    %1930 = vmatpush1.msra.mxu0 %v1905
    %1931 = vmatprep.subr.mxu0 %v1904
    %1932 = vmatpush1.msra.mxu0 %v1903
    %1933 = vmatprep.subr.mxu0 %v1902
    %1934 = vmatpush1.msra.mxu0 %v1901
    %1935 = vmatprep.subr.mxu0 %v1900
    %1936 = vmatpush1.msra.mxu0 %v1899
    %1937 = vmatprep.subr.mxu0 %v1898
    %1938 = vmatpush1.msra.mxu0 %v1897
    %1939 = vmatprep.subr.mxu0 %v1896
    %1940 = vmatpush1.msra.mxu0 %v1895
    %1941 = vmatprep.subr.mxu0 %v1894
    %1942 = vmatpush1.msra.mxu0 %v1893
    %1943 = vmatprep.subr.mxu0 0.0
    %1944 = vmatpush2.msra.mxu0 0.0
    %1945 = vmatprep.subr.mxu0 0.0
    %1946 = vmatpush2.msra.mxu0 0.0
    %1947 = vmatprep.subr.mxu0 0.0
    %1948 = vmatpush2.msra.mxu0 0.0
    %1949 = vmatprep.subr.mxu0 0.0
    %1950 = vmatpush2.msra.mxu0 0.0
    %1951 = vmatprep.subr.mxu0 0.0
    %1952 = vmatpush2.msra.mxu0 0.0
    %1953 = vmatprep.subr.mxu0 0.0
    %1954 = vmatpush2.msra.mxu0 0.0
    %1955 = vmatprep.subr.mxu0 0.0
    %1956 = vmatpush2.msra.mxu0 0.0
    %1957 = vmatprep.subr.mxu0 0.0
    %1958 = vmatpush2.msra.mxu0 0.0
    %1959 = vmatprep.subr.mxu0 0.0
    %1960 = vmatpush2.msra.mxu0 0.0
    %1961 = vmatprep.subr.mxu0 0.0
    %1962 = vmatpush2.msra.mxu0 0.0
    %1963 = vmatprep.subr.mxu0 0.0
    %1964 = vmatpush2.msra.mxu0 0.0
    %1965 = vmatprep.subr.mxu0 0.0
    %1966 = vmatpush2.msra.mxu0 0.0
    %1967 = vmatprep.subr.mxu0 0.0
    %1968 = vmatpush2.msra.mxu0 0.0
    %1969 = vmatprep.subr.mxu0 0.0
    %1970 = vmatpush2.msra.mxu0 0.0
    %1971 = vmatprep.subr.mxu0 0.0
    %1972 = vmatpush2.msra.mxu0 0.0
    %1973 = vmatprep.subr.mxu0 0.0
    %1974 = vmatpush2.msra.mxu0 0.0
    %1975 = vmatprep.mubr.f32.mxu0 0.0
    %1976 = vmatmul.mubr.f32.gmra.mxu0 %v173
    %v1977 = vpop.f32.mrf.mxu0
    %v1978 = vadd.f32 0.0, %v1977
    %v1979 = vpop.f32.mrf.mxu0
    %v1980 = vadd.f32 0.0, %v1979
    %1981 = vdwg.mxu0
    %v1984 = vcombine.low %v1978, %v1980
    %v1986 = vunpack.c.l.s4 1966171168
    %v1987 = vunpack.c.0.s8 %v1986
    %v1988 = vlaneseq
    %v1989 = vshrl.u32 %v1988, 7
    %v1990 = vsub.s32 %v1987, %v1989
    %v1991 = vrot.slane %v1984, %v1990
    %v1992 = vcombine.high %v1991, %v1991
    %v1994 = vunpack.c.l.s4 1966171168
    %v1995 = vunpack.c.0.s8 %v1994
    %v1996 = vlaneseq
    %v1997 = vshrl.u32 %v1996, 7
    %v1998 = vsub.s32 %v1995, %v1997
    %v1999 = vrot.slane %v1991, %v1998
    %v2001 = vunpack.c.l.s4 1966171168
    %v2002 = vunpack.c.0.s8 %v2001
    %v2003 = vlaneseq
    %v2004 = vshrl.u32 %v2003, 7
    %v2005 = vsub.s32 %v2002, %v2004
    %v2006 = vrot.slane %v1992, %v2005
    %v2009 = vadd.f32 %v1909, %v1999
    %v2010 = vadd.f32 %v1910, %v2006
    %v2011 = vxor.u32 %v2009, 2147483648
    %v2012 = vxor.u32 %v2010, 2147483648
    %v2013 = vmul.f32 %v2011, 1.442695
    %v2014 = vpow.pop %v2013
    %v2015 = vmul.f32 %v2012, 1.442695
    %v2016 = vpow.pop %v2015
    %v2017 = vadd.f32 %v2014, 1.0
    %v2018 = vadd.f32 %v2016, 1.0
    %v2019 = vrcp.pop %v2017
    %v2020 = vmul.f32 1.0, %v2019
    %v2021 = vrcp.pop %v2018
    %v2022 = vmul.f32 1.0, %v2021
    %2025 = vrot.lane.b32.xlu0 %v2009, 64
    %v2026 = vpop.permute.xlu0 %2025
    %2027 = vrot.lane.b32.xlu0 %v2010, 64
    %v2028 = vpop.permute.xlu0 %2027
    %v2029 = vrot.slane %v2026, 1
    %v2030 = vrot.slane %v2028, 1
    %v2033 = vtanh.pop %v2029
    %v2034 = vtanh.pop %v2030
    %v2035 = vmul.f32 %v2020, 0.0
    %v2036 = vmul.f32 %v2022, 0.0
    %v2037 = vmul.f32 %v2020, %v2033
    %v2038 = vmul.f32 %v2022, %v2034
    %2041 = vrot.lane.b32.xlu0 %v2037, 64
    %v2042 = vpop.permute.xlu0 %2041
    %2043 = vrot.lane.b32.xlu0 %v2038, 64
    %v2044 = vpop.permute.xlu0 %2043
    %v2047 = vadd.f32 %v2035, %v2042
    %v2048 = vadd.f32 %v2036, %v2044
    %v2049 = vtanh.pop %v2047
    %v2050 = vtanh.pop %v2048
    %v2053 = vrot.slane %v2020, 1
    %v2054 = vrot.slane %v2022, 1
    %2059 = vrot.lane.b32.xlu0 %v2049, 64
    %v2060 = vpop.permute.xlu0 %2059
    %2061 = vrot.lane.b32.xlu0 %v2050, 64
    %v2062 = vpop.permute.xlu0 %2061
    %v2065 = vmul.f32 %v2053, %v2060
    %v2066 = vmul.f32 %v2054, %v2062
    %2067 = vst.msk [vmem:[#allocation3] sm:$0x1] %vm331, %v2065
    %2068 = vst.msk [vmem:[#allocation3 + $0x8] sm:$0x1] %vm331, %v2066
    %2069 = vst.msk [vmem:[#allocation3 + $0x7] sm:$0x1] %vm334, %v2065
    %2070 = vst.msk [vmem:[#allocation3 + $0xf] sm:$0x1] %vm334, %v2066
    %v2071 = vld [vmem:[%s359] ss:$8 sm:$0x3]
    %v2072 = vld [vmem:[%s361] ss:$8 sm:$0x3]
    %v2075 = vcombine.low %v2065, %v2066
    %v2077 = vunpack.c.l.s4 1966171168
    %v2078 = vunpack.c.0.s8 %v2077
    %v2079 = vlaneseq
    %v2080 = vshrl.u32 %v2079, 7
    %v2081 = vsub.s32 %v2078, %v2080
    %v2082 = vrot.slane %v2075, %v2081
    %v2084 = vunpack.c.l.s4 1966171168
    %v2085 = vunpack.c.0.s8 %v2084
    %v2086 = vlaneseq
    %v2087 = vshrl.u32 %v2086, 7
    %v2088 = vsub.s32 %v2085, %v2087
    %v2089 = vrot.slane %v2082, %v2088
    %v2090 = vsel %vm171, %v2089, 0
    %2092 = vmatprep.subr.mxu0 0.0
    %2093 = vmatpush1.msra.mxu0 0.0
    %2094 = vmatprep.subr.mxu0 0.0
    %2095 = vmatpush1.msra.mxu0 0.0
    %2096 = vmatprep.subr.mxu0 0.0
    %2097 = vmatpush1.msra.mxu0 0.0
    %2098 = vmatprep.subr.mxu0 0.0
    %2099 = vmatpush1.msra.mxu0 0.0
    %2100 = vmatprep.subr.mxu0 0.0
    %2101 = vmatpush1.msra.mxu0 0.0
    %2102 = vmatprep.subr.mxu0 0.0
    %2103 = vmatpush1.msra.mxu0 0.0
    %2104 = vmatprep.subr.mxu0 0.0
    %2105 = vmatpush1.msra.mxu0 0.0
    %2106 = vmatprep.subr.mxu0 0.0
    %2107 = vmatpush1.msra.mxu0 0.0
    %2108 = vmatprep.subr.mxu0 %v1908
    %2109 = vmatpush1.msra.mxu0 %v1907
    %2110 = vmatprep.subr.mxu0 %v1906
    %2111 = vmatpush1.msra.mxu0 %v1905
    %2112 = vmatprep.subr.mxu0 %v1904
    %2113 = vmatpush1.msra.mxu0 %v1903
    %2114 = vmatprep.subr.mxu0 %v1902
    %2115 = vmatpush1.msra.mxu0 %v1901
    %2116 = vmatprep.subr.mxu0 %v1900
    %2117 = vmatpush1.msra.mxu0 %v1899
    %2118 = vmatprep.subr.mxu0 %v1898
    %2119 = vmatpush1.msra.mxu0 %v1897
    %2120 = vmatprep.subr.mxu0 %v1896
    %2121 = vmatpush1.msra.mxu0 %v1895
    %2122 = vmatprep.subr.mxu0 %v1894
    %2123 = vmatpush1.msra.mxu0 %v1893
    %2124 = vmatprep.subr.mxu0 0.0
    %2125 = vmatpush2.msra.mxu0 0.0
    %2126 = vmatprep.subr.mxu0 0.0
    %2127 = vmatpush2.msra.mxu0 0.0
    %2128 = vmatprep.subr.mxu0 0.0
    %2129 = vmatpush2.msra.mxu0 0.0
    %2130 = vmatprep.subr.mxu0 0.0
    %2131 = vmatpush2.msra.mxu0 0.0
    %2132 = vmatprep.subr.mxu0 0.0
    %2133 = vmatpush2.msra.mxu0 0.0
    %2134 = vmatprep.subr.mxu0 0.0
    %2135 = vmatpush2.msra.mxu0 0.0
    %2136 = vmatprep.subr.mxu0 0.0
    %2137 = vmatpush2.msra.mxu0 0.0
    %2138 = vmatprep.subr.mxu0 0.0
    %2139 = vmatpush2.msra.mxu0 0.0
    %2140 = vmatprep.subr.mxu0 0.0
    %2141 = vmatpush2.msra.mxu0 0.0
    %2142 = vmatprep.subr.mxu0 0.0
    %2143 = vmatpush2.msra.mxu0 0.0
    %2144 = vmatprep.subr.mxu0 0.0
    %2145 = vmatpush2.msra.mxu0 0.0
    %2146 = vmatprep.subr.mxu0 0.0
    %2147 = vmatpush2.msra.mxu0 0.0
    %2148 = vmatprep.subr.mxu0 0.0
    %2149 = vmatpush2.msra.mxu0 0.0
    %2150 = vmatprep.subr.mxu0 0.0
    %2151 = vmatpush2.msra.mxu0 0.0
    %2152 = vmatprep.subr.mxu0 0.0
    %2153 = vmatpush2.msra.mxu0 0.0
    %2154 = vmatprep.subr.mxu0 0.0
    %2155 = vmatpush2.msra.mxu0 0.0
    %2156 = vmatprep.mubr.f32.mxu0 0.0
    %2157 = vmatmul.mubr.f32.gmra.mxu0 %v2090
    %v2158 = vpop.f32.mrf.mxu0
    %v2159 = vadd.f32 0.0, %v2158
    %v2160 = vpop.f32.mrf.mxu0
    %v2161 = vadd.f32 0.0, %v2160
    %2162 = vdwg.mxu0
    %v2165 = vcombine.low %v2159, %v2161
    %v2167 = vunpack.c.l.s4 1966171168
    %v2168 = vunpack.c.0.s8 %v2167
    %v2169 = vlaneseq
    %v2170 = vshrl.u32 %v2169, 7
    %v2171 = vsub.s32 %v2168, %v2170
    %v2172 = vrot.slane %v2165, %v2171
    %v2173 = vcombine.high %v2172, %v2172
    %v2175 = vunpack.c.l.s4 1966171168
    %v2176 = vunpack.c.0.s8 %v2175
    %v2177 = vlaneseq
    %v2178 = vshrl.u32 %v2177, 7
    %v2179 = vsub.s32 %v2176, %v2178
    %v2180 = vrot.slane %v2172, %v2179
    %v2182 = vunpack.c.l.s4 1966171168
    %v2183 = vunpack.c.0.s8 %v2182
    %v2184 = vlaneseq
    %v2185 = vshrl.u32 %v2184, 7
    %v2186 = vsub.s32 %v2183, %v2185
    %v2187 = vrot.slane %v2173, %v2186
    %v2190 = vadd.f32 %v2071, %v2180
    %v2191 = vadd.f32 %v2072, %v2187
    %v2192 = vxor.u32 %v2190, 2147483648
    %v2193 = vxor.u32 %v2191, 2147483648
    %v2194 = vmul.f32 %v2192, 1.442695
    %v2195 = vpow.pop %v2194
    %v2196 = vmul.f32 %v2193, 1.442695
    %v2197 = vpow.pop %v2196
    %v2198 = vadd.f32 %v2195, 1.0
    %v2199 = vadd.f32 %v2197, 1.0
    %v2200 = vrcp.pop %v2198
    %v2201 = vmul.f32 1.0, %v2200
    %v2202 = vrcp.pop %v2199
    %v2203 = vmul.f32 1.0, %v2202
    %2206 = vrot.lane.b32.xlu0 %v2190, 64
    %v2207 = vpop.permute.xlu0 %2206
    %2208 = vrot.lane.b32.xlu0 %v2191, 64
    %v2209 = vpop.permute.xlu0 %2208
    %v2210 = vrot.slane %v2207, 1
    %v2211 = vrot.slane %v2209, 1
    %v2214 = vtanh.pop %v2210
    %v2215 = vtanh.pop %v2211
    %v2216 = vmul.f32 %v2201, %v2047
    %v2217 = vmul.f32 %v2203, %v2048
    %v2218 = vmul.f32 %v2201, %v2214
    %v2219 = vmul.f32 %v2203, %v2215
    %2222 = vrot.lane.b32.xlu0 %v2218, 64
    %v2223 = vpop.permute.xlu0 %2222
    %2224 = vrot.lane.b32.xlu0 %v2219, 64
    %v2225 = vpop.permute.xlu0 %2224
    %v2228 = vadd.f32 %v2216, %v2223
    %v2229 = vadd.f32 %v2217, %v2225
    %v2230 = vtanh.pop %v2228
    %v2231 = vtanh.pop %v2229
    %v2234 = vrot.slane %v2201, 1
    %v2235 = vrot.slane %v2203, 1
    %2240 = vrot.lane.b32.xlu0 %v2230, 64
    %v2241 = vpop.permute.xlu0 %2240
    %2242 = vrot.lane.b32.xlu0 %v2231, 64
    %v2243 = vpop.permute.xlu0 %2242
    %v2246 = vmul.f32 %v2234, %v2241
    %v2247 = vmul.f32 %v2235, %v2243
    %2248 = vst.msk [vmem:[#allocation3 + $0x1] sm:$0x1] %vm331, %v2246
    %2249 = vst.msk [vmem:[#allocation3 + $0x9] sm:$0x1] %vm331, %v2247
    %2250 = vst.msk [vmem:[#allocation3 + $0x6] sm:$0x1] %vm334, %v2246
    %2251 = vst.msk [vmem:[#allocation3 + $0xe] sm:$0x1] %vm334, %v2247
    %v2252 = vld [vmem:[%s560] ss:$8 sm:$0x3]
    %v2253 = vld [vmem:[%s562] ss:$8 sm:$0x3]
    %v2256 = vcombine.low %v2246, %v2247
    %v2258 = vunpack.c.l.s4 1966171168
    %v2259 = vunpack.c.0.s8 %v2258
    %v2260 = vlaneseq
    %v2261 = vshrl.u32 %v2260, 7
    %v2262 = vsub.s32 %v2259, %v2261
    %v2263 = vrot.slane %v2256, %v2262
    %v2265 = vunpack.c.l.s4 1966171168
    %v2266 = vunpack.c.0.s8 %v2265
    %v2267 = vlaneseq
    %v2268 = vshrl.u32 %v2267, 7
    %v2269 = vsub.s32 %v2266, %v2268
    %v2270 = vrot.slane %v2263, %v2269
    %v2271 = vsel %vm171, %v2270, 0
    %2273 = vmatprep.subr.mxu0 0.0
    %2274 = vmatpush1.msra.mxu0 0.0
    %2275 = vmatprep.subr.mxu0 0.0
    %2276 = vmatpush1.msra.mxu0 0.0
    %2277 = vmatprep.subr.mxu0 0.0
    %2278 = vmatpush1.msra.mxu0 0.0
    %2279 = vmatprep.subr.mxu0 0.0
    %2280 = vmatpush1.msra.mxu0 0.0
    %2281 = vmatprep.subr.mxu0 0.0
    %2282 = vmatpush1.msra.mxu0 0.0
    %2283 = vmatprep.subr.mxu0 0.0
    %2284 = vmatpush1.msra.mxu0 0.0
    %2285 = vmatprep.subr.mxu0 0.0
    %2286 = vmatpush1.msra.mxu0 0.0
    %2287 = vmatprep.subr.mxu0 0.0
    %2288 = vmatpush1.msra.mxu0 0.0
    %2289 = vmatprep.subr.mxu0 %v1908
    %2290 = vmatpush1.msra.mxu0 %v1907
    %2291 = vmatprep.subr.mxu0 %v1906
    %2292 = vmatpush1.msra.mxu0 %v1905
    %2293 = vmatprep.subr.mxu0 %v1904
    %2294 = vmatpush1.msra.mxu0 %v1903
    %2295 = vmatprep.subr.mxu0 %v1902
    %2296 = vmatpush1.msra.mxu0 %v1901
    %2297 = vmatprep.subr.mxu0 %v1900
    %2298 = vmatpush1.msra.mxu0 %v1899
    %2299 = vmatprep.subr.mxu0 %v1898
    %2300 = vmatpush1.msra.mxu0 %v1897
    %2301 = vmatprep.subr.mxu0 %v1896
    %2302 = vmatpush1.msra.mxu0 %v1895
    %2303 = vmatprep.subr.mxu0 %v1894
    %2304 = vmatpush1.msra.mxu0 %v1893
    %2305 = vmatprep.subr.mxu0 0.0
    %2306 = vmatpush2.msra.mxu0 0.0
    %2307 = vmatprep.subr.mxu0 0.0
    %2308 = vmatpush2.msra.mxu0 0.0
    %2309 = vmatprep.subr.mxu0 0.0
    %2310 = vmatpush2.msra.mxu0 0.0
    %2311 = vmatprep.subr.mxu0 0.0
    %2312 = vmatpush2.msra.mxu0 0.0
    %2313 = vmatprep.subr.mxu0 0.0
    %2314 = vmatpush2.msra.mxu0 0.0
    %2315 = vmatprep.subr.mxu0 0.0
    %2316 = vmatpush2.msra.mxu0 0.0
    %2317 = vmatprep.subr.mxu0 0.0
    %2318 = vmatpush2.msra.mxu0 0.0
    %2319 = vmatprep.subr.mxu0 0.0
    %2320 = vmatpush2.msra.mxu0 0.0
    %2321 = vmatprep.subr.mxu0 0.0
    %2322 = vmatpush2.msra.mxu0 0.0
    %2323 = vmatprep.subr.mxu0 0.0
    %2324 = vmatpush2.msra.mxu0 0.0
    %2325 = vmatprep.subr.mxu0 0.0
    %2326 = vmatpush2.msra.mxu0 0.0
    %2327 = vmatprep.subr.mxu0 0.0
    %2328 = vmatpush2.msra.mxu0 0.0
    %2329 = vmatprep.subr.mxu0 0.0
    %2330 = vmatpush2.msra.mxu0 0.0
    %2331 = vmatprep.subr.mxu0 0.0
    %2332 = vmatpush2.msra.mxu0 0.0
    %2333 = vmatprep.subr.mxu0 0.0
    %2334 = vmatpush2.msra.mxu0 0.0
    %2335 = vmatprep.subr.mxu0 0.0
    %2336 = vmatpush2.msra.mxu0 0.0
    %2337 = vmatprep.mubr.f32.mxu0 0.0
    %2338 = vmatmul.mubr.f32.gmra.mxu0 %v2271
    %v2339 = vpop.f32.mrf.mxu0
    %v2340 = vadd.f32 0.0, %v2339
    %v2341 = vpop.f32.mrf.mxu0
    %v2342 = vadd.f32 0.0, %v2341
    %2343 = vdwg.mxu0
    %v2346 = vcombine.low %v2340, %v2342
    %v2348 = vunpack.c.l.s4 1966171168
    %v2349 = vunpack.c.0.s8 %v2348
    %v2350 = vlaneseq
    %v2351 = vshrl.u32 %v2350, 7
    %v2352 = vsub.s32 %v2349, %v2351
    %v2353 = vrot.slane %v2346, %v2352
    %v2354 = vcombine.high %v2353, %v2353
    %v2356 = vunpack.c.l.s4 1966171168
    %v2357 = vunpack.c.0.s8 %v2356
    %v2358 = vlaneseq
    %v2359 = vshrl.u32 %v2358, 7
    %v2360 = vsub.s32 %v2357, %v2359
    %v2361 = vrot.slane %v2353, %v2360
    %v2363 = vunpack.c.l.s4 1966171168
    %v2364 = vunpack.c.0.s8 %v2363
    %v2365 = vlaneseq
    %v2366 = vshrl.u32 %v2365, 7
    %v2367 = vsub.s32 %v2364, %v2366
    %v2368 = vrot.slane %v2354, %v2367
    %v2371 = vadd.f32 %v2252, %v2361
    %v2372 = vadd.f32 %v2253, %v2368
    %v2373 = vxor.u32 %v2371, 2147483648
    %v2374 = vxor.u32 %v2372, 2147483648
    %v2375 = vmul.f32 %v2373, 1.442695
    %v2376 = vpow.pop %v2375
    %v2377 = vmul.f32 %v2374, 1.442695
    %v2378 = vpow.pop %v2377
    %v2379 = vadd.f32 %v2376, 1.0
    %v2380 = vadd.f32 %v2378, 1.0
    %v2381 = vrcp.pop %v2379
    %v2382 = vmul.f32 1.0, %v2381
    %v2383 = vrcp.pop %v2380
    %v2384 = vmul.f32 1.0, %v2383
    %2387 = vrot.lane.b32.xlu0 %v2371, 64
    %v2388 = vpop.permute.xlu0 %2387
    %2389 = vrot.lane.b32.xlu0 %v2372, 64
    %v2390 = vpop.permute.xlu0 %2389
    %v2391 = vrot.slane %v2388, 1
    %v2392 = vrot.slane %v2390, 1
    %v2395 = vtanh.pop %v2391
    %v2396 = vtanh.pop %v2392
    %v2397 = vmul.f32 %v2382, %v2228
    %v2398 = vmul.f32 %v2384, %v2229
    %v2399 = vmul.f32 %v2382, %v2395
    %v2400 = vmul.f32 %v2384, %v2396
    %2403 = vrot.lane.b32.xlu0 %v2399, 64
    %v2404 = vpop.permute.xlu0 %2403
    %2405 = vrot.lane.b32.xlu0 %v2400, 64
    %v2406 = vpop.permute.xlu0 %2405
    %v2409 = vadd.f32 %v2397, %v2404
    %v2410 = vadd.f32 %v2398, %v2406
    %v2411 = vtanh.pop %v2409
    %v2412 = vtanh.pop %v2410
    %v2415 = vrot.slane %v2382, 1
    %v2416 = vrot.slane %v2384, 1
    %2421 = vrot.lane.b32.xlu0 %v2411, 64
    %v2422 = vpop.permute.xlu0 %2421
    %2423 = vrot.lane.b32.xlu0 %v2412, 64
    %v2424 = vpop.permute.xlu0 %2423
    %v2427 = vmul.f32 %v2415, %v2422
    %v2428 = vmul.f32 %v2416, %v2424
    %2429 = vst.msk [vmem:[#allocation3 + $0x2] sm:$0x1] %vm331, %v2427
    %2430 = vst.msk [vmem:[#allocation3 + $0xa] sm:$0x1] %vm331, %v2428
    %2431 = vst.msk [vmem:[#allocation3 + $0x5] sm:$0x1] %vm334, %v2427
    %2432 = vst.msk [vmem:[#allocation3 + $0xd] sm:$0x1] %vm334, %v2428
    %v2433 = vld [vmem:[%s761] ss:$8 sm:$0x3]
    %v2434 = vld [vmem:[%s763] ss:$8 sm:$0x3]
    %v2437 = vcombine.low %v2427, %v2428
    %v2439 = vunpack.c.l.s4 1966171168
    %v2440 = vunpack.c.0.s8 %v2439
    %v2441 = vlaneseq
    %v2442 = vshrl.u32 %v2441, 7
    %v2443 = vsub.s32 %v2440, %v2442
    %v2444 = vrot.slane %v2437, %v2443
    %v2446 = vunpack.c.l.s4 1966171168
    %v2447 = vunpack.c.0.s8 %v2446
    %v2448 = vlaneseq
    %v2449 = vshrl.u32 %v2448, 7
    %v2450 = vsub.s32 %v2447, %v2449
    %v2451 = vrot.slane %v2444, %v2450
    %v2452 = vsel %vm171, %v2451, 0
    %2454 = vmatprep.subr.mxu0 0.0
    %2455 = vmatpush1.msra.mxu0 0.0
    %2456 = vmatprep.subr.mxu0 0.0
    %2457 = vmatpush1.msra.mxu0 0.0
    %2458 = vmatprep.subr.mxu0 0.0
    %2459 = vmatpush1.msra.mxu0 0.0
    %2460 = vmatprep.subr.mxu0 0.0
    %2461 = vmatpush1.msra.mxu0 0.0
    %2462 = vmatprep.subr.mxu0 0.0
    %2463 = vmatpush1.msra.mxu0 0.0
    %2464 = vmatprep.subr.mxu0 0.0
    %2465 = vmatpush1.msra.mxu0 0.0
    %2466 = vmatprep.subr.mxu0 0.0
    %2467 = vmatpush1.msra.mxu0 0.0
    %2468 = vmatprep.subr.mxu0 0.0
    %2469 = vmatpush1.msra.mxu0 0.0
    %2470 = vmatprep.subr.mxu0 %v1908
    %2471 = vmatpush1.msra.mxu0 %v1907
    %2472 = vmatprep.subr.mxu0 %v1906
    %2473 = vmatpush1.msra.mxu0 %v1905
    %2474 = vmatprep.subr.mxu0 %v1904
    %2475 = vmatpush1.msra.mxu0 %v1903
    %2476 = vmatprep.subr.mxu0 %v1902
    %2477 = vmatpush1.msra.mxu0 %v1901
    %2478 = vmatprep.subr.mxu0 %v1900
    %2479 = vmatpush1.msra.mxu0 %v1899
    %2480 = vmatprep.subr.mxu0 %v1898
    %2481 = vmatpush1.msra.mxu0 %v1897
    %2482 = vmatprep.subr.mxu0 %v1896
    %2483 = vmatpush1.msra.mxu0 %v1895
    %2484 = vmatprep.subr.mxu0 %v1894
    %2485 = vmatpush1.msra.mxu0 %v1893
    %2486 = vmatprep.subr.mxu0 0.0
    %2487 = vmatpush2.msra.mxu0 0.0
    %2488 = vmatprep.subr.mxu0 0.0
    %2489 = vmatpush2.msra.mxu0 0.0
    %2490 = vmatprep.subr.mxu0 0.0
    %2491 = vmatpush2.msra.mxu0 0.0
    %2492 = vmatprep.subr.mxu0 0.0
    %2493 = vmatpush2.msra.mxu0 0.0
    %2494 = vmatprep.subr.mxu0 0.0
    %2495 = vmatpush2.msra.mxu0 0.0
    %2496 = vmatprep.subr.mxu0 0.0
    %2497 = vmatpush2.msra.mxu0 0.0
    %2498 = vmatprep.subr.mxu0 0.0
    %2499 = vmatpush2.msra.mxu0 0.0
    %2500 = vmatprep.subr.mxu0 0.0
    %2501 = vmatpush2.msra.mxu0 0.0
    %2502 = vmatprep.subr.mxu0 0.0
    %2503 = vmatpush2.msra.mxu0 0.0
    %2504 = vmatprep.subr.mxu0 0.0
    %2505 = vmatpush2.msra.mxu0 0.0
    %2506 = vmatprep.subr.mxu0 0.0
    %2507 = vmatpush2.msra.mxu0 0.0
    %2508 = vmatprep.subr.mxu0 0.0
    %2509 = vmatpush2.msra.mxu0 0.0
    %2510 = vmatprep.subr.mxu0 0.0
    %2511 = vmatpush2.msra.mxu0 0.0
    %2512 = vmatprep.subr.mxu0 0.0
    %2513 = vmatpush2.msra.mxu0 0.0
    %2514 = vmatprep.subr.mxu0 0.0
    %2515 = vmatpush2.msra.mxu0 0.0
    %2516 = vmatprep.subr.mxu0 0.0
    %2517 = vmatpush2.msra.mxu0 0.0
    %2518 = vmatprep.mubr.f32.mxu0 0.0
    %2519 = vmatmul.mubr.f32.gmra.mxu0 %v2452
    %v2520 = vpop.f32.mrf.mxu0
    %v2521 = vadd.f32 0.0, %v2520
    %v2522 = vpop.f32.mrf.mxu0
    %v2523 = vadd.f32 0.0, %v2522
    %2524 = vdwg.mxu0
    %v2527 = vcombine.low %v2521, %v2523
    %v2529 = vunpack.c.l.s4 1966171168
    %v2530 = vunpack.c.0.s8 %v2529
    %v2531 = vlaneseq
    %v2532 = vshrl.u32 %v2531, 7
    %v2533 = vsub.s32 %v2530, %v2532
    %v2534 = vrot.slane %v2527, %v2533
    %v2535 = vcombine.high %v2534, %v2534
    %v2537 = vunpack.c.l.s4 1966171168
    %v2538 = vunpack.c.0.s8 %v2537
    %v2539 = vlaneseq
    %v2540 = vshrl.u32 %v2539, 7
    %v2541 = vsub.s32 %v2538, %v2540
    %v2542 = vrot.slane %v2534, %v2541
    %v2544 = vunpack.c.l.s4 1966171168
    %v2545 = vunpack.c.0.s8 %v2544
    %v2546 = vlaneseq
    %v2547 = vshrl.u32 %v2546, 7
    %v2548 = vsub.s32 %v2545, %v2547
    %v2549 = vrot.slane %v2535, %v2548
    %v2552 = vadd.f32 %v2433, %v2542
    %v2553 = vadd.f32 %v2434, %v2549
    %v2554 = vxor.u32 %v2552, 2147483648
    %v2555 = vxor.u32 %v2553, 2147483648
    %v2556 = vmul.f32 %v2554, 1.442695
    %v2557 = vpow.pop %v2556
    %v2558 = vmul.f32 %v2555, 1.442695
    %v2559 = vpow.pop %v2558
    %v2560 = vadd.f32 %v2557, 1.0
    %v2561 = vadd.f32 %v2559, 1.0
    %v2562 = vrcp.pop %v2560
    %v2563 = vmul.f32 1.0, %v2562
    %v2564 = vrcp.pop %v2561
    %v2565 = vmul.f32 1.0, %v2564
    %2568 = vrot.lane.b32.xlu0 %v2552, 64
    %v2569 = vpop.permute.xlu0 %2568
    %2570 = vrot.lane.b32.xlu0 %v2553, 64
    %v2571 = vpop.permute.xlu0 %2570
    %v2572 = vrot.slane %v2569, 1
    %v2573 = vrot.slane %v2571, 1
    %v2576 = vtanh.pop %v2572
    %v2577 = vtanh.pop %v2573
    %v2578 = vmul.f32 %v2563, %v2409
    %v2579 = vmul.f32 %v2565, %v2410
    %v2580 = vmul.f32 %v2563, %v2576
    %v2581 = vmul.f32 %v2565, %v2577
    %2584 = vrot.lane.b32.xlu0 %v2580, 64
    %v2585 = vpop.permute.xlu0 %2584
    %2586 = vrot.lane.b32.xlu0 %v2581, 64
    %v2587 = vpop.permute.xlu0 %2586
    %v2590 = vadd.f32 %v2578, %v2585
    %v2591 = vadd.f32 %v2579, %v2587
    %v2592 = vtanh.pop %v2590
    %v2593 = vtanh.pop %v2591
    %v2596 = vrot.slane %v2563, 1
    %v2597 = vrot.slane %v2565, 1
    %2602 = vrot.lane.b32.xlu0 %v2592, 64
    %v2603 = vpop.permute.xlu0 %2602
    %2604 = vrot.lane.b32.xlu0 %v2593, 64
    %v2605 = vpop.permute.xlu0 %2604
    %v2608 = vmul.f32 %v2596, %v2603
    %v2609 = vmul.f32 %v2597, %v2605
    %2610 = vst.msk [vmem:[#allocation3 + $0x3] sm:$0x1] %vm331, %v2608
    %2611 = vst.msk [vmem:[#allocation3 + $0xb] sm:$0x1] %vm331, %v2609
    %2612 = vst.msk [vmem:[#allocation3 + $0x4] sm:$0x1] %vm334, %v2608
    %2613 = vst.msk [vmem:[#allocation3 + $0xc] sm:$0x1] %vm334, %v2609
    %v2614 = vld [vmem:[%s962] ss:$8 sm:$0x3]
    %v2615 = vld [vmem:[%s964] ss:$8 sm:$0x3]
    %v2618 = vcombine.low %v2608, %v2609
    %v2620 = vunpack.c.l.s4 1966171168
    %v2621 = vunpack.c.0.s8 %v2620
    %v2622 = vlaneseq
    %v2623 = vshrl.u32 %v2622, 7
    %v2624 = vsub.s32 %v2621, %v2623
    %v2625 = vrot.slane %v2618, %v2624
    %v2627 = vunpack.c.l.s4 1966171168
    %v2628 = vunpack.c.0.s8 %v2627
    %v2629 = vlaneseq
    %v2630 = vshrl.u32 %v2629, 7
    %v2631 = vsub.s32 %v2628, %v2630
    %v2632 = vrot.slane %v2625, %v2631
    %v2633 = vsel %vm171, %v2632, 0
    %2635 = vmatprep.subr.mxu0 0.0
    %2636 = vmatpush1.msra.mxu0 0.0
    %2637 = vmatprep.subr.mxu0 0.0
    %2638 = vmatpush1.msra.mxu0 0.0
    %2639 = vmatprep.subr.mxu0 0.0
    %2640 = vmatpush1.msra.mxu0 0.0
    %2641 = vmatprep.subr.mxu0 0.0
    %2642 = vmatpush1.msra.mxu0 0.0
    %2643 = vmatprep.subr.mxu0 0.0
    %2644 = vmatpush1.msra.mxu0 0.0
    %2645 = vmatprep.subr.mxu0 0.0
    %2646 = vmatpush1.msra.mxu0 0.0
    %2647 = vmatprep.subr.mxu0 0.0
    %2648 = vmatpush1.msra.mxu0 0.0
    %2649 = vmatprep.subr.mxu0 0.0
    %2650 = vmatpush1.msra.mxu0 0.0
    %2651 = vmatprep.subr.mxu0 %v1908
    %2652 = vmatpush1.msra.mxu0 %v1907
    %2653 = vmatprep.subr.mxu0 %v1906
    %2654 = vmatpush1.msra.mxu0 %v1905
    %2655 = vmatprep.subr.mxu0 %v1904
    %2656 = vmatpush1.msra.mxu0 %v1903
    %2657 = vmatprep.subr.mxu0 %v1902
    %2658 = vmatpush1.msra.mxu0 %v1901
    %2659 = vmatprep.subr.mxu0 %v1900
    %2660 = vmatpush1.msra.mxu0 %v1899
    %2661 = vmatprep.subr.mxu0 %v1898
    %2662 = vmatpush1.msra.mxu0 %v1897
    %2663 = vmatprep.subr.mxu0 %v1896
    %2664 = vmatpush1.msra.mxu0 %v1895
    %2665 = vmatprep.subr.mxu0 %v1894
    %2666 = vmatpush1.msra.mxu0 %v1893
    %2667 = vmatprep.subr.mxu0 0.0
    %2668 = vmatpush2.msra.mxu0 0.0
    %2669 = vmatprep.subr.mxu0 0.0
    %2670 = vmatpush2.msra.mxu0 0.0
    %2671 = vmatprep.subr.mxu0 0.0
    %2672 = vmatpush2.msra.mxu0 0.0
    %2673 = vmatprep.subr.mxu0 0.0
    %2674 = vmatpush2.msra.mxu0 0.0
    %2675 = vmatprep.subr.mxu0 0.0
    %2676 = vmatpush2.msra.mxu0 0.0
    %2677 = vmatprep.subr.mxu0 0.0
    %2678 = vmatpush2.msra.mxu0 0.0
    %2679 = vmatprep.subr.mxu0 0.0
    %2680 = vmatpush2.msra.mxu0 0.0
    %2681 = vmatprep.subr.mxu0 0.0
    %2682 = vmatpush2.msra.mxu0 0.0
    %2683 = vmatprep.subr.mxu0 0.0
    %2684 = vmatpush2.msra.mxu0 0.0
    %2685 = vmatprep.subr.mxu0 0.0
    %2686 = vmatpush2.msra.mxu0 0.0
    %2687 = vmatprep.subr.mxu0 0.0
    %2688 = vmatpush2.msra.mxu0 0.0
    %2689 = vmatprep.subr.mxu0 0.0
    %2690 = vmatpush2.msra.mxu0 0.0
    %2691 = vmatprep.subr.mxu0 0.0
    %2692 = vmatpush2.msra.mxu0 0.0
    %2693 = vmatprep.subr.mxu0 0.0
    %2694 = vmatpush2.msra.mxu0 0.0
    %2695 = vmatprep.subr.mxu0 0.0
    %2696 = vmatpush2.msra.mxu0 0.0
    %2697 = vmatprep.subr.mxu0 0.0
    %2698 = vmatpush2.msra.mxu0 0.0
    %2699 = vmatprep.mubr.f32.mxu0 0.0
    %2700 = vmatmul.mubr.f32.gmra.mxu0 %v2633
    %v2701 = vpop.f32.mrf.mxu0
    %v2702 = vadd.f32 0.0, %v2701
    %v2703 = vpop.f32.mrf.mxu0
    %v2704 = vadd.f32 0.0, %v2703
    %2705 = vdwg.mxu0
    %v2708 = vcombine.low %v2702, %v2704
    %v2710 = vunpack.c.l.s4 1966171168
    %v2711 = vunpack.c.0.s8 %v2710
    %v2712 = vlaneseq
    %v2713 = vshrl.u32 %v2712, 7
    %v2714 = vsub.s32 %v2711, %v2713
    %v2715 = vrot.slane %v2708, %v2714
    %v2716 = vcombine.high %v2715, %v2715
    %v2718 = vunpack.c.l.s4 1966171168
    %v2719 = vunpack.c.0.s8 %v2718
    %v2720 = vlaneseq
    %v2721 = vshrl.u32 %v2720, 7
    %v2722 = vsub.s32 %v2719, %v2721
    %v2723 = vrot.slane %v2715, %v2722
    %v2725 = vunpack.c.l.s4 1966171168
    %v2726 = vunpack.c.0.s8 %v2725
    %v2727 = vlaneseq
    %v2728 = vshrl.u32 %v2727, 7
    %v2729 = vsub.s32 %v2726, %v2728
    %v2730 = vrot.slane %v2716, %v2729
    %v2733 = vadd.f32 %v2614, %v2723
    %v2734 = vadd.f32 %v2615, %v2730
    %v2735 = vxor.u32 %v2733, 2147483648
    %v2736 = vxor.u32 %v2734, 2147483648
    %v2737 = vmul.f32 %v2735, 1.442695
    %v2738 = vpow.pop %v2737
    %v2739 = vmul.f32 %v2736, 1.442695
    %v2740 = vpow.pop %v2739
    %v2741 = vadd.f32 %v2738, 1.0
    %v2742 = vadd.f32 %v2740, 1.0
    %v2743 = vrcp.pop %v2741
    %v2744 = vmul.f32 1.0, %v2743
    %v2745 = vrcp.pop %v2742
    %v2746 = vmul.f32 1.0, %v2745
    %2749 = vrot.lane.b32.xlu0 %v2733, 64
    %v2750 = vpop.permute.xlu0 %2749
    %2751 = vrot.lane.b32.xlu0 %v2734, 64
    %v2752 = vpop.permute.xlu0 %2751
    %v2753 = vrot.slane %v2750, 1
    %v2754 = vrot.slane %v2752, 1
    %v2757 = vtanh.pop %v2753
    %v2758 = vtanh.pop %v2754
    %v2759 = vmul.f32 %v2744, %v2590
    %v2760 = vmul.f32 %v2746, %v2591
    %v2761 = vmul.f32 %v2744, %v2757
    %v2762 = vmul.f32 %v2746, %v2758
    %2765 = vrot.lane.b32.xlu0 %v2761, 64
    %v2766 = vpop.permute.xlu0 %2765
    %2767 = vrot.lane.b32.xlu0 %v2762, 64
    %v2768 = vpop.permute.xlu0 %2767
    %v2771 = vadd.f32 %v2759, %v2766
    %v2772 = vadd.f32 %v2760, %v2768
    %v2773 = vtanh.pop %v2771
    %v2774 = vtanh.pop %v2772
    %v2777 = vrot.slane %v2744, 1
    %v2778 = vrot.slane %v2746, 1
    %2783 = vrot.lane.b32.xlu0 %v2773, 64
    %v2784 = vpop.permute.xlu0 %2783
    %2785 = vrot.lane.b32.xlu0 %v2774, 64
    %v2786 = vpop.permute.xlu0 %2785
    %v2789 = vmul.f32 %v2777, %v2784
    %v2790 = vmul.f32 %v2778, %v2786
    %2791 = vst.msk [vmem:[#allocation3 + $0x4] sm:$0x1] %vm331, %v2789
    %2792 = vst.msk [vmem:[#allocation3 + $0xc] sm:$0x1] %vm331, %v2790
    %2793 = vst.msk [vmem:[#allocation3 + $0x3] sm:$0x1] %vm334, %v2789
    %2794 = vst.msk [vmem:[#allocation3 + $0xb] sm:$0x1] %vm334, %v2790
    %v2795 = vld [vmem:[%s1163] ss:$8 sm:$0x3]
    %v2796 = vld [vmem:[%s1165] ss:$8 sm:$0x3]
    %v2799 = vcombine.low %v2789, %v2790
    %v2801 = vunpack.c.l.s4 1966171168
    %v2802 = vunpack.c.0.s8 %v2801
    %v2803 = vlaneseq
    %v2804 = vshrl.u32 %v2803, 7
    %v2805 = vsub.s32 %v2802, %v2804
    %v2806 = vrot.slane %v2799, %v2805
    %v2808 = vunpack.c.l.s4 1966171168
    %v2809 = vunpack.c.0.s8 %v2808
    %v2810 = vlaneseq
    %v2811 = vshrl.u32 %v2810, 7
    %v2812 = vsub.s32 %v2809, %v2811
    %v2813 = vrot.slane %v2806, %v2812
    %v2814 = vsel %vm171, %v2813, 0
    %2816 = vmatprep.subr.mxu0 0.0
    %2817 = vmatpush1.msra.mxu0 0.0
    %2818 = vmatprep.subr.mxu0 0.0
    %2819 = vmatpush1.msra.mxu0 0.0
    %2820 = vmatprep.subr.mxu0 0.0
    %2821 = vmatpush1.msra.mxu0 0.0
    %2822 = vmatprep.subr.mxu0 0.0
    %2823 = vmatpush1.msra.mxu0 0.0
    %2824 = vmatprep.subr.mxu0 0.0
    %2825 = vmatpush1.msra.mxu0 0.0
    %2826 = vmatprep.subr.mxu0 0.0
    %2827 = vmatpush1.msra.mxu0 0.0
    %2828 = vmatprep.subr.mxu0 0.0
    %2829 = vmatpush1.msra.mxu0 0.0
    %2830 = vmatprep.subr.mxu0 0.0
    %2831 = vmatpush1.msra.mxu0 0.0
    %2832 = vmatprep.subr.mxu0 %v1908
    %2833 = vmatpush1.msra.mxu0 %v1907
    %2834 = vmatprep.subr.mxu0 %v1906
    %2835 = vmatpush1.msra.mxu0 %v1905
    %2836 = vmatprep.subr.mxu0 %v1904
    %2837 = vmatpush1.msra.mxu0 %v1903
    %2838 = vmatprep.subr.mxu0 %v1902
    %2839 = vmatpush1.msra.mxu0 %v1901
    %2840 = vmatprep.subr.mxu0 %v1900
    %2841 = vmatpush1.msra.mxu0 %v1899
    %2842 = vmatprep.subr.mxu0 %v1898
    %2843 = vmatpush1.msra.mxu0 %v1897
    %2844 = vmatprep.subr.mxu0 %v1896
    %2845 = vmatpush1.msra.mxu0 %v1895
    %2846 = vmatprep.subr.mxu0 %v1894
    %2847 = vmatpush1.msra.mxu0 %v1893
    %2848 = vmatprep.subr.mxu0 0.0
    %2849 = vmatpush2.msra.mxu0 0.0
    %2850 = vmatprep.subr.mxu0 0.0
    %2851 = vmatpush2.msra.mxu0 0.0
    %2852 = vmatprep.subr.mxu0 0.0
    %2853 = vmatpush2.msra.mxu0 0.0
    %2854 = vmatprep.subr.mxu0 0.0
    %2855 = vmatpush2.msra.mxu0 0.0
    %2856 = vmatprep.subr.mxu0 0.0
    %2857 = vmatpush2.msra.mxu0 0.0
    %2858 = vmatprep.subr.mxu0 0.0
    %2859 = vmatpush2.msra.mxu0 0.0
    %2860 = vmatprep.subr.mxu0 0.0
    %2861 = vmatpush2.msra.mxu0 0.0
    %2862 = vmatprep.subr.mxu0 0.0
    %2863 = vmatpush2.msra.mxu0 0.0
    %2864 = vmatprep.subr.mxu0 0.0
    %2865 = vmatpush2.msra.mxu0 0.0
    %2866 = vmatprep.subr.mxu0 0.0
    %2867 = vmatpush2.msra.mxu0 0.0
    %2868 = vmatprep.subr.mxu0 0.0
    %2869 = vmatpush2.msra.mxu0 0.0
    %2870 = vmatprep.subr.mxu0 0.0
    %2871 = vmatpush2.msra.mxu0 0.0
    %2872 = vmatprep.subr.mxu0 0.0
    %2873 = vmatpush2.msra.mxu0 0.0
    %2874 = vmatprep.subr.mxu0 0.0
    %2875 = vmatpush2.msra.mxu0 0.0
    %2876 = vmatprep.subr.mxu0 0.0
    %2877 = vmatpush2.msra.mxu0 0.0
    %2878 = vmatprep.subr.mxu0 0.0
    %2879 = vmatpush2.msra.mxu0 0.0
    %2880 = vmatprep.mubr.f32.mxu0 0.0
    %2881 = vmatmul.mubr.f32.gmra.mxu0 %v2814
    %v2882 = vpop.f32.mrf.mxu0
    %v2883 = vadd.f32 0.0, %v2882
    %v2884 = vpop.f32.mrf.mxu0
    %v2885 = vadd.f32 0.0, %v2884
    %2886 = vdwg.mxu0
    %v2889 = vcombine.low %v2883, %v2885
    %v2891 = vunpack.c.l.s4 1966171168
    %v2892 = vunpack.c.0.s8 %v2891
    %v2893 = vlaneseq
    %v2894 = vshrl.u32 %v2893, 7
    %v2895 = vsub.s32 %v2892, %v2894
    %v2896 = vrot.slane %v2889, %v2895
    %v2897 = vcombine.high %v2896, %v2896
    %v2899 = vunpack.c.l.s4 1966171168
    %v2900 = vunpack.c.0.s8 %v2899
    %v2901 = vlaneseq
    %v2902 = vshrl.u32 %v2901, 7
    %v2903 = vsub.s32 %v2900, %v2902
    %v2904 = vrot.slane %v2896, %v2903
    %v2906 = vunpack.c.l.s4 1966171168
    %v2907 = vunpack.c.0.s8 %v2906
    %v2908 = vlaneseq
    %v2909 = vshrl.u32 %v2908, 7
    %v2910 = vsub.s32 %v2907, %v2909
    %v2911 = vrot.slane %v2897, %v2910
    %v2914 = vadd.f32 %v2795, %v2904
    %v2915 = vadd.f32 %v2796, %v2911
    %v2916 = vxor.u32 %v2914, 2147483648
    %v2917 = vxor.u32 %v2915, 2147483648
    %v2918 = vmul.f32 %v2916, 1.442695
    %v2919 = vpow.pop %v2918
    %v2920 = vmul.f32 %v2917, 1.442695
    %v2921 = vpow.pop %v2920
    %v2922 = vadd.f32 %v2919, 1.0
    %v2923 = vadd.f32 %v2921, 1.0
    %v2924 = vrcp.pop %v2922
    %v2925 = vmul.f32 1.0, %v2924
    %v2926 = vrcp.pop %v2923
    %v2927 = vmul.f32 1.0, %v2926
    %2930 = vrot.lane.b32.xlu0 %v2914, 64
    %v2931 = vpop.permute.xlu0 %2930
    %2932 = vrot.lane.b32.xlu0 %v2915, 64
    %v2933 = vpop.permute.xlu0 %2932
    %v2934 = vrot.slane %v2931, 1
    %v2935 = vrot.slane %v2933, 1
    %v2938 = vtanh.pop %v2934
    %v2939 = vtanh.pop %v2935
    %v2940 = vmul.f32 %v2925, %v2771
    %v2941 = vmul.f32 %v2927, %v2772
    %v2942 = vmul.f32 %v2925, %v2938
    %v2943 = vmul.f32 %v2927, %v2939
    %2946 = vrot.lane.b32.xlu0 %v2942, 64
    %v2947 = vpop.permute.xlu0 %2946
    %2948 = vrot.lane.b32.xlu0 %v2943, 64
    %v2949 = vpop.permute.xlu0 %2948
    %v2952 = vadd.f32 %v2940, %v2947
    %v2953 = vadd.f32 %v2941, %v2949
    %v2954 = vtanh.pop %v2952
    %v2955 = vtanh.pop %v2953
    %v2958 = vrot.slane %v2925, 1
    %v2959 = vrot.slane %v2927, 1
    %2964 = vrot.lane.b32.xlu0 %v2954, 64
    %v2965 = vpop.permute.xlu0 %2964
    %2966 = vrot.lane.b32.xlu0 %v2955, 64
    %v2967 = vpop.permute.xlu0 %2966
    %v2970 = vmul.f32 %v2958, %v2965
    %v2971 = vmul.f32 %v2959, %v2967
    %2972 = vst.msk [vmem:[#allocation3 + $0x5] sm:$0x1] %vm331, %v2970
    %2973 = vst.msk [vmem:[#allocation3 + $0xd] sm:$0x1] %vm331, %v2971
    %2974 = vst.msk [vmem:[#allocation3 + $0x2] sm:$0x1] %vm334, %v2970
    %2975 = vst.msk [vmem:[#allocation3 + $0xa] sm:$0x1] %vm334, %v2971
    %v2976 = vld [vmem:[%s1364] ss:$8 sm:$0x3]
    %v2977 = vld [vmem:[%s1366] ss:$8 sm:$0x3]
    %v2980 = vcombine.low %v2970, %v2971
    %v2982 = vunpack.c.l.s4 1966171168
    %v2983 = vunpack.c.0.s8 %v2982
    %v2984 = vlaneseq
    %v2985 = vshrl.u32 %v2984, 7
    %v2986 = vsub.s32 %v2983, %v2985
    %v2987 = vrot.slane %v2980, %v2986
    %v2989 = vunpack.c.l.s4 1966171168
    %v2990 = vunpack.c.0.s8 %v2989
    %v2991 = vlaneseq
    %v2992 = vshrl.u32 %v2991, 7
    %v2993 = vsub.s32 %v2990, %v2992
    %v2994 = vrot.slane %v2987, %v2993
    %v2995 = vsel %vm171, %v2994, 0
    %2997 = vmatprep.subr.mxu0 0.0
    %2998 = vmatpush1.msra.mxu0 0.0
    %2999 = vmatprep.subr.mxu0 0.0
    %3000 = vmatpush1.msra.mxu0 0.0
    %3001 = vmatprep.subr.mxu0 0.0
    %3002 = vmatpush1.msra.mxu0 0.0
    %3003 = vmatprep.subr.mxu0 0.0
    %3004 = vmatpush1.msra.mxu0 0.0
    %3005 = vmatprep.subr.mxu0 0.0
    %3006 = vmatpush1.msra.mxu0 0.0
    %3007 = vmatprep.subr.mxu0 0.0
    %3008 = vmatpush1.msra.mxu0 0.0
    %3009 = vmatprep.subr.mxu0 0.0
    %3010 = vmatpush1.msra.mxu0 0.0
    %3011 = vmatprep.subr.mxu0 0.0
    %3012 = vmatpush1.msra.mxu0 0.0
    %3013 = vmatprep.subr.mxu0 %v1908
    %3014 = vmatpush1.msra.mxu0 %v1907
    %3015 = vmatprep.subr.mxu0 %v1906
    %3016 = vmatpush1.msra.mxu0 %v1905
    %3017 = vmatprep.subr.mxu0 %v1904
    %3018 = vmatpush1.msra.mxu0 %v1903
    %3019 = vmatprep.subr.mxu0 %v1902
    %3020 = vmatpush1.msra.mxu0 %v1901
    %3021 = vmatprep.subr.mxu0 %v1900
    %3022 = vmatpush1.msra.mxu0 %v1899
    %3023 = vmatprep.subr.mxu0 %v1898
    %3024 = vmatpush1.msra.mxu0 %v1897
    %3025 = vmatprep.subr.mxu0 %v1896
    %3026 = vmatpush1.msra.mxu0 %v1895
    %3027 = vmatprep.subr.mxu0 %v1894
    %3028 = vmatpush1.msra.mxu0 %v1893
    %3029 = vmatprep.subr.mxu0 0.0
    %3030 = vmatpush2.msra.mxu0 0.0
    %3031 = vmatprep.subr.mxu0 0.0
    %3032 = vmatpush2.msra.mxu0 0.0
    %3033 = vmatprep.subr.mxu0 0.0
    %3034 = vmatpush2.msra.mxu0 0.0
    %3035 = vmatprep.subr.mxu0 0.0
    %3036 = vmatpush2.msra.mxu0 0.0
    %3037 = vmatprep.subr.mxu0 0.0
    %3038 = vmatpush2.msra.mxu0 0.0
    %3039 = vmatprep.subr.mxu0 0.0
    %3040 = vmatpush2.msra.mxu0 0.0
    %3041 = vmatprep.subr.mxu0 0.0
    %3042 = vmatpush2.msra.mxu0 0.0
    %3043 = vmatprep.subr.mxu0 0.0
    %3044 = vmatpush2.msra.mxu0 0.0
    %3045 = vmatprep.subr.mxu0 0.0
    %3046 = vmatpush2.msra.mxu0 0.0
    %3047 = vmatprep.subr.mxu0 0.0
    %3048 = vmatpush2.msra.mxu0 0.0
    %3049 = vmatprep.subr.mxu0 0.0
    %3050 = vmatpush2.msra.mxu0 0.0
    %3051 = vmatprep.subr.mxu0 0.0
    %3052 = vmatpush2.msra.mxu0 0.0
    %3053 = vmatprep.subr.mxu0 0.0
    %3054 = vmatpush2.msra.mxu0 0.0
    %3055 = vmatprep.subr.mxu0 0.0
    %3056 = vmatpush2.msra.mxu0 0.0
    %3057 = vmatprep.subr.mxu0 0.0
    %3058 = vmatpush2.msra.mxu0 0.0
    %3059 = vmatprep.subr.mxu0 0.0
    %3060 = vmatpush2.msra.mxu0 0.0
    %3061 = vmatprep.mubr.f32.mxu0 0.0
    %3062 = vmatmul.mubr.f32.gmra.mxu0 %v2995
    %v3063 = vpop.f32.mrf.mxu0
    %v3064 = vadd.f32 0.0, %v3063
    %v3065 = vpop.f32.mrf.mxu0
    %v3066 = vadd.f32 0.0, %v3065
    %3067 = vdwg.mxu0
    %v3070 = vcombine.low %v3064, %v3066
    %v3072 = vunpack.c.l.s4 1966171168
    %v3073 = vunpack.c.0.s8 %v3072
    %v3074 = vlaneseq
    %v3075 = vshrl.u32 %v3074, 7
    %v3076 = vsub.s32 %v3073, %v3075
    %v3077 = vrot.slane %v3070, %v3076
    %v3078 = vcombine.high %v3077, %v3077
    %v3080 = vunpack.c.l.s4 1966171168
    %v3081 = vunpack.c.0.s8 %v3080
    %v3082 = vlaneseq
    %v3083 = vshrl.u32 %v3082, 7
    %v3084 = vsub.s32 %v3081, %v3083
    %v3085 = vrot.slane %v3077, %v3084
    %v3087 = vunpack.c.l.s4 1966171168
    %v3088 = vunpack.c.0.s8 %v3087
    %v3089 = vlaneseq
    %v3090 = vshrl.u32 %v3089, 7
    %v3091 = vsub.s32 %v3088, %v3090
    %v3092 = vrot.slane %v3078, %v3091
    %v3095 = vadd.f32 %v2976, %v3085
    %v3096 = vadd.f32 %v2977, %v3092
    %v3097 = vxor.u32 %v3095, 2147483648
    %v3098 = vxor.u32 %v3096, 2147483648
    %v3099 = vmul.f32 %v3097, 1.442695
    %v3100 = vpow.pop %v3099
    %v3101 = vmul.f32 %v3098, 1.442695
    %v3102 = vpow.pop %v3101
    %v3103 = vadd.f32 %v3100, 1.0
    %v3104 = vadd.f32 %v3102, 1.0
    %v3105 = vrcp.pop %v3103
    %v3106 = vmul.f32 1.0, %v3105
    %v3107 = vrcp.pop %v3104
    %v3108 = vmul.f32 1.0, %v3107
    %3111 = vrot.lane.b32.xlu0 %v3095, 64
    %v3112 = vpop.permute.xlu0 %3111
    %3113 = vrot.lane.b32.xlu0 %v3096, 64
    %v3114 = vpop.permute.xlu0 %3113
    %v3115 = vrot.slane %v3112, 1
    %v3116 = vrot.slane %v3114, 1
    %v3119 = vtanh.pop %v3115
    %v3120 = vtanh.pop %v3116
    %v3121 = vmul.f32 %v3106, %v2952
    %v3122 = vmul.f32 %v3108, %v2953
    %v3123 = vmul.f32 %v3106, %v3119
    %v3124 = vmul.f32 %v3108, %v3120
    %3127 = vrot.lane.b32.xlu0 %v3123, 64
    %v3128 = vpop.permute.xlu0 %3127
    %3129 = vrot.lane.b32.xlu0 %v3124, 64
    %v3130 = vpop.permute.xlu0 %3129
    %v3133 = vadd.f32 %v3121, %v3128
    %v3134 = vadd.f32 %v3122, %v3130
    %v3135 = vtanh.pop %v3133
    %v3136 = vtanh.pop %v3134
    %v3139 = vrot.slane %v3106, 1
    %v3140 = vrot.slane %v3108, 1
    %3145 = vrot.lane.b32.xlu0 %v3135, 64
    %v3146 = vpop.permute.xlu0 %3145
    %3147 = vrot.lane.b32.xlu0 %v3136, 64
    %v3148 = vpop.permute.xlu0 %3147
    %v3151 = vmul.f32 %v3139, %v3146
    %v3152 = vmul.f32 %v3140, %v3148
    %3153 = vst.msk [vmem:[#allocation3 + $0x6] sm:$0x1] %vm331, %v3151
    %3154 = vst.msk [vmem:[#allocation3 + $0xe] sm:$0x1] %vm331, %v3152
    %3155 = vst.msk [vmem:[#allocation3 + $0x1] sm:$0x1] %vm334, %v3151
    %3156 = vst.msk [vmem:[#allocation3 + $0x9] sm:$0x1] %vm334, %v3152
    %v3157 = vld [vmem:[%s1565] ss:$8 sm:$0x3]
    %v3158 = vld [vmem:[%s1567] ss:$8 sm:$0x3]
    %v3161 = vcombine.low %v3151, %v3152
    %v3163 = vunpack.c.l.s4 1966171168
    %v3164 = vunpack.c.0.s8 %v3163
    %v3165 = vlaneseq
    %v3166 = vshrl.u32 %v3165, 7
    %v3167 = vsub.s32 %v3164, %v3166
    %v3168 = vrot.slane %v3161, %v3167
    %v3170 = vunpack.c.l.s4 1966171168
    %v3171 = vunpack.c.0.s8 %v3170
    %v3172 = vlaneseq
    %v3173 = vshrl.u32 %v3172, 7
    %v3174 = vsub.s32 %v3171, %v3173
    %v3175 = vrot.slane %v3168, %v3174
    %v3176 = vsel %vm171, %v3175, 0
    %3178 = vmatprep.subr.mxu0 0.0
    %3179 = vmatpush1.msra.mxu0 0.0
    %3180 = vmatprep.subr.mxu0 0.0
    %3181 = vmatpush1.msra.mxu0 0.0
    %3182 = vmatprep.subr.mxu0 0.0
    %3183 = vmatpush1.msra.mxu0 0.0
    %3184 = vmatprep.subr.mxu0 0.0
    %3185 = vmatpush1.msra.mxu0 0.0
    %3186 = vmatprep.subr.mxu0 0.0
    %3187 = vmatpush1.msra.mxu0 0.0
    %3188 = vmatprep.subr.mxu0 0.0
    %3189 = vmatpush1.msra.mxu0 0.0
    %3190 = vmatprep.subr.mxu0 0.0
    %3191 = vmatpush1.msra.mxu0 0.0
    %3192 = vmatprep.subr.mxu0 0.0
    %3193 = vmatpush1.msra.mxu0 0.0
    %3194 = vmatprep.subr.mxu0 %v1908
    %3195 = vmatpush1.msra.mxu0 %v1907
    %3196 = vmatprep.subr.mxu0 %v1906
    %3197 = vmatpush1.msra.mxu0 %v1905
    %3198 = vmatprep.subr.mxu0 %v1904
    %3199 = vmatpush1.msra.mxu0 %v1903
    %3200 = vmatprep.subr.mxu0 %v1902
    %3201 = vmatpush1.msra.mxu0 %v1901
    %3202 = vmatprep.subr.mxu0 %v1900
    %3203 = vmatpush1.msra.mxu0 %v1899
    %3204 = vmatprep.subr.mxu0 %v1898
    %3205 = vmatpush1.msra.mxu0 %v1897
    %3206 = vmatprep.subr.mxu0 %v1896
    %3207 = vmatpush1.msra.mxu0 %v1895
    %3208 = vmatprep.subr.mxu0 %v1894
    %3209 = vmatpush1.msra.mxu0 %v1893
    %3210 = vmatprep.subr.mxu0 0.0
    %3211 = vmatpush2.msra.mxu0 0.0
    %3212 = vmatprep.subr.mxu0 0.0
    %3213 = vmatpush2.msra.mxu0 0.0
    %3214 = vmatprep.subr.mxu0 0.0
    %3215 = vmatpush2.msra.mxu0 0.0
    %3216 = vmatprep.subr.mxu0 0.0
    %3217 = vmatpush2.msra.mxu0 0.0
    %3218 = vmatprep.subr.mxu0 0.0
    %3219 = vmatpush2.msra.mxu0 0.0
    %3220 = vmatprep.subr.mxu0 0.0
    %3221 = vmatpush2.msra.mxu0 0.0
    %3222 = vmatprep.subr.mxu0 0.0
    %3223 = vmatpush2.msra.mxu0 0.0
    %3224 = vmatprep.subr.mxu0 0.0
    %3225 = vmatpush2.msra.mxu0 0.0
    %3226 = vmatprep.subr.mxu0 0.0
    %3227 = vmatpush2.msra.mxu0 0.0
    %3228 = vmatprep.subr.mxu0 0.0
    %3229 = vmatpush2.msra.mxu0 0.0
    %3230 = vmatprep.subr.mxu0 0.0
    %3231 = vmatpush2.msra.mxu0 0.0
    %3232 = vmatprep.subr.mxu0 0.0
    %3233 = vmatpush2.msra.mxu0 0.0
    %3234 = vmatprep.subr.mxu0 0.0
    %3235 = vmatpush2.msra.mxu0 0.0
    %3236 = vmatprep.subr.mxu0 0.0
    %3237 = vmatpush2.msra.mxu0 0.0
    %3238 = vmatprep.subr.mxu0 0.0
    %3239 = vmatpush2.msra.mxu0 0.0
    %3240 = vmatprep.subr.mxu0 0.0
    %3241 = vmatpush2.msra.mxu0 0.0
    %3242 = vmatprep.mubr.f32.mxu0 0.0
    %3243 = vmatmul.mubr.f32.gmra.mxu0 %v3176
    %v3244 = vpop.f32.mrf.mxu0
    %v3245 = vadd.f32 0.0, %v3244
    %v3246 = vpop.f32.mrf.mxu0
    %v3247 = vadd.f32 0.0, %v3246
    %3248 = vdwg.mxu0
    %v3251 = vcombine.low %v3245, %v3247
    %v3253 = vunpack.c.l.s4 1966171168
    %v3254 = vunpack.c.0.s8 %v3253
    %v3255 = vlaneseq
    %v3256 = vshrl.u32 %v3255, 7
    %v3257 = vsub.s32 %v3254, %v3256
    %v3258 = vrot.slane %v3251, %v3257
    %v3259 = vcombine.high %v3258, %v3258
    %v3261 = vunpack.c.l.s4 1966171168
    %v3262 = vunpack.c.0.s8 %v3261
    %v3263 = vlaneseq
    %v3264 = vshrl.u32 %v3263, 7
    %v3265 = vsub.s32 %v3262, %v3264
    %v3266 = vrot.slane %v3258, %v3265
    %v3268 = vunpack.c.l.s4 1966171168
    %v3269 = vunpack.c.0.s8 %v3268
    %v3270 = vlaneseq
    %v3271 = vshrl.u32 %v3270, 7
    %v3272 = vsub.s32 %v3269, %v3271
    %v3273 = vrot.slane %v3259, %v3272
    %v3276 = vadd.f32 %v3157, %v3266
    %v3277 = vadd.f32 %v3158, %v3273
    %v3278 = vxor.u32 %v3276, 2147483648
    %v3279 = vxor.u32 %v3277, 2147483648
    %v3280 = vmul.f32 %v3278, 1.442695
    %v3281 = vpow.pop %v3280
    %v3282 = vmul.f32 %v3279, 1.442695
    %v3283 = vpow.pop %v3282
    %v3284 = vadd.f32 %v3281, 1.0
    %v3285 = vadd.f32 %v3283, 1.0
    %v3286 = vrcp.pop %v3284
    %v3287 = vmul.f32 1.0, %v3286
    %v3288 = vrcp.pop %v3285
    %v3289 = vmul.f32 1.0, %v3288
    %3292 = vrot.lane.b32.xlu0 %v3276, 64
    %v3293 = vpop.permute.xlu0 %3292
    %3294 = vrot.lane.b32.xlu0 %v3277, 64
    %v3295 = vpop.permute.xlu0 %3294
    %v3296 = vrot.slane %v3293, 1
    %v3297 = vrot.slane %v3295, 1
    %v3300 = vtanh.pop %v3296
    %v3301 = vtanh.pop %v3297
    %v3302 = vmul.f32 %v3287, %v3133
    %v3303 = vmul.f32 %v3289, %v3134
    %v3304 = vmul.f32 %v3287, %v3300
    %v3305 = vmul.f32 %v3289, %v3301
    %3308 = vrot.lane.b32.xlu0 %v3304, 64
    %v3309 = vpop.permute.xlu0 %3308
    %3310 = vrot.lane.b32.xlu0 %v3305, 64
    %v3311 = vpop.permute.xlu0 %3310
    %v3314 = vadd.f32 %v3302, %v3309
    %v3315 = vadd.f32 %v3303, %v3311
    %v3316 = vtanh.pop %v3314
    %v3317 = vtanh.pop %v3315
    %v3320 = vrot.slane %v3287, 1
    %v3321 = vrot.slane %v3289, 1
    %3326 = vrot.lane.b32.xlu0 %v3316, 64
    %v3327 = vpop.permute.xlu0 %3326
    %3328 = vrot.lane.b32.xlu0 %v3317, 64
    %v3329 = vpop.permute.xlu0 %3328
    %v3332 = vmul.f32 %v3320, %v3327
    %v3333 = vmul.f32 %v3321, %v3329
    %3334 = vst.msk [vmem:[#allocation3 + $0x7] sm:$0x1] %vm331, %v3332
    %3335 = vst.msk [vmem:[#allocation3 + $0xf] sm:$0x1] %vm331, %v3333
    %3336 = vst.msk [vmem:[#allocation3] sm:$0x1] %vm334, %v3332
    %3337 = vst.msk [vmem:[#allocation3 + $0x8] sm:$0x1] %vm334, %v3333
    %v3338 = vld [vmem:[#allocation3] sm:$0xff]
    %v3339 = vld [vmem:[#allocation3 + $0x8] sm:$0xff]
    %s3340 = sld [smem:[#allocation5]]
    %s3341 = sld [smem:[#allocation5 + $0x1]]
    %v3342 = vld [vmem:[%s0] sm:$0xff]
    %v3343 = vld [vmem:[%s0 + $0x8] sm:$0xff]
    %v3344 = vld [vmem:[%s10] sm:$0x1]
    %3346 = vset.pattern.permute.xlu0 0
    %3347 = vperm.xlu0 %3346, %v3342
    %v3348 = vpop.permute.xlu0 %3347
    %3351 = vset.pattern.permute.xlu0 0
    %3352 = vperm.xlu0 %3351, %v3343
    %v3353 = vpop.permute.xlu0 %3352
    %v3356 = vlaneseq
    %v3357 = vshrl.u32 %v3356, 7
    %v3358 = vsub.s32 0, %v3357
    %v3359 = vrot.slane %v3344, %v3358
    %v3361 = vmul.f32 %v3348, %v3359
    %v3362 = vmul.f32 %v3353, %v3359
    %v3363 = vld [vmem:[%s11] sm:$0xff]
    %v3364 = vld [vmem:[%s11 + $0x8] sm:$0xff]
    %v3365 = vld [vmem:[%s11 + $0x10] sm:$0xff]
    %v3366 = vld [vmem:[%s11 + $0x18] sm:$0xff]
    %v3367 = vld [vmem:[%s11 + $0x20] sm:$0xff]
    %v3368 = vld [vmem:[%s11 + $0x28] sm:$0xff]
    %v3369 = vld [vmem:[%s11 + $0x30] sm:$0xff]
    %v3370 = vld [vmem:[%s11 + $0x38] sm:$0xff]
    %v3372 = vsel %vm171, %v3338, 0
    %v3375 = vsel %vm171, %v3339, 0
    %3377 = vmatprep.subr.mxu0 0.0
    %3378 = vmatpush1.msra.mxu0 0.0
    %3379 = vmatprep.subr.mxu0 0.0
    %3380 = vmatpush1.msra.mxu0 0.0
    %3381 = vmatprep.subr.mxu0 0.0
    %3382 = vmatpush1.msra.mxu0 0.0
    %3383 = vmatprep.subr.mxu0 0.0
    %3384 = vmatpush1.msra.mxu0 0.0
    %3385 = vmatprep.subr.mxu0 0.0
    %3386 = vmatpush1.msra.mxu0 0.0
    %3387 = vmatprep.subr.mxu0 0.0
    %3388 = vmatpush1.msra.mxu0 0.0
    %3389 = vmatprep.subr.mxu0 0.0
    %3390 = vmatpush1.msra.mxu0 0.0
    %3391 = vmatprep.subr.mxu0 0.0
    %3392 = vmatpush1.msra.mxu0 0.0
    %3393 = vmatprep.subr.mxu0 0.0
    %3394 = vmatpush1.msra.mxu0 %v3370
    %3395 = vmatprep.subr.mxu0 0.0
    %3396 = vmatpush1.msra.mxu0 %v3369
    %3397 = vmatprep.subr.mxu0 0.0
    %3398 = vmatpush1.msra.mxu0 %v3368
    %3399 = vmatprep.subr.mxu0 0.0
    %3400 = vmatpush1.msra.mxu0 %v3367
    %3401 = vmatprep.subr.mxu0 0.0
    %3402 = vmatpush1.msra.mxu0 %v3366
    %3403 = vmatprep.subr.mxu0 0.0
    %3404 = vmatpush1.msra.mxu0 %v3365
    %3405 = vmatprep.subr.mxu0 0.0
    %3406 = vmatpush1.msra.mxu0 %v3364
    %3407 = vmatprep.subr.mxu0 0.0
    %3408 = vmatpush1.msra.mxu0 %v3363
    %3409 = vmatprep.subr.mxu0 0.0
    %3410 = vmatpush2.msra.mxu0 0.0
    %3411 = vmatprep.subr.mxu0 0.0
    %3412 = vmatpush2.msra.mxu0 0.0
    %3413 = vmatprep.subr.mxu0 0.0
    %3414 = vmatpush2.msra.mxu0 0.0
    %3415 = vmatprep.subr.mxu0 0.0
    %3416 = vmatpush2.msra.mxu0 0.0
    %3417 = vmatprep.subr.mxu0 0.0
    %3418 = vmatpush2.msra.mxu0 0.0
    %3419 = vmatprep.subr.mxu0 0.0
    %3420 = vmatpush2.msra.mxu0 0.0
    %3421 = vmatprep.subr.mxu0 0.0
    %3422 = vmatpush2.msra.mxu0 0.0
    %3423 = vmatprep.subr.mxu0 0.0
    %3424 = vmatpush2.msra.mxu0 0.0
    %3425 = vmatprep.subr.mxu0 0.0
    %3426 = vmatpush2.msra.mxu0 0.0
    %3427 = vmatprep.subr.mxu0 0.0
    %3428 = vmatpush2.msra.mxu0 0.0
    %3429 = vmatprep.subr.mxu0 0.0
    %3430 = vmatpush2.msra.mxu0 0.0
    %3431 = vmatprep.subr.mxu0 0.0
    %3432 = vmatpush2.msra.mxu0 0.0
    %3433 = vmatprep.subr.mxu0 0.0
    %3434 = vmatpush2.msra.mxu0 0.0
    %3435 = vmatprep.subr.mxu0 0.0
    %3436 = vmatpush2.msra.mxu0 0.0
    %3437 = vmatprep.subr.mxu0 0.0
    %3438 = vmatpush2.msra.mxu0 0.0
    %3439 = vmatprep.subr.mxu0 0.0
    %3440 = vmatpush2.msra.mxu0 0.0
    %3441 = vmatprep.mubr.f32.mxu0 0.0
    %3442 = vmatmul.mubr.f32.gmra.mxu0 %v3372
    %v3443 = vpop.f32.mrf.mxu0
    %v3444 = vadd.f32 0.0, %v3443
    %v3445 = vpop.f32.mrf.mxu0
    %3446 = vmatprep.mubr.f32.mxu0 0.0
    %3447 = vmatmul.mubr.f32.gmra.mxu0 %v3375
    %v3448 = vpop.f32.mrf.mxu0
    %v3449 = vadd.f32 0.0, %v3448
    %v3450 = vpop.f32.mrf.mxu0
    %3451 = vdwg.mxu0
    %v3452 = vadd.f32 %v3361, %v3444
    %v3453 = vadd.f32 %v3362, %v3449
    %v3454 = vld [vmem:[%s12] sm:$0x1]
    %v3456 = vlaneseq
    %v3457 = vshrl.u32 %v3456, 7
    %v3458 = vsub.s32 0, %v3457
    %v3459 = vrot.slane %v3454, %v3458
    %v3461 = vadd.f32 %v3452, %v3459
    %v3462 = vadd.f32 %v3453, %v3459
    %vm3463 = vcmp.ge.f32.partialorder %v3461, 0.0
    %vm3464 = vcmp.ge.f32.partialorder %v3462, 0.0
    %v3465 = vstv %s3340
    %v3466 = vmul.f32 %v3465, %v3461
    %v3467 = vmul.f32 %v3465, %v3462
    %v3468 = vsel %vm3463, %v3461, %v3466
    %v3469 = vsel %vm3464, %v3462, %v3467
    %v3470 = vld [vmem:[%s13] sm:$0xff]
    %v3471 = vld [vmem:[%s13 + $0x8] sm:$0xff]
    %v3472 = vld [vmem:[%s13 + $0x10] sm:$0xff]
    %v3473 = vld [vmem:[%s13 + $0x18] sm:$0xff]
    %v3474 = vld [vmem:[%s13 + $0x20] sm:$0xff]
    %v3475 = vld [vmem:[%s13 + $0x28] sm:$0xff]
    %v3476 = vld [vmem:[%s13 + $0x30] sm:$0xff]
    %v3477 = vld [vmem:[%s13 + $0x38] sm:$0xff]
    %v3478 = vld [vmem:[%s14] sm:$0x1]
    %v3480 = vlaneseq
    %v3481 = vshrl.u32 %v3480, 7
    %v3482 = vsub.s32 0, %v3481
    %v3483 = vrot.slane %v3478, %v3482
    %v3486 = vsel %vm171, %v3468, 0
    %v3489 = vsel %vm171, %v3469, 0
    %3491 = vmatprep.subr.mxu0 0.0
    %3492 = vmatpush1.msra.mxu0 0.0
    %3493 = vmatprep.subr.mxu0 0.0
    %3494 = vmatpush1.msra.mxu0 0.0
    %3495 = vmatprep.subr.mxu0 0.0
    %3496 = vmatpush1.msra.mxu0 0.0
    %3497 = vmatprep.subr.mxu0 0.0
    %3498 = vmatpush1.msra.mxu0 0.0
    %3499 = vmatprep.subr.mxu0 0.0
    %3500 = vmatpush1.msra.mxu0 0.0
    %3501 = vmatprep.subr.mxu0 0.0
    %3502 = vmatpush1.msra.mxu0 0.0
    %3503 = vmatprep.subr.mxu0 0.0
    %3504 = vmatpush1.msra.mxu0 0.0
    %3505 = vmatprep.subr.mxu0 0.0
    %3506 = vmatpush1.msra.mxu0 0.0
    %3507 = vmatprep.subr.mxu0 0.0
    %3508 = vmatpush1.msra.mxu0 %v3477
    %3509 = vmatprep.subr.mxu0 0.0
    %3510 = vmatpush1.msra.mxu0 %v3476
    %3511 = vmatprep.subr.mxu0 0.0
    %3512 = vmatpush1.msra.mxu0 %v3475
    %3513 = vmatprep.subr.mxu0 0.0
    %3514 = vmatpush1.msra.mxu0 %v3474
    %3515 = vmatprep.subr.mxu0 0.0
    %3516 = vmatpush1.msra.mxu0 %v3473
    %3517 = vmatprep.subr.mxu0 0.0
    %3518 = vmatpush1.msra.mxu0 %v3472
    %3519 = vmatprep.subr.mxu0 0.0
    %3520 = vmatpush1.msra.mxu0 %v3471
    %3521 = vmatprep.subr.mxu0 0.0
    %3522 = vmatpush1.msra.mxu0 %v3470
    %3523 = vmatprep.subr.mxu0 0.0
    %3524 = vmatpush2.msra.mxu0 0.0
    %3525 = vmatprep.subr.mxu0 0.0
    %3526 = vmatpush2.msra.mxu0 0.0
    %3527 = vmatprep.subr.mxu0 0.0
    %3528 = vmatpush2.msra.mxu0 0.0
    %3529 = vmatprep.subr.mxu0 0.0
    %3530 = vmatpush2.msra.mxu0 0.0
    %3531 = vmatprep.subr.mxu0 0.0
    %3532 = vmatpush2.msra.mxu0 0.0
    %3533 = vmatprep.subr.mxu0 0.0
    %3534 = vmatpush2.msra.mxu0 0.0
    %3535 = vmatprep.subr.mxu0 0.0
    %3536 = vmatpush2.msra.mxu0 0.0
    %3537 = vmatprep.subr.mxu0 0.0
    %3538 = vmatpush2.msra.mxu0 0.0
    %3539 = vmatprep.subr.mxu0 0.0
    %3540 = vmatpush2.msra.mxu0 0.0
    %3541 = vmatprep.subr.mxu0 0.0
    %3542 = vmatpush2.msra.mxu0 0.0
    %3543 = vmatprep.subr.mxu0 0.0
    %3544 = vmatpush2.msra.mxu0 0.0
    %3545 = vmatprep.subr.mxu0 0.0
    %3546 = vmatpush2.msra.mxu0 0.0
    %3547 = vmatprep.subr.mxu0 0.0
    %3548 = vmatpush2.msra.mxu0 0.0
    %3549 = vmatprep.subr.mxu0 0.0
    %3550 = vmatpush2.msra.mxu0 0.0
    %3551 = vmatprep.subr.mxu0 0.0
    %3552 = vmatpush2.msra.mxu0 0.0
    %3553 = vmatprep.subr.mxu0 0.0
    %3554 = vmatpush2.msra.mxu0 0.0
    %3555 = vmatprep.mubr.f32.mxu0 0.0
    %3556 = vmatmul.mubr.f32.gmra.mxu0 %v3486
    %v3557 = vpop.f32.mrf.mxu0
    %v3558 = vadd.f32 %v3483, %v3557
    %v3559 = vpop.f32.mrf.mxu0
    %3560 = vmatprep.mubr.f32.mxu0 0.0
    %3561 = vmatmul.mubr.f32.gmra.mxu0 %v3489
    %v3562 = vpop.f32.mrf.mxu0
    %v3563 = vadd.f32 %v3483, %v3562
    %v3564 = vpop.f32.mrf.mxu0
    %3565 = vdwg.mxu0
    %vm3566 = vcmp.ge.f32.partialorder %v3558, 0.0
    %vm3567 = vcmp.ge.f32.partialorder %v3563, 0.0
    %v3568 = vstv %s3341
    %v3569 = vmul.f32 %v3568, %v3558
    %v3570 = vmul.f32 %v3568, %v3563
    %v3571 = vsel %vm3566, %v3558, %v3569
    %v3572 = vsel %vm3567, %v3563, %v3570
    %v3573 = vld [vmem:[%s15] sm:$0xff]
    %v3574 = vld [vmem:[%s15 + $0x8] sm:$0xff]
    %v3575 = vld [vmem:[%s15 + $0x10] sm:$0xff]
    %v3576 = vld [vmem:[%s15 + $0x18] sm:$0xff]
    %v3577 = vld [vmem:[%s15 + $0x20] sm:$0xff]
    %v3578 = vld [vmem:[%s15 + $0x28] sm:$0xff]
    %v3579 = vld [vmem:[%s15 + $0x30] sm:$0xff]
    %v3580 = vld [vmem:[%s15 + $0x38] sm:$0xff]
    %v3581 = vld [vmem:[%s16] sm:$0x1]
    %v3583 = vlaneseq
    %v3584 = vshrl.u32 %v3583, 7
    %v3585 = vsub.s32 0, %v3584
    %v3586 = vrot.slane %v3581, %v3585
    %v3589 = vsel %vm171, %v3571, 0
    %v3592 = vsel %vm171, %v3572, 0
    %3594 = vmatprep.subr.mxu0 0.0
    %3595 = vmatpush1.msra.mxu0 0.0
    %3596 = vmatprep.subr.mxu0 0.0
    %3597 = vmatpush1.msra.mxu0 0.0
    %3598 = vmatprep.subr.mxu0 0.0
    %3599 = vmatpush1.msra.mxu0 0.0
    %3600 = vmatprep.subr.mxu0 0.0
    %3601 = vmatpush1.msra.mxu0 0.0
    %3602 = vmatprep.subr.mxu0 0.0
    %3603 = vmatpush1.msra.mxu0 0.0
    %3604 = vmatprep.subr.mxu0 0.0
    %3605 = vmatpush1.msra.mxu0 0.0
    %3606 = vmatprep.subr.mxu0 0.0
    %3607 = vmatpush1.msra.mxu0 0.0
    %3608 = vmatprep.subr.mxu0 0.0
    %3609 = vmatpush1.msra.mxu0 0.0
    %3610 = vmatprep.subr.mxu0 0.0
    %3611 = vmatpush1.msra.mxu0 %v3580
    %3612 = vmatprep.subr.mxu0 0.0
    %3613 = vmatpush1.msra.mxu0 %v3579
    %3614 = vmatprep.subr.mxu0 0.0
    %3615 = vmatpush1.msra.mxu0 %v3578
    %3616 = vmatprep.subr.mxu0 0.0
    %3617 = vmatpush1.msra.mxu0 %v3577
    %3618 = vmatprep.subr.mxu0 0.0
    %3619 = vmatpush1.msra.mxu0 %v3576
    %3620 = vmatprep.subr.mxu0 0.0
    %3621 = vmatpush1.msra.mxu0 %v3575
    %3622 = vmatprep.subr.mxu0 0.0
    %3623 = vmatpush1.msra.mxu0 %v3574
    %3624 = vmatprep.subr.mxu0 0.0
    %3625 = vmatpush1.msra.mxu0 %v3573
    %3626 = vmatprep.subr.mxu0 0.0
    %3627 = vmatpush2.msra.mxu0 0.0
    %3628 = vmatprep.subr.mxu0 0.0
    %3629 = vmatpush2.msra.mxu0 0.0
    %3630 = vmatprep.subr.mxu0 0.0
    %3631 = vmatpush2.msra.mxu0 0.0
    %3632 = vmatprep.subr.mxu0 0.0
    %3633 = vmatpush2.msra.mxu0 0.0
    %3634 = vmatprep.subr.mxu0 0.0
    %3635 = vmatpush2.msra.mxu0 0.0
    %3636 = vmatprep.subr.mxu0 0.0
    %3637 = vmatpush2.msra.mxu0 0.0
    %3638 = vmatprep.subr.mxu0 0.0
    %3639 = vmatpush2.msra.mxu0 0.0
    %3640 = vmatprep.subr.mxu0 0.0
    %3641 = vmatpush2.msra.mxu0 0.0
    %3642 = vmatprep.subr.mxu0 0.0
    %3643 = vmatpush2.msra.mxu0 0.0
    %3644 = vmatprep.subr.mxu0 0.0
    %3645 = vmatpush2.msra.mxu0 0.0
    %3646 = vmatprep.subr.mxu0 0.0
    %3647 = vmatpush2.msra.mxu0 0.0
    %3648 = vmatprep.subr.mxu0 0.0
    %3649 = vmatpush2.msra.mxu0 0.0
    %3650 = vmatprep.subr.mxu0 0.0
    %3651 = vmatpush2.msra.mxu0 0.0
    %3652 = vmatprep.subr.mxu0 0.0
    %3653 = vmatpush2.msra.mxu0 0.0
    %3654 = vmatprep.subr.mxu0 0.0
    %3655 = vmatpush2.msra.mxu0 0.0
    %3656 = vmatprep.subr.mxu0 0.0
    %3657 = vmatpush2.msra.mxu0 0.0
    %3658 = vmatprep.mubr.f32.mxu0 0.0
    %3659 = vmatmul.mubr.f32.gmra.mxu0 %v3589
    %v3660 = vpop.f32.mrf.mxu0
    %v3661 = vadd.f32 %v3586, %v3660
    %v3662 = vpop.f32.mrf.mxu0
    %3663 = vmatprep.mubr.f32.mxu0 0.0
    %3664 = vmatmul.mubr.f32.gmra.mxu0 %v3592
    %v3665 = vpop.f32.mrf.mxu0
    %v3666 = vadd.f32 %v3586, %v3665
    %v3667 = vpop.f32.mrf.mxu0
    %3668 = vdwg.mxu0
    %vm3669 = vcmask 15360
    %3670 = vst.msk [vmem:[%s18] sm:$0xff] %vm3669, %v3661
    %3671 = vst.msk [vmem:[%s18 + $0x8] sm:$0xff] %vm3669, %v3666
    // Predicated region
    $region78: #{peak_identifier_forward.1} parent=1 // pred_check
      _
    $region79: #{peak_identifier_forward.1} parent=1 // pred_check_branch
      %3673 = sbr.rel (0) target = $region81
    $region80: #{peak_identifier_forward.1} parent=1 // pred_region
      _
    $region81: #{peak_identifier_forward.1} parent=1 // pred_fallthru
      _
    // Predicated region
    $region82: #{peak_identifier_forward.1} parent=1 // pred_check
      _
    $region83: #{peak_identifier_forward.1} parent=1 // pred_check_branch
      %3675 = sbr.rel (0) target = $region85
    $region84: #{peak_identifier_forward.1} parent=1 // pred_region
      _
    $region85: #{peak_identifier_forward.1} parent=1 // pred_fallthru
      _
    %3676 = vsyncpa [#allocation6], 1

</llo_original>
